<compile_context>
chip_gen: v5e
topology: v5e:2x2
jax: 0.10.0
libtpu: 0.0.40
codegen_flags: <defaults>
</compile_context>

<pallas_src>
import functools

import jax
import jax.numpy as jnp
from jax import lax
from jax.experimental import pallas as pl
from jax.experimental.pallas import tpu as pltpu

_BIG = 1e30  # "+inf" stand-in for masked distances (keeps all arithmetic finite)


# ---------------------------------------------------------------------------
# Batched EdgeConv for a block of point clouds Xb: [Bt, N, F] -> [Bt*N, C_out]
#   1. pairwise squared distances, diagonal masked (exclude self, like torch.sort()[:, 1:K+1])
#   2. K iterative arg-min passes (lowest-index tie break), one-hots stacked to [Bt, K*N, N]
#   3. ONE batched one-hot dot_general gathers all K neighbors at once
#   4. per-edge MLP (1x1 conv + folded BN + ReLU) as big stacked matmuls over K*Bt*N rows
#   5. max over the K neighbors
# small_f=True keeps every inner-dim-2 contraction (distances, first layer) on the VPU.
# ---------------------------------------------------------------------------
def _edge_conv_batched(Xb, K, w1a, w1b, b1, rest, *, small_f):
    Bt, N, F = Xb.shape
    big = jnp.float32(_BIG)

    # ---- pairwise squared distances (f32 KNN numerics) ------------------------------
    if small_f:
        # direct (xi - xj)^2 form: exact-zero diagonal, no MXU use for an inner dim of 2
        dd = Xb[:, :, None, :] - Xb[:, None, :, :]                  # [Bt, N, N, 2]
        dist = jnp.sum(dd * dd, axis=3)                             # [Bt, N, N]
    else:
        Xsq = Xb * Xb
        s_col = jnp.sum(Xsq, axis=2, keepdims=True)                 # [Bt, N, 1]
        s_row = jnp.sum(Xsq, axis=2)[:, None, :]                    # [Bt, 1, N]
        Gm = lax.dot_general(Xb, Xb, (((2,), (2,)), ((0,), (0,))),
                             preferred_element_type=jnp.float32)    # [Bt, N, N]
        dist = s_col + s_row - 2.0 * Gm

    # Exclude self: mask the diagonal (torch.sort()[:, 1:K+1] drops index 0 == self).
    rowi = lax.broadcasted_iota(jnp.int32, (Bt, N, N), 1)
    coli = lax.broadcasted_iota(jnp.int32, (Bt, N, N), 2)
    dist = jnp.where(rowi == coli, big, dist)
    colf = coli.astype(jnp.float32)

    # ---- K iterative arg-min passes (lowest-index tie break), batched over Bt --------
    onehots = []
    dwork = dist
    for _ in range(K):
        mn = jnp.min(dwork, axis=2, keepdims=True)                  # [Bt, N, 1]
        sel = jnp.min(jnp.where(dwork == mn, colf, jnp.float32(N)),
                      axis=2, keepdims=True)                        # lowest index of the min
        oh = (colf == sel).astype(jnp.float32)                      # [Bt, N, N]
        dwork = jnp.where(oh > 0.0, big, dwork)                     # mask the selected entry
        onehots.append(oh)
    oh_all = jnp.concatenate(onehots, axis=1)                       # [Bt, K*N, N]

    # ---- ONE batched gather of all K neighbors ---------------------------------------
    nb = lax.dot_general(oh_all, Xb, (((2,), (1,)), ((0,), (0,))),
                         preferred_element_type=jnp.float32)        # [Bt, K*N, F]
    diff4 = nb.reshape(Bt, K, N, F) - Xb[:, None, :, :]             # [Bt, K, N, F]

    # ---- first MLP layer on [x, x_j - x]  (BN scale pre-folded into w1a / w1b) -------
    C1 = w1a.shape[-1]
    if small_f:
        base = Xb[:, :, 0:1] * w1a[0:1, :] + Xb[:, :, 1:2] * w1a[1:2, :]        # [Bt, N, C1]
        dterm = diff4[..., 0:1] * w1b[0:1, :] + diff4[..., 1:2] * w1b[1:2, :]   # [Bt, K, N, C1]
        h4 = dterm + base[:, None, :, :]
    else:
        base = jnp.dot(Xb.reshape(Bt * N, F).astype(w1a.dtype), w1a,
                       preferred_element_type=jnp.float32)                      # [Bt*N, C1]
        dterm = jnp.dot(diff4.reshape(Bt * K * N, F).astype(w1b.dtype), w1b,
                        preferred_element_type=jnp.float32)                     # [Bt*K*N, C1]
        h4 = dterm.reshape(Bt, K, N, C1) + base.reshape(Bt, 1, N, C1)

    h = jnp.maximum(h4 + b1, 0.0).reshape(Bt * K * N, C1)

    # ---- remaining 1x1-conv layers: stacked matmuls over all K*Bt*N edge rows --------
    for (W, bi) in rest:
        h = jnp.maximum(
            jnp.dot(h.astype(W.dtype), W, preferred_element_type=jnp.float32) + bi,
            0.0)

    C = h.shape[-1]
    return jnp.max(h.reshape(Bt, K, N, C), axis=1).reshape(Bt * N, C)           # max over K


# ---------------------------------------------------------------------------
# Fused kernel: whole forward() for one block of Bt batch elements.
# ---------------------------------------------------------------------------
def dgcnn_kernel(lm_ref, *refs, K):
    (e1_w1a_r, e1_w1b_r, e1_b1_r,
     e1_w2_r, e1_b2_r, e1_w3_r, e1_b3_r,
     e2_w1a_r, e2_w1b_r, e2_b1_r,
     cb_w_r, cb_b_r, fb_w_r, fb_b_r,
     fc_w_r, fc_b_r, out_ref) = refs

    X = lm_ref[0]                                                   # [Bt, N, 2] f32
    Bt, N, _ = X.shape

    # EdgeConv(layers=[2, 256, 256, 64], K): F=2 distance / first layer on the VPU
    h1 = _edge_conv_batched(
        X, K, e1_w1a_r[...], e1_w1b_r[...], e1_b1_r[...],
        [(e1_w2_r[...], e1_b2_r[...]), (e1_w3_r[...], e1_b3_r[...])],
        small_f=True)                                               # [Bt*N, 64]

    # EdgeConv(layers=[64, 128], K)
    h2 = _edge_conv_batched(
        h1.reshape(Bt, N, h1.shape[-1]), K,
        e2_w1a_r[...], e2_w1b_r[...], e2_b1_r[...], [],
        small_f=False)                                              # [Bt*N, 128]

    # conv_block: Conv1d(128, 1024, 1) + BN + ReLU as one stacked bf16 matmul
    cb_w = cb_w_r[...]
    g = jnp.maximum(
        jnp.dot(h2.astype(cb_w.dtype), cb_w,
                preferred_element_type=jnp.float32) + cb_b_r[...], 0.0)         # [Bt*N, 1024]

    # AvgPool1d(N): sublane-axis reduce (XLU), no in-kernel pooling matrix
    pooled = jnp.sum(g.reshape(Bt, N, g.shape[-1]), axis=1) * (1.0 / N)         # [Bt, 1024]

    # fc_block: Linear(1024, 512) + BN1d + ReLU, M = Bt rows per step
    fb_w = fb_w_r[...]
    f1 = jnp.maximum(
        jnp.dot(pooled.astype(fb_w.dtype), fb_w,
                preferred_element_type=jnp.float32) + fb_b_r[...], 0.0)         # [Bt, 512]

    # fc: Linear(512, num_classes) — lane-dense output (padded to 128, sliced in the wrapper)
    fc_w = fc_w_r[...]
    out_ref[0] = (jnp.dot(f1.astype(fc_w.dtype), fc_w,
                          preferred_element_type=jnp.float32) + fc_b_r[...])


# ---------------------------------------------------------------------------
# Wrapper: parameter plumbing (BN scale folding, bf16 casts, padding) + pallas_call
# ---------------------------------------------------------------------------
def resnet_and_dgcnn_forward(x_img, landmark, params, *, K=3, block_b=None):
    del x_img  # unused by the PyTorch forward() as well
    B, two, N = landmark.shape
    assert two == 2
    lm = jnp.transpose(landmark, (0, 2, 1)).astype(jnp.float32)     # [B, N, 2]

    nc = params['fc_b'].shape[-1]
    nc_pad = ((nc + 127) // 128) * 128                              # lane-dense output

    # Batch-block size: target >= 512 stacked MXU rows per step, but keep G = ceil(B/Bt) >= 2
    # (when B >= 2) so the "parallel" batch axis can shard across v7x's two TensorCores.
    if block_b is None:
        block_b = max(1, min(-(-B // 2), 512 // max(N, 1)))
    Bt = max(1, int(block_b))
    G = -(-B // Bt)
    B_pad = G * Bt
    if B_pad != B:
        lm = jnp.concatenate([lm, jnp.zeros((B_pad - B, N, 2), jnp.float32)], axis=0)
    lm = lm.reshape(G, Bt, N, 2)

    bf16 = jnp.bfloat16
    f32 = jnp.float32

    # Fold BN scales into the conv/linear weights (wrapper-side); only biases stay in-kernel.
    e1_w1a = (params['e1_w1a'] * params['e1_s1']).astype(f32)       # F=2 layer stays f32 (VPU path)
    e1_w1b = (params['e1_w1b'] * params['e1_s1']).astype(f32)
    e1_w2 = (params['e1_w2'] * params['e1_s2']).astype(bf16)
    e1_w3 = (params['e1_w3'] * params['e1_s3']).astype(bf16)
    e2_w1a = (params['e2_w1a'] * params['e2_s1']).astype(bf16)
    e2_w1b = (params['e2_w1b'] * params['e2_s1']).astype(bf16)
    cb_w = (params['cb_w'] * params['cb_s']).astype(bf16)
    fb_w = (params['fb_w'] * params['fb_s']).astype(bf16)
    fc_w = jnp.pad(params['fc_w'].astype(bf16), ((0, 0), (0, nc_pad - nc)))
    fc_b = jnp.pad(params['fc_b'].astype(f32), ((0, 0), (0, nc_pad - nc)))

    ws = [
        e1_w1a, e1_w1b, params['e1_b1'].astype(f32),
        e1_w2, params['e1_b2'].astype(f32),
        e1_w3, params['e1_b3'].astype(f32),
        e2_w1a, e2_w1b, params['e2_b1'].astype(f32),
        cb_w, params['cb_b'].astype(f32),
        fb_w, params['fb_b'].astype(f32),
        fc_w, fc_b,
    ]

    in_specs = [pl.BlockSpec((1, Bt, N, 2), lambda g: (g, 0, 0, 0))]
    for w in ws:
        in_specs.append(pl.BlockSpec(w.shape, lambda g: (0, 0)))    # constant index map: fetched once
    out_spec = pl.BlockSpec((1, Bt, nc_pad), lambda g: (g, 0, 0))

    out = pl.pallas_call(
        functools.partial(dgcnn_kernel, K=K),
        out_shape=jax.ShapeDtypeStruct((G, Bt, nc_pad), jnp.float32),
        grid_spec=pltpu.PrefetchScalarGridSpec(
            num_scalar_prefetch=0,
            grid=(G,),
            in_specs=in_specs,
            out_specs=out_spec,
        ),
        compiler_params=pltpu.CompilerParams(
            dimension_semantics=("parallel",),        # batch blocks shard across v7x's 2 TCs
            vmem_limit_bytes=32 * 1024 * 1024),       # all intermediates fit well below 32 MiB
    )(lm, *ws)
    return out.reshape(B_pad, nc_pad)[:B, :nc]


# ---------------------------------------------------------------------------
# Deterministic parameter initialization (BN folded to per-channel scale/bias)
# ---------------------------------------------------------------------------
def _init_conv_bn(key, din, dout, eps=1e-5):
    ks = jax.random.split(key, 6)
    W = jax.random.normal(ks[0], (din, dout), jnp.float32) / jnp.sqrt(din)
    b = 0.05 * jax.random.normal(ks[1], (dout,), jnp.float32)                # conv / linear bias
    gamma = 1.0 + 0.1 * jax.random.normal(ks[2], (dout,), jnp.float32)
    beta = 0.1 * jax.random.normal(ks[3], (dout,), jnp.float32)
    mean = 0.1 * jax.random.normal(ks[4], (dout,), jnp.float32)
    var = 0.5 + jax.random.uniform(ks[5], (dout,), jnp.float32)
    scale = gamma / jnp.sqrt(var + eps)
    bias = beta + scale * (b - mean)
    return W, scale.reshape(1, dout), bias.reshape(1, dout)


def init_params(key, num_classes=16):
    keys = jax.random.split(key, 8)
    p = {}
    # edge_conv_1: layers [2, 256, 256, 64]; first conv takes 2*F = 4 channels
    W1, p['e1_s1'], p['e1_b1'] = _init_conv_bn(keys[0], 4, 256)
    p['e1_w1a'], p['e1_w1b'] = W1[:2], W1[2:]
    p['e1_w2'], p['e1_s2'], p['e1_b2'] = _init_conv_bn(keys[1], 256, 256)
    p['e1_w3'], p['e1_s3'], p['e1_b3'] = _init_conv_bn(keys[2], 256, 64)
    # edge_conv_2: layers [64, 128]; single conv takes 2*64 = 128 channels
    W4, p['e2_s1'], p['e2_b1'] = _init_conv_bn(keys[3], 128, 128)
    p['e2_w1a'], p['e2_w1b'] = W4[:64], W4[64:]
    # conv_block: Conv1d(128, 1024, 1) + BN + ReLU
    p['cb_w'], p['cb_s'], p['cb_b'] = _init_conv_bn(keys[4], 128, 1024)
    # fc_block: Linear(1024, 512) + BN1d + ReLU
    p['fb_w'], p['fb_s'], p['fb_b'] = _init_conv_bn(keys[5], 1024, 512)
    # fc: Linear(512, num_classes)
    p['fc_w'] = jax.random.normal(keys[6], (512, num_classes), jnp.float32) / jnp.sqrt(512)
    p['fc_b'] = (0.05 * jax.random.normal(keys[7], (num_classes,), jnp.float32)).reshape(1, num_classes)
    return p


if __name__ == "__main__":
    key = jax.random.PRNGKey(0)
    k_lm, k_img, k_par = jax.random.split(key, 3)

    B, N, num_classes = 2, 8, 16
    # landmark: [B, 2, N]  (x/y coordinates of N landmarks), as expected by forward()
    landmark = jax.random.uniform(k_lm, (B, 2, N), jnp.float32, 0.0, 16.0)
    # image input (NCHW) — constructed per signature, unused by forward()
    x_img = jax.random.normal(k_img, (B, 1, 16, 16), jnp.float32)

    params = init_params(k_par, num_classes=num_classes)

    out = resnet_and_dgcnn_forward(x_img, landmark, params, K=3)
    out = jax.block_until_ready(out)
    assert out.shape == (B, num_classes) and out.dtype == jnp.float32
    print("KERNEL_OK")
</pallas_src>

<mosaic_0001>
module attributes {stable_mosaic.version = 11 : i64} {
  func.func @dgcnn_kernel(%arg0: i32, %arg1: memref<1x1x8x2xf32, #tpu.memory_space<vmem>>, %arg2: memref<2x256xf32, #tpu.memory_space<vmem>>, %arg3: memref<2x256xf32, #tpu.memory_space<vmem>>, %arg4: memref<1x256xf32, #tpu.memory_space<vmem>>, %arg5: memref<256x256xbf16, #tpu.memory_space<vmem>>, %arg6: memref<1x256xf32, #tpu.memory_space<vmem>>, %arg7: memref<256x64xbf16, #tpu.memory_space<vmem>>, %arg8: memref<1x64xf32, #tpu.memory_space<vmem>>, %arg9: memref<64x128xbf16, #tpu.memory_space<vmem>>, %arg10: memref<64x128xbf16, #tpu.memory_space<vmem>>, %arg11: memref<1x128xf32, #tpu.memory_space<vmem>>, %arg12: memref<128x1024xbf16, #tpu.memory_space<vmem>>, %arg13: memref<1x1024xf32, #tpu.memory_space<vmem>>, %arg14: memref<1024x512xbf16, #tpu.memory_space<vmem>>, %arg15: memref<1x512xf32, #tpu.memory_space<vmem>>, %arg16: memref<512x128xbf16, #tpu.memory_space<vmem>>, %arg17: memref<1x128xf32, #tpu.memory_space<vmem>>, %arg18: memref<1x1x128xf32, #tpu.memory_space<vmem>>) attributes {dimension_semantics = [#tpu.dimension_semantics<parallel>], iteration_bounds = array<i64: 2>, scalar_prefetch = 0 : i64, scratch_operands = 0 : i64, tpu.core_type = #tpu.core_type<tc>, window_params = [{transform_indices = @transform_0, window_bounds = array<i64: 1, 1, 8, 2>}, {pipeline_mode = #tpu.pipeline_mode<synchronous>, transform_indices = @transform_1, window_bounds = array<i64: 2, 256>}, {pipeline_mode = #tpu.pipeline_mode<synchronous>, transform_indices = @transform_2, window_bounds = array<i64: 2, 256>}, {pipeline_mode = #tpu.pipeline_mode<synchronous>, transform_indices = @transform_3, window_bounds = array<i64: 1, 256>}, {pipeline_mode = #tpu.pipeline_mode<synchronous>, transform_indices = @transform_4, window_bounds = array<i64: 256, 256>}, {pipeline_mode = #tpu.pipeline_mode<synchronous>, transform_indices = @transform_5, window_bounds = array<i64: 1, 256>}, {pipeline_mode = #tpu.pipeline_mode<synchronous>, transform_indices = @transform_6, window_bounds = array<i64: 256, 64>}, {pipeline_mode = #tpu.pipeline_mode<synchronous>, transform_indices = @transform_7, window_bounds = array<i64: 1, 64>}, {pipeline_mode = #tpu.pipeline_mode<synchronous>, transform_indices = @transform_8, window_bounds = array<i64: 64, 128>}, {pipeline_mode = #tpu.pipeline_mode<synchronous>, transform_indices = @transform_9, window_bounds = array<i64: 64, 128>}, {pipeline_mode = #tpu.pipeline_mode<synchronous>, transform_indices = @transform_10, window_bounds = array<i64: 1, 128>}, {pipeline_mode = #tpu.pipeline_mode<synchronous>, transform_indices = @transform_11, window_bounds = array<i64: 128, 1024>}, {pipeline_mode = #tpu.pipeline_mode<synchronous>, transform_indices = @transform_12, window_bounds = array<i64: 1, 1024>}, {pipeline_mode = #tpu.pipeline_mode<synchronous>, transform_indices = @transform_13, window_bounds = array<i64: 1024, 512>}, {pipeline_mode = #tpu.pipeline_mode<synchronous>, transform_indices = @transform_14, window_bounds = array<i64: 1, 512>}, {pipeline_mode = #tpu.pipeline_mode<synchronous>, transform_indices = @transform_15, window_bounds = array<i64: 512, 128>}, {pipeline_mode = #tpu.pipeline_mode<synchronous>, transform_indices = @transform_16, window_bounds = array<i64: 1, 128>}, {transform_indices = @transform_17, window_bounds = array<i64: 1, 1, 128>}]} {
    %c0 = arith.constant 0 : index
    %c0_0 = arith.constant 0 : index
    %c0_1 = arith.constant 0 : index
    %c0_2 = arith.constant 0 : index
    %0 = vector.load %arg1[%c0, %c0_0, %c0_1, %c0_2] : memref<1x1x8x2xf32, #tpu.memory_space<vmem>>, vector<1x1x8x2xf32>
    %1 = vector.shape_cast %0 : vector<1x1x8x2xf32> to vector<1x8x2xf32>
    %c0_3 = arith.constant 0 : index
    %c0_4 = arith.constant 0 : index
    %2 = vector.load %arg2[%c0_3, %c0_4] : memref<2x256xf32, #tpu.memory_space<vmem>>, vector<2x256xf32>
    %c0_5 = arith.constant 0 : index
    %c0_6 = arith.constant 0 : index
    %3 = vector.load %arg3[%c0_5, %c0_6] : memref<2x256xf32, #tpu.memory_space<vmem>>, vector<2x256xf32>
    %c0_7 = arith.constant 0 : index
    %c0_8 = arith.constant 0 : index
    %4 = vector.load %arg4[%c0_7, %c0_8] : memref<1x256xf32, #tpu.memory_space<vmem>>, vector<1x256xf32>
    %c0_9 = arith.constant 0 : index
    %c0_10 = arith.constant 0 : index
    %5 = vector.load %arg5[%c0_9, %c0_10] : memref<256x256xbf16, #tpu.memory_space<vmem>>, vector<256x256xbf16>
    %c0_11 = arith.constant 0 : index
    %c0_12 = arith.constant 0 : index
    %6 = vector.load %arg6[%c0_11, %c0_12] : memref<1x256xf32, #tpu.memory_space<vmem>>, vector<1x256xf32>
    %c0_13 = arith.constant 0 : index
    %c0_14 = arith.constant 0 : index
    %7 = vector.load %arg7[%c0_13, %c0_14] : memref<256x64xbf16, #tpu.memory_space<vmem>>, vector<256x64xbf16>
    %c0_15 = arith.constant 0 : index
    %c0_16 = arith.constant 0 : index
    %8 = vector.load %arg8[%c0_15, %c0_16] : memref<1x64xf32, #tpu.memory_space<vmem>>, vector<1x64xf32>
    %9 = vector.shape_cast %1 : vector<1x8x2xf32> to vector<1x8x1x2xf32>
    %10 = vector.shape_cast %1 : vector<1x8x2xf32> to vector<1x1x8x2xf32>
    %11 = vector.broadcast %9 : vector<1x8x1x2xf32> to vector<1x8x8x2xf32>
    %12 = vector.broadcast %10 : vector<1x1x8x2xf32> to vector<1x8x8x2xf32>
    %13 = arith.subf %11, %12 : vector<1x8x8x2xf32>
    %14 = arith.mulf %13, %13 : vector<1x8x8x2xf32>
    %cst = arith.constant dense<0.000000e+00> : vector<1x8x8xf32>
    %15 = vector.multi_reduction <add>, %14, %cst [3] : vector<1x8x8x2xf32> to vector<1x8x8xf32>
    %16 = tpu.iota {dimensions = array<i32: 1>} : vector<1x8x8xi32>
    %17 = tpu.iota {dimensions = array<i32: 2>} : vector<1x8x8xi32>
    %18 = arith.cmpi eq, %16, %17 : vector<1x8x8xi32>
    %cst_17 = arith.constant 1.000000e+30 : f32
    %19 = vector.broadcast %cst_17 : f32 to vector<1x8x8xf32>
    %20 = arith.select %18, %19, %15 : vector<1x8x8xi1>, vector<1x8x8xf32>
    %21 = arith.sitofp %17 : vector<1x8x8xi32> to vector<1x8x8xf32>
    %cst_18 = arith.constant dense<0x7F800000> : vector<1x8xf32>
    %22 = vector.multi_reduction <minimumf>, %20, %cst_18 [2] : vector<1x8x8xf32> to vector<1x8xf32>
    %23 = vector.shape_cast %22 : vector<1x8xf32> to vector<1x8x1xf32>
    %24 = vector.broadcast %23 : vector<1x8x1xf32> to vector<1x8x8xf32>
    %25 = arith.cmpf oeq, %20, %24 : vector<1x8x8xf32>
    %cst_19 = arith.constant 8.000000e+00 : f32
    %26 = vector.broadcast %cst_19 : f32 to vector<1x8x8xf32>
    %27 = arith.select %25, %21, %26 : vector<1x8x8xi1>, vector<1x8x8xf32>
    %cst_20 = arith.constant dense<0x7F800000> : vector<1x8xf32>
    %28 = vector.multi_reduction <minimumf>, %27, %cst_20 [2] : vector<1x8x8xf32> to vector<1x8xf32>
    %29 = vector.shape_cast %28 : vector<1x8xf32> to vector<1x8x1xf32>
    %30 = vector.broadcast %29 : vector<1x8x1xf32> to vector<1x8x8xf32>
    %31 = arith.cmpf oeq, %21, %30 : vector<1x8x8xf32>
    %32 = arith.extui %31 : vector<1x8x8xi1> to vector<1x8x8xi32>
    %33 = arith.sitofp %32 : vector<1x8x8xi32> to vector<1x8x8xf32>
    %cst_21 = arith.constant 0.000000e+00 : f32
    %34 = vector.broadcast %cst_21 : f32 to vector<1x8x8xf32>
    %35 = arith.cmpf ogt, %33, %34 : vector<1x8x8xf32>
    %cst_22 = arith.constant 1.000000e+30 : f32
    %36 = vector.broadcast %cst_22 : f32 to vector<1x8x8xf32>
    %37 = arith.select %35, %36, %20 : vector<1x8x8xi1>, vector<1x8x8xf32>
    %cst_23 = arith.constant dense<0x7F800000> : vector<1x8xf32>
    %38 = vector.multi_reduction <minimumf>, %37, %cst_23 [2] : vector<1x8x8xf32> to vector<1x8xf32>
    %39 = vector.shape_cast %38 : vector<1x8xf32> to vector<1x8x1xf32>
    %40 = vector.broadcast %39 : vector<1x8x1xf32> to vector<1x8x8xf32>
    %41 = arith.cmpf oeq, %37, %40 : vector<1x8x8xf32>
    %cst_24 = arith.constant 8.000000e+00 : f32
    %42 = vector.broadcast %cst_24 : f32 to vector<1x8x8xf32>
    %43 = arith.select %41, %21, %42 : vector<1x8x8xi1>, vector<1x8x8xf32>
    %cst_25 = arith.constant dense<0x7F800000> : vector<1x8xf32>
    %44 = vector.multi_reduction <minimumf>, %43, %cst_25 [2] : vector<1x8x8xf32> to vector<1x8xf32>
    %45 = vector.shape_cast %44 : vector<1x8xf32> to vector<1x8x1xf32>
    %46 = vector.broadcast %45 : vector<1x8x1xf32> to vector<1x8x8xf32>
    %47 = arith.cmpf oeq, %21, %46 : vector<1x8x8xf32>
    %48 = arith.extui %47 : vector<1x8x8xi1> to vector<1x8x8xi32>
    %49 = arith.sitofp %48 : vector<1x8x8xi32> to vector<1x8x8xf32>
    %cst_26 = arith.constant 0.000000e+00 : f32
    %50 = vector.broadcast %cst_26 : f32 to vector<1x8x8xf32>
    %51 = arith.cmpf ogt, %49, %50 : vector<1x8x8xf32>
    %cst_27 = arith.constant 1.000000e+30 : f32
    %52 = vector.broadcast %cst_27 : f32 to vector<1x8x8xf32>
    %53 = arith.select %51, %52, %37 : vector<1x8x8xi1>, vector<1x8x8xf32>
    %cst_28 = arith.constant dense<0x7F800000> : vector<1x8xf32>
    %54 = vector.multi_reduction <minimumf>, %53, %cst_28 [2] : vector<1x8x8xf32> to vector<1x8xf32>
    %55 = vector.shape_cast %54 : vector<1x8xf32> to vector<1x8x1xf32>
    %56 = vector.broadcast %55 : vector<1x8x1xf32> to vector<1x8x8xf32>
    %57 = arith.cmpf oeq, %53, %56 : vector<1x8x8xf32>
    %cst_29 = arith.constant 8.000000e+00 : f32
    %58 = vector.broadcast %cst_29 : f32 to vector<1x8x8xf32>
    %59 = arith.select %57, %21, %58 : vector<1x8x8xi1>, vector<1x8x8xf32>
    %cst_30 = arith.constant dense<0x7F800000> : vector<1x8xf32>
    %60 = vector.multi_reduction <minimumf>, %59, %cst_30 [2] : vector<1x8x8xf32> to vector<1x8xf32>
    %61 = vector.shape_cast %60 : vector<1x8xf32> to vector<1x8x1xf32>
    %62 = vector.broadcast %61 : vector<1x8x1xf32> to vector<1x8x8xf32>
    %63 = arith.cmpf oeq, %21, %62 : vector<1x8x8xf32>
    %64 = arith.extui %63 : vector<1x8x8xi1> to vector<1x8x8xi32>
    %65 = arith.sitofp %64 : vector<1x8x8xi32> to vector<1x8x8xf32>
    %66 = tpu.concatenate %33, %49, %65 in 1 : vector<1x8x8xf32>, vector<1x8x8xf32>, vector<1x8x8xf32> -> vector<1x24x8xf32>
    %cst_31 = arith.constant dense<0.000000e+00> : vector<1x24x2xf32>
    %67 = tpu.matmul %66, %1, %cst_31 {dimension_numbers = #tpu.dot_dimension_numbers<[2], [1], [1], [2], [0, 0, 0, 1, 1, 2], [0], [0]>} : vector<1x24x8xf32>, vector<1x8x2xf32>, vector<1x24x2xf32> -> vector<1x24x2xf32>
    %68 = vector.shape_cast %67 : vector<1x24x2xf32> to vector<1x3x8x2xf32>
    %69 = vector.shape_cast %1 : vector<1x8x2xf32> to vector<1x1x8x2xf32>
    %70 = vector.broadcast %69 : vector<1x1x8x2xf32> to vector<1x3x8x2xf32>
    %71 = arith.subf %68, %70 : vector<1x3x8x2xf32>
    %72 = vector.extract_strided_slice %1 {offsets = [0, 0, 0], sizes = [1, 8, 1], strides = [1, 1, 1]} : vector<1x8x2xf32> to vector<1x8x1xf32>
    %73 = vector.extract_strided_slice %2 {offsets = [0, 0], sizes = [1, 256], strides = [1, 1]} : vector<2x256xf32> to vector<1x256xf32>
    %74 = vector.shape_cast %73 : vector<1x256xf32> to vector<1x1x256xf32>
    %75 = vector.broadcast %72 : vector<1x8x1xf32> to vector<1x8x256xf32>
    %76 = vector.broadcast %74 : vector<1x1x256xf32> to vector<1x8x256xf32>
    %77 = arith.mulf %75, %76 : vector<1x8x256xf32>
    %78 = vector.extract_strided_slice %1 {offsets = [0, 0, 1], sizes = [1, 8, 1], strides = [1, 1, 1]} : vector<1x8x2xf32> to vector<1x8x1xf32>
    %79 = vector.extract_strided_slice %2 {offsets = [1, 0], sizes = [1, 256], strides = [1, 1]} : vector<2x256xf32> to vector<1x256xf32>
    %80 = vector.shape_cast %79 : vector<1x256xf32> to vector<1x1x256xf32>
    %81 = vector.broadcast %78 : vector<1x8x1xf32> to vector<1x8x256xf32>
    %82 = vector.broadcast %80 : vector<1x1x256xf32> to vector<1x8x256xf32>
    %83 = arith.mulf %81, %82 : vector<1x8x256xf32>
    %84 = arith.addf %77, %83 : vector<1x8x256xf32>
    %85 = vector.extract_strided_slice %71 {offsets = [0, 0, 0, 0], sizes = [1, 3, 8, 1], strides = [1, 1, 1, 1]} : vector<1x3x8x2xf32> to vector<1x3x8x1xf32>
    %86 = vector.extract_strided_slice %3 {offsets = [0, 0], sizes = [1, 256], strides = [1, 1]} : vector<2x256xf32> to vector<1x256xf32>
    %87 = vector.shape_cast %86 : vector<1x256xf32> to vector<1x1x1x256xf32>
    %88 = vector.broadcast %85 : vector<1x3x8x1xf32> to vector<1x3x8x256xf32>
    %89 = vector.broadcast %87 : vector<1x1x1x256xf32> to vector<1x3x8x256xf32>
    %90 = arith.mulf %88, %89 : vector<1x3x8x256xf32>
    %91 = vector.extract_strided_slice %71 {offsets = [0, 0, 0, 1], sizes = [1, 3, 8, 1], strides = [1, 1, 1, 1]} : vector<1x3x8x2xf32> to vector<1x3x8x1xf32>
    %92 = vector.extract_strided_slice %3 {offsets = [1, 0], sizes = [1, 256], strides = [1, 1]} : vector<2x256xf32> to vector<1x256xf32>
    %93 = vector.shape_cast %92 : vector<1x256xf32> to vector<1x1x1x256xf32>
    %94 = vector.broadcast %91 : vector<1x3x8x1xf32> to vector<1x3x8x256xf32>
    %95 = vector.broadcast %93 : vector<1x1x1x256xf32> to vector<1x3x8x256xf32>
    %96 = arith.mulf %94, %95 : vector<1x3x8x256xf32>
    %97 = arith.addf %90, %96 : vector<1x3x8x256xf32>
    %98 = vector.shape_cast %84 : vector<1x8x256xf32> to vector<1x1x8x256xf32>
    %99 = vector.broadcast %98 : vector<1x1x8x256xf32> to vector<1x3x8x256xf32>
    %100 = arith.addf %97, %99 : vector<1x3x8x256xf32>
    %101 = vector.shape_cast %4 : vector<1x256xf32> to vector<1x1x1x256xf32>
    %102 = vector.broadcast %101 : vector<1x1x1x256xf32> to vector<1x3x8x256xf32>
    %103 = arith.addf %100, %102 : vector<1x3x8x256xf32>
    %cst_32 = arith.constant 0.000000e+00 : f32
    %104 = vector.broadcast %cst_32 : f32 to vector<1x3x8x256xf32>
    %105 = arith.maximumf %103, %104 : vector<1x3x8x256xf32>
    %106 = vector.shape_cast %105 : vector<1x3x8x256xf32> to vector<24x256xf32>
    %107 = arith.truncf %106 : vector<24x256xf32> to vector<24x256xbf16>
    %cst_33 = arith.constant dense<0.000000e+00> : vector<24x256xf32>
    %108 = tpu.matmul %107, %5, %cst_33 {dimension_numbers = #tpu.dot_dimension_numbers<[1], [0], [0], [1], [0, 0, 1, 1], [], []>} : vector<24x256xbf16>, vector<256x256xbf16>, vector<24x256xf32> -> vector<24x256xf32>
    %109 = vector.broadcast %6 : vector<1x256xf32> to vector<24x256xf32>
    %110 = arith.addf %108, %109 : vector<24x256xf32>
    %cst_34 = arith.constant 0.000000e+00 : f32
    %111 = vector.broadcast %cst_34 : f32 to vector<24x256xf32>
    %112 = arith.maximumf %110, %111 : vector<24x256xf32>
    %113 = arith.truncf %112 : vector<24x256xf32> to vector<24x256xbf16>
    %cst_35 = arith.constant dense<0.000000e+00> : vector<24x64xf32>
    %114 = tpu.matmul %113, %7, %cst_35 {dimension_numbers = #tpu.dot_dimension_numbers<[1], [0], [0], [1], [0, 0, 1, 1], [], []>} : vector<24x256xbf16>, vector<256x64xbf16>, vector<24x64xf32> -> vector<24x64xf32>
    %115 = vector.broadcast %8 : vector<1x64xf32> to vector<24x64xf32>
    %116 = arith.addf %114, %115 : vector<24x64xf32>
    %cst_36 = arith.constant 0.000000e+00 : f32
    %117 = vector.broadcast %cst_36 : f32 to vector<24x64xf32>
    %118 = arith.maximumf %116, %117 : vector<24x64xf32>
    %119 = vector.shape_cast %118 : vector<24x64xf32> to vector<1x3x8x64xf32>
    %cst_37 = arith.constant dense<0xFF800000> : vector<1x8x64xf32>
    %120 = vector.multi_reduction <maximumf>, %119, %cst_37 [1] : vector<1x3x8x64xf32> to vector<1x8x64xf32>
    %121 = vector.shape_cast %120 : vector<1x8x64xf32> to vector<8x64xf32>
    %122 = vector.shape_cast %121 : vector<8x64xf32> to vector<1x8x64xf32>
    %c0_38 = arith.constant 0 : index
    %c0_39 = arith.constant 0 : index
    %123 = vector.load %arg9[%c0_38, %c0_39] : memref<64x128xbf16, #tpu.memory_space<vmem>>, vector<64x128xbf16>
    %c0_40 = arith.constant 0 : index
    %c0_41 = arith.constant 0 : index
    %124 = vector.load %arg10[%c0_40, %c0_41] : memref<64x128xbf16, #tpu.memory_space<vmem>>, vector<64x128xbf16>
    %c0_42 = arith.constant 0 : index
    %c0_43 = arith.constant 0 : index
    %125 = vector.load %arg11[%c0_42, %c0_43] : memref<1x128xf32, #tpu.memory_space<vmem>>, vector<1x128xf32>
    %126 = arith.mulf %122, %122 : vector<1x8x64xf32>
    %cst_44 = arith.constant dense<0.000000e+00> : vector<1x8xf32>
    %127 = vector.multi_reduction <add>, %126, %cst_44 [2] : vector<1x8x64xf32> to vector<1x8xf32>
    %128 = vector.shape_cast %127 : vector<1x8xf32> to vector<1x8x1xf32>
    %cst_45 = arith.constant dense<0.000000e+00> : vector<1x8xf32>
    %129 = vector.multi_reduction <add>, %126, %cst_45 [2] : vector<1x8x64xf32> to vector<1x8xf32>
    %130 = vector.shape_cast %129 : vector<1x8xf32> to vector<1x1x8xf32>
    %cst_46 = arith.constant dense<0.000000e+00> : vector<1x8x8xf32>
    %131 = tpu.matmul %122, %122, %cst_46 {dimension_numbers = #tpu.dot_dimension_numbers<[2], [2], [1], [1], [0, 0, 0, 1, 1, 1], [0], [0]>} : vector<1x8x64xf32>, vector<1x8x64xf32>, vector<1x8x8xf32> -> vector<1x8x8xf32>
    %132 = vector.broadcast %128 : vector<1x8x1xf32> to vector<1x8x8xf32>
    %133 = vector.broadcast %130 : vector<1x1x8xf32> to vector<1x8x8xf32>
    %134 = arith.addf %132, %133 : vector<1x8x8xf32>
    %cst_47 = arith.constant 2.000000e+00 : f32
    %135 = vector.broadcast %cst_47 : f32 to vector<1x8x8xf32>
    %136 = arith.mulf %135, %131 : vector<1x8x8xf32>
    %137 = arith.subf %134, %136 : vector<1x8x8xf32>
    %138 = tpu.iota {dimensions = array<i32: 1>} : vector<1x8x8xi32>
    %139 = tpu.iota {dimensions = array<i32: 2>} : vector<1x8x8xi32>
    %140 = arith.cmpi eq, %138, %139 : vector<1x8x8xi32>
    %cst_48 = arith.constant 1.000000e+30 : f32
    %141 = vector.broadcast %cst_48 : f32 to vector<1x8x8xf32>
    %142 = arith.select %140, %141, %137 : vector<1x8x8xi1>, vector<1x8x8xf32>
    %143 = arith.sitofp %139 : vector<1x8x8xi32> to vector<1x8x8xf32>
    %cst_49 = arith.constant dense<0x7F800000> : vector<1x8xf32>
    %144 = vector.multi_reduction <minimumf>, %142, %cst_49 [2] : vector<1x8x8xf32> to vector<1x8xf32>
    %145 = vector.shape_cast %144 : vector<1x8xf32> to vector<1x8x1xf32>
    %146 = vector.broadcast %145 : vector<1x8x1xf32> to vector<1x8x8xf32>
    %147 = arith.cmpf oeq, %142, %146 : vector<1x8x8xf32>
    %cst_50 = arith.constant 8.000000e+00 : f32
    %148 = vector.broadcast %cst_50 : f32 to vector<1x8x8xf32>
    %149 = arith.select %147, %143, %148 : vector<1x8x8xi1>, vector<1x8x8xf32>
    %cst_51 = arith.constant dense<0x7F800000> : vector<1x8xf32>
    %150 = vector.multi_reduction <minimumf>, %149, %cst_51 [2] : vector<1x8x8xf32> to vector<1x8xf32>
    %151 = vector.shape_cast %150 : vector<1x8xf32> to vector<1x8x1xf32>
    %152 = vector.broadcast %151 : vector<1x8x1xf32> to vector<1x8x8xf32>
    %153 = arith.cmpf oeq, %143, %152 : vector<1x8x8xf32>
    %154 = arith.extui %153 : vector<1x8x8xi1> to vector<1x8x8xi32>
    %155 = arith.sitofp %154 : vector<1x8x8xi32> to vector<1x8x8xf32>
    %cst_52 = arith.constant 0.000000e+00 : f32
    %156 = vector.broadcast %cst_52 : f32 to vector<1x8x8xf32>
    %157 = arith.cmpf ogt, %155, %156 : vector<1x8x8xf32>
    %cst_53 = arith.constant 1.000000e+30 : f32
    %158 = vector.broadcast %cst_53 : f32 to vector<1x8x8xf32>
    %159 = arith.select %157, %158, %142 : vector<1x8x8xi1>, vector<1x8x8xf32>
    %cst_54 = arith.constant dense<0x7F800000> : vector<1x8xf32>
    %160 = vector.multi_reduction <minimumf>, %159, %cst_54 [2] : vector<1x8x8xf32> to vector<1x8xf32>
    %161 = vector.shape_cast %160 : vector<1x8xf32> to vector<1x8x1xf32>
    %162 = vector.broadcast %161 : vector<1x8x1xf32> to vector<1x8x8xf32>
    %163 = arith.cmpf oeq, %159, %162 : vector<1x8x8xf32>
    %cst_55 = arith.constant 8.000000e+00 : f32
    %164 = vector.broadcast %cst_55 : f32 to vector<1x8x8xf32>
    %165 = arith.select %163, %143, %164 : vector<1x8x8xi1>, vector<1x8x8xf32>
    %cst_56 = arith.constant dense<0x7F800000> : vector<1x8xf32>
    %166 = vector.multi_reduction <minimumf>, %165, %cst_56 [2] : vector<1x8x8xf32> to vector<1x8xf32>
    %167 = vector.shape_cast %166 : vector<1x8xf32> to vector<1x8x1xf32>
    %168 = vector.broadcast %167 : vector<1x8x1xf32> to vector<1x8x8xf32>
    %169 = arith.cmpf oeq, %143, %168 : vector<1x8x8xf32>
    %170 = arith.extui %169 : vector<1x8x8xi1> to vector<1x8x8xi32>
    %171 = arith.sitofp %170 : vector<1x8x8xi32> to vector<1x8x8xf32>
    %cst_57 = arith.constant 0.000000e+00 : f32
    %172 = vector.broadcast %cst_57 : f32 to vector<1x8x8xf32>
    %173 = arith.cmpf ogt, %171, %172 : vector<1x8x8xf32>
    %cst_58 = arith.constant 1.000000e+30 : f32
    %174 = vector.broadcast %cst_58 : f32 to vector<1x8x8xf32>
    %175 = arith.select %173, %174, %159 : vector<1x8x8xi1>, vector<1x8x8xf32>
    %cst_59 = arith.constant dense<0x7F800000> : vector<1x8xf32>
    %176 = vector.multi_reduction <minimumf>, %175, %cst_59 [2] : vector<1x8x8xf32> to vector<1x8xf32>
    %177 = vector.shape_cast %176 : vector<1x8xf32> to vector<1x8x1xf32>
    %178 = vector.broadcast %177 : vector<1x8x1xf32> to vector<1x8x8xf32>
    %179 = arith.cmpf oeq, %175, %178 : vector<1x8x8xf32>
    %cst_60 = arith.constant 8.000000e+00 : f32
    %180 = vector.broadcast %cst_60 : f32 to vector<1x8x8xf32>
    %181 = arith.select %179, %143, %180 : vector<1x8x8xi1>, vector<1x8x8xf32>
    %cst_61 = arith.constant dense<0x7F800000> : vector<1x8xf32>
    %182 = vector.multi_reduction <minimumf>, %181, %cst_61 [2] : vector<1x8x8xf32> to vector<1x8xf32>
    %183 = vector.shape_cast %182 : vector<1x8xf32> to vector<1x8x1xf32>
    %184 = vector.broadcast %183 : vector<1x8x1xf32> to vector<1x8x8xf32>
    %185 = arith.cmpf oeq, %143, %184 : vector<1x8x8xf32>
    %186 = arith.extui %185 : vector<1x8x8xi1> to vector<1x8x8xi32>
    %187 = arith.sitofp %186 : vector<1x8x8xi32> to vector<1x8x8xf32>
    %188 = tpu.concatenate %155, %171, %187 in 1 : vector<1x8x8xf32>, vector<1x8x8xf32>, vector<1x8x8xf32> -> vector<1x24x8xf32>
    %cst_62 = arith.constant dense<0.000000e+00> : vector<1x24x64xf32>
    %189 = tpu.matmul %188, %122, %cst_62 {dimension_numbers = #tpu.dot_dimension_numbers<[2], [1], [1], [2], [0, 0, 0, 1, 1, 2], [0], [0]>} : vector<1x24x8xf32>, vector<1x8x64xf32>, vector<1x24x64xf32> -> vector<1x24x64xf32>
    %190 = vector.shape_cast %189 : vector<1x24x64xf32> to vector<1x3x8x64xf32>
    %191 = vector.shape_cast %122 : vector<1x8x64xf32> to vector<1x1x8x64xf32>
    %192 = vector.broadcast %191 : vector<1x1x8x64xf32> to vector<1x3x8x64xf32>
    %193 = arith.subf %190, %192 : vector<1x3x8x64xf32>
    %194 = vector.shape_cast %122 : vector<1x8x64xf32> to vector<8x64xf32>
    %195 = arith.truncf %194 : vector<8x64xf32> to vector<8x64xbf16>
    %cst_63 = arith.constant dense<0.000000e+00> : vector<8x128xf32>
    %196 = tpu.matmul %195, %123, %cst_63 {dimension_numbers = #tpu.dot_dimension_numbers<[1], [0], [0], [1], [0, 0, 1, 1], [], []>} : vector<8x64xbf16>, vector<64x128xbf16>, vector<8x128xf32> -> vector<8x128xf32>
    %197 = vector.shape_cast %193 : vector<1x3x8x64xf32> to vector<24x64xf32>
    %198 = arith.truncf %197 : vector<24x64xf32> to vector<24x64xbf16>
    %cst_64 = arith.constant dense<0.000000e+00> : vector<24x128xf32>
    %199 = tpu.matmul %198, %124, %cst_64 {dimension_numbers = #tpu.dot_dimension_numbers<[1], [0], [0], [1], [0, 0, 1, 1], [], []>} : vector<24x64xbf16>, vector<64x128xbf16>, vector<24x128xf32> -> vector<24x128xf32>
    %200 = vector.shape_cast %199 : vector<24x128xf32> to vector<1x3x8x128xf32>
    %201 = vector.shape_cast %196 : vector<8x128xf32> to vector<1x1x8x128xf32>
    %202 = vector.broadcast %201 : vector<1x1x8x128xf32> to vector<1x3x8x128xf32>
    %203 = arith.addf %200, %202 : vector<1x3x8x128xf32>
    %204 = vector.shape_cast %125 : vector<1x128xf32> to vector<1x1x1x128xf32>
    %205 = vector.broadcast %204 : vector<1x1x1x128xf32> to vector<1x3x8x128xf32>
    %206 = arith.addf %203, %205 : vector<1x3x8x128xf32>
    %cst_65 = arith.constant 0.000000e+00 : f32
    %207 = vector.broadcast %cst_65 : f32 to vector<1x3x8x128xf32>
    %208 = arith.maximumf %206, %207 : vector<1x3x8x128xf32>
    %209 = vector.shape_cast %208 : vector<1x3x8x128xf32> to vector<24x128xf32>
    %210 = vector.shape_cast %209 : vector<24x128xf32> to vector<1x3x8x128xf32>
    %cst_66 = arith.constant dense<0xFF800000> : vector<1x8x128xf32>
    %211 = vector.multi_reduction <maximumf>, %210, %cst_66 [1] : vector<1x3x8x128xf32> to vector<1x8x128xf32>
    %212 = vector.shape_cast %211 : vector<1x8x128xf32> to vector<8x128xf32>
    %c0_67 = arith.constant 0 : index
    %c0_68 = arith.constant 0 : index
    %213 = vector.load %arg12[%c0_67, %c0_68] : memref<128x1024xbf16, #tpu.memory_space<vmem>>, vector<128x1024xbf16>
    %214 = arith.truncf %212 : vector<8x128xf32> to vector<8x128xbf16>
    %cst_69 = arith.constant dense<0.000000e+00> : vector<8x1024xf32>
    %215 = tpu.matmul %214, %213, %cst_69 {dimension_numbers = #tpu.dot_dimension_numbers<[1], [0], [0], [1], [0, 0, 1, 1], [], []>} : vector<8x128xbf16>, vector<128x1024xbf16>, vector<8x1024xf32> -> vector<8x1024xf32>
    %c0_70 = arith.constant 0 : index
    %c0_71 = arith.constant 0 : index
    %216 = vector.load %arg13[%c0_70, %c0_71] : memref<1x1024xf32, #tpu.memory_space<vmem>>, vector<1x1024xf32>
    %217 = vector.broadcast %216 : vector<1x1024xf32> to vector<8x1024xf32>
    %218 = arith.addf %215, %217 : vector<8x1024xf32>
    %cst_72 = arith.constant 0.000000e+00 : f32
    %219 = vector.broadcast %cst_72 : f32 to vector<8x1024xf32>
    %220 = arith.maximumf %218, %219 : vector<8x1024xf32>
    %221 = vector.shape_cast %220 : vector<8x1024xf32> to vector<1x8x1024xf32>
    %cst_73 = arith.constant dense<0.000000e+00> : vector<1x1024xf32>
    %222 = vector.multi_reduction <add>, %221, %cst_73 [1] : vector<1x8x1024xf32> to vector<1x1024xf32>
    %cst_74 = arith.constant 1.250000e-01 : f32
    %223 = vector.broadcast %cst_74 : f32 to vector<1x1024xf32>
    %224 = arith.mulf %222, %223 : vector<1x1024xf32>
    %c0_75 = arith.constant 0 : index
    %c0_76 = arith.constant 0 : index
    %225 = vector.load %arg14[%c0_75, %c0_76] : memref<1024x512xbf16, #tpu.memory_space<vmem>>, vector<1024x512xbf16>
    %226 = arith.truncf %224 : vector<1x1024xf32> to vector<1x1024xbf16>
    %cst_77 = arith.constant dense<0.000000e+00> : vector<1x512xf32>
    %227 = tpu.matmul %226, %225, %cst_77 {dimension_numbers = #tpu.dot_dimension_numbers<[1], [0], [0], [1], [0, 0, 1, 1], [], []>} : vector<1x1024xbf16>, vector<1024x512xbf16>, vector<1x512xf32> -> vector<1x512xf32>
    %c0_78 = arith.constant 0 : index
    %c0_79 = arith.constant 0 : index
    %228 = vector.load %arg15[%c0_78, %c0_79] : memref<1x512xf32, #tpu.memory_space<vmem>>, vector<1x512xf32>
    %229 = arith.addf %227, %228 : vector<1x512xf32>
    %cst_80 = arith.constant 0.000000e+00 : f32
    %230 = vector.broadcast %cst_80 : f32 to vector<1x512xf32>
    %231 = arith.maximumf %229, %230 : vector<1x512xf32>
    %c0_81 = arith.constant 0 : index
    %c0_82 = arith.constant 0 : index
    %232 = vector.load %arg16[%c0_81, %c0_82] : memref<512x128xbf16, #tpu.memory_space<vmem>>, vector<512x128xbf16>
    %233 = arith.truncf %231 : vector<1x512xf32> to vector<1x512xbf16>
    %cst_83 = arith.constant dense<0.000000e+00> : vector<1x128xf32>
    %234 = tpu.matmul %233, %232, %cst_83 {dimension_numbers = #tpu.dot_dimension_numbers<[1], [0], [0], [1], [0, 0, 1, 1], [], []>} : vector<1x512xbf16>, vector<512x128xbf16>, vector<1x128xf32> -> vector<1x128xf32>
    %c0_84 = arith.constant 0 : index
    %c0_85 = arith.constant 0 : index
    %235 = vector.load %arg17[%c0_84, %c0_85] : memref<1x128xf32, #tpu.memory_space<vmem>>, vector<1x128xf32>
    %236 = arith.addf %234, %235 : vector<1x128xf32>
    %c0_86 = arith.constant 0 : index
    %c0_87 = arith.constant 0 : index
    %c0_88 = arith.constant 0 : index
    %237 = vector.load %arg18[%c0_86, %c0_87, %c0_88] : memref<1x1x128xf32, #tpu.memory_space<vmem>>, vector<1x1x128xf32>
    %238 = vector.shape_cast %237 : vector<1x1x128xf32> to vector<1x128xf32>
    %239 = vector.shape_cast %236 : vector<1x128xf32> to vector<1x1x128xf32>
    tpu.vector_store %arg18[%c0_86, %c0_87, %c0_88], %239 {strides = array<i32>} : memref<1x1x128xf32, #tpu.memory_space<vmem>>, vector<1x1x128xf32>,
    return
  }
  func.func @transform_0(%arg0: i32) -> (i32, i32, i32, i32) {
    %c0_i32 = arith.constant 0 : i32
    %c0_i32_0 = arith.constant 0 : i32
    %c0_i32_1 = arith.constant 0 : i32
    %c0_i32_2 = arith.constant 0 : i32
    return %arg0, %c0_i32, %c0_i32_0, %c0_i32_1 : i32, i32, i32, i32
  }
  func.func @transform_1(%arg0: i32) -> (i32, i32) {
    %c0_i32 = arith.constant 0 : i32
    %c0_i32_0 = arith.constant 0 : i32
    %c0_i32_1 = arith.constant 0 : i32
    return %c0_i32, %c0_i32_0 : i32, i32
  }
  func.func @transform_2(%arg0: i32) -> (i32, i32) {
    %c0_i32 = arith.constant 0 : i32
    %c0_i32_0 = arith.constant 0 : i32
    %c0_i32_1 = arith.constant 0 : i32
    return %c0_i32, %c0_i32_0 : i32, i32
  }
  func.func @transform_3(%arg0: i32) -> (i32, i32) {
    %c0_i32 = arith.constant 0 : i32
    %c0_i32_0 = arith.constant 0 : i32
    %c0_i32_1 = arith.constant 0 : i32
    return %c0_i32, %c0_i32_0 : i32, i32
  }
  func.func @transform_4(%arg0: i32) -> (i32, i32) {
    %c0_i32 = arith.constant 0 : i32
    %c0_i32_0 = arith.constant 0 : i32
    %c0_i32_1 = arith.constant 0 : i32
    return %c0_i32, %c0_i32_0 : i32, i32
  }
  func.func @transform_5(%arg0: i32) -> (i32, i32) {
    %c0_i32 = arith.constant 0 : i32
    %c0_i32_0 = arith.constant 0 : i32
    %c0_i32_1 = arith.constant 0 : i32
    return %c0_i32, %c0_i32_0 : i32, i32
  }
  func.func @transform_6(%arg0: i32) -> (i32, i32) {
    %c0_i32 = arith.constant 0 : i32
    %c0_i32_0 = arith.constant 0 : i32
    %c0_i32_1 = arith.constant 0 : i32
    return %c0_i32, %c0_i32_0 : i32, i32
  }
  func.func @transform_7(%arg0: i32) -> (i32, i32) {
    %c0_i32 = arith.constant 0 : i32
    %c0_i32_0 = arith.constant 0 : i32
    %c0_i32_1 = arith.constant 0 : i32
    return %c0_i32, %c0_i32_0 : i32, i32
  }
  func.func @transform_8(%arg0: i32) -> (i32, i32) {
    %c0_i32 = arith.constant 0 : i32
    %c0_i32_0 = arith.constant 0 : i32
    %c0_i32_1 = arith.constant 0 : i32
    return %c0_i32, %c0_i32_0 : i32, i32
  }
  func.func @transform_9(%arg0: i32) -> (i32, i32) {
    %c0_i32 = arith.constant 0 : i32
    %c0_i32_0 = arith.constant 0 : i32
    %c0_i32_1 = arith.constant 0 : i32
    return %c0_i32, %c0_i32_0 : i32, i32
  }
  func.func @transform_10(%arg0: i32) -> (i32, i32) {
    %c0_i32 = arith.constant 0 : i32
    %c0_i32_0 = arith.constant 0 : i32
    %c0_i32_1 = arith.constant 0 : i32
    return %c0_i32, %c0_i32_0 : i32, i32
  }
  func.func @transform_11(%arg0: i32) -> (i32, i32) {
    %c0_i32 = arith.constant 0 : i32
    %c0_i32_0 = arith.constant 0 : i32
    %c0_i32_1 = arith.constant 0 : i32
    return %c0_i32, %c0_i32_0 : i32, i32
  }
  func.func @transform_12(%arg0: i32) -> (i32, i32) {
    %c0_i32 = arith.constant 0 : i32
    %c0_i32_0 = arith.constant 0 : i32
    %c0_i32_1 = arith.constant 0 : i32
    return %c0_i32, %c0_i32_0 : i32, i32
  }
  func.func @transform_13(%arg0: i32) -> (i32, i32) {
    %c0_i32 = arith.constant 0 : i32
    %c0_i32_0 = arith.constant 0 : i32
    %c0_i32_1 = arith.constant 0 : i32
    return %c0_i32, %c0_i32_0 : i32, i32
  }
  func.func @transform_14(%arg0: i32) -> (i32, i32) {
    %c0_i32 = arith.constant 0 : i32
    %c0_i32_0 = arith.constant 0 : i32
    %c0_i32_1 = arith.constant 0 : i32
    return %c0_i32, %c0_i32_0 : i32, i32
  }
  func.func @transform_15(%arg0: i32) -> (i32, i32) {
    %c0_i32 = arith.constant 0 : i32
    %c0_i32_0 = arith.constant 0 : i32
    %c0_i32_1 = arith.constant 0 : i32
    return %c0_i32, %c0_i32_0 : i32, i32
  }
  func.func @transform_16(%arg0: i32) -> (i32, i32) {
    %c0_i32 = arith.constant 0 : i32
    %c0_i32_0 = arith.constant 0 : i32
    %c0_i32_1 = arith.constant 0 : i32
    return %c0_i32, %c0_i32_0 : i32, i32
  }
  func.func @transform_17(%arg0: i32) -> (i32, i32, i32) {
    %c0_i32 = arith.constant 0 : i32
    %c0_i32_0 = arith.constant 0 : i32
    %c0_i32_1 = arith.constant 0 : i32
    return %arg0, %c0_i32, %c0_i32_0 : i32, i32, i32
  }
}

</mosaic_0001>

<llo_original>
// kernel: tpu_custom_call.1
$region0: #{tpu_custom_call.1}
  #allocation0 [shape = 'u32[]', space=smem, size = 0x4, offset = 0x4, fixed_abs, tag = 'smem constant byte address 0x4 - core index']
  #allocation1 [shape = 'u32[72,128]{1,0:T(1,128)}', space=vmem, size = 0x9000, scoped, tag = 'internal scratch']
  %s0 = inlined_call_operand.vmem [shape: f32[2,1,8,2], index: 0, kind: input, shape index: {}]
  %s1 = inlined_call_operand.vmem [shape: f32[2,256], index: 1, kind: input, shape index: {}]
  %s2 = inlined_call_operand.vmem [shape: f32[2,256], index: 2, kind: input, shape index: {}]
  %s3 = inlined_call_operand.vmem [shape: f32[1,256], index: 3, kind: input, shape index: {}]
  %s4 = inlined_call_operand.hbm [shape: bf16[256,256], index: 4, kind: input, shape index: {}]
  %s5 = inlined_call_operand.vmem [shape: f32[1,256], index: 5, kind: input, shape index: {}]
  %s6 = inlined_call_operand.vmem [shape: bf16[256,64], index: 6, kind: input, shape index: {}]
  %s7 = inlined_call_operand.vmem [shape: f32[1,64], index: 7, kind: input, shape index: {}]
  %s8 = inlined_call_operand.vmem [shape: bf16[64,128], index: 8, kind: input, shape index: {}]
  %s9 = inlined_call_operand.vmem [shape: bf16[64,128], index: 9, kind: input, shape index: {}]
  %s10 = inlined_call_operand.vmem [shape: f32[1,128], index: 10, kind: input, shape index: {}]
  %s11 = inlined_call_operand.hbm [shape: bf16[128,1024], index: 11, kind: input, shape index: {}]
  %s12 = inlined_call_operand.vmem [shape: f32[1,1024], index: 12, kind: input, shape index: {}]
  %s13 = inlined_call_operand.hbm [shape: bf16[1024,512], index: 13, kind: input, shape index: {}]
  %s14 = inlined_call_operand.vmem [shape: f32[1,512], index: 14, kind: input, shape index: {}]
  %s15 = inlined_call_operand.hbm [shape: bf16[512,128], index: 15, kind: input, shape index: {}]
  %s16 = inlined_call_operand.vmem [shape: f32[1,128], index: 16, kind: input, shape index: {}]
  %s17 = inlined_call_operand.hbm [shape: f32[2,1,128], index: 17, kind: output, shape index: {}]
  %s18 = sld [smem:[#allocation0]]
  $region117: #{tpu_custom_call.1} parent=0
    _
  %s20 = ssub.s32 1, %s18
  %s21 = scalar_select 0, %s20, %s18
  $region1: #{tpu_custom_call.1} parent=0
    #allocation2 [shape = 'u8[131072]{0}', space=vmem, size = 0x20000, scoped, tag = 'input window, operand 4, single buffered']
    #allocation3 [shape = 's32[2]{0}', space=sflag, size = 0x8, scoped, tag = 'scoped memory for tpu_custom_call.1']
    #allocation4 [shape = 's32[2]{0}', space=sflag, size = 0x8, scoped, tag = 'scoped memory for tpu_custom_call.1']
    #allocation5 [shape = 'u8[262144]{0}', space=vmem, size = 0x40000, scoped, tag = 'input window, operand 11, single buffered']
    #allocation6 [shape = 's32[1]{0}', space=sflag, size = 0x4, scoped, tag = 'scoped memory for tpu_custom_call.1']
    #allocation7 [shape = 'u8[1048576]{0}', space=vmem, size = 0x100000, scoped, tag = 'input window, operand 13, single buffered']
    #allocation8 [shape = 'u8[131072]{0}', space=vmem, size = 0x20000, scoped, tag = 'input window, operand 15, single buffered']
    #allocation9 [shape = 's32[1]{0}', space=sflag, size = 0x4, scoped, tag = 'scoped memory for tpu_custom_call.1']
    #allocation10 [shape = 'u8[1024]{0}', space=vmem, size = 0x400, scoped, tag = 'output window, operand 0']
    %22 = vsyncpa [#allocation3], 0
    %23 = vsyncpa [#allocation6], 0
    %24 = vsyncpa [#allocation9], 0
    %25 = vsyncpa [#allocation4], 0
    %s26 = scalar_lea.sflag [#allocation4], 1
    %27 = vsyncpa %s26, 0
    loop: start=0, step=1, limit=4
    $region2: #{tpu_custom_call.1} parent=1 // loop_pre_header
      _
    $region3: #{tpu_custom_call.1} parent=1 // loop_header
      %s29 = sphi 0, %s33
      %p30 = scmp.ge.s32.totalorder %s29, 4
      %s39 = sphi 0, %s41
      %s42 = sphi 0, %s39
      %s43 = sphi 0, %s42
      %s59 = sphi 0, %s43
      %s63 = sphi 0, %s63
      %s65 = sphi 0, %s63
      %s66 = sphi 0, %s65
      %s80 = sphi 0, %s66
      %s84 = sphi 0, %s84
      %s86 = sphi 0, %s84
      %s87 = sphi 0, %s86
      %s101 = sphi 0, %s87
      %s105 = sphi 0, %s105
      %s107 = sphi 0, %s105
      %s108 = sphi 0, %s107
      %s122 = sphi 0, %s108
      %s126 = sphi 0, %s126
      %s128 = sphi 0, %s126
      %s129 = sphi 0, %s128
      %s143 = sphi 0, %s129
      %s147 = sphi 0, %s147
      %s149 = sphi 0, %s147
      %s150 = sphi 0, %s149
      %s164 = sphi 0, %s150
      %s168 = sphi 0, %s168
      %s170 = sphi 0, %s168
      %s171 = sphi 0, %s170
      %s185 = sphi 0, %s171
      %s189 = sphi 0, %s189
      %s191 = sphi 0, %s189
      %s192 = sphi 0, %s191
      %s206 = sphi 0, %s192
      %s210 = sphi 0, %s210
      %s212 = sphi 0, %s210
      %s213 = sphi 0, %s212
      %s227 = sphi 0, %s213
      %s231 = sphi 0, %s231
      %s233 = sphi 0, %s231
      %s234 = sphi 0, %s233
      %s248 = sphi 0, %s234
      %s252 = sphi 0, %s252
      %s254 = sphi 0, %s252
      %s255 = sphi 0, %s254
      %s269 = sphi 0, %s255
      %s273 = sphi 0, %s273
      %s275 = sphi 0, %s273
      %s276 = sphi 0, %s275
      %s290 = sphi 0, %s276
      %s294 = sphi 0, %s294
      %s296 = sphi 0, %s294
      %s297 = sphi 0, %s296
      %s311 = sphi 0, %s297
      %s315 = sphi 0, %s315
      %s317 = sphi 0, %s315
      %s318 = sphi 0, %s317
      %s332 = sphi 0, %s318
      %s336 = sphi 0, %s336
      %s338 = sphi 0, %s336
      %s339 = sphi 0, %s338
      %s353 = sphi 0, %s339
      %s357 = sphi 0, %s357
      %s359 = sphi 0, %s357
      %s360 = sphi 0, %s359
      %s374 = sphi 0, %s360
      %s378 = sphi 0, %s378
      %s380 = sphi 0, %s378
      %s381 = sphi 0, %s380
      %s395 = sphi 0, %s381
      %s401 = sphi 0, %s403
      %s404 = sphi 0, %s401
      %s405 = sphi 0, %s404
      %s421 = sphi 0, %s405
    $region4: #{tpu_custom_call.1} parent=1 // loop_header_branch
      %32 = sbr.rel (%p30) target = $region8
    $region5: #{tpu_custom_call.1} parent=1 // loop_body
      %s34 = ssub.s32 %s29, 1
      %s35 = ssub.s32 %s29, 2
      %s36 = sadd.s32 %s29, 1
      %s37 = ssub.s32 %s29, %s36
      %p38 = scmp.eq.s32.totalorder %s37, 0
      %s40 = sadd.s32 %s39, 1
      %s41 = scalar_select %p38, %s39, %s40
      %p44 = pneg %p38
      %p45 = scmp.eq.s32.totalorder %s29, 1
      %p46 = por %p44, %p45
      %p47 = scmp.ne.s32.totalorder %s39, %s42
      %p48 = scmp.eq.s32.totalorder %s29, 0
      %p49 = por %p47, %p48
      %p50 = scmp.ne.s32.totalorder %s39, %s42
      %p51 = scmp.eq.s32.totalorder %s34, 1
      %p52 = por %p50, %p51
      %p53 = scmp.ne.s32.totalorder %s42, %s43
      %p54 = scmp.eq.s32.totalorder %s34, 0
      %p55 = por %p53, %p54
      %p56 = scmp.ne.s32.totalorder %s42, %s43
      %p57 = scmp.eq.s32.totalorder %s35, 1
      %p58 = por %p56, %p57
      %p60 = scmp.ne.s32.totalorder %s43, %s59
      %p61 = scmp.eq.s32.totalorder %s35, 0
      %p62 = por %p60, %p61
      %s64 = sadd.s32 %s63, 1
      %p67 = scmp.eq.s32.totalorder %s29, 1
      %p68 = scmp.ne.s32.totalorder %s63, %s65
      %p69 = scmp.eq.s32.totalorder %s29, 0
      %p70 = por %p68, %p69
      %p71 = scmp.ne.s32.totalorder %s63, %s65
      %p72 = scmp.eq.s32.totalorder %s34, 1
      %p73 = por %p71, %p72
      %p74 = scmp.ne.s32.totalorder %s65, %s66
      %p75 = scmp.eq.s32.totalorder %s34, 0
      %p76 = por %p74, %p75
      %p77 = scmp.ne.s32.totalorder %s65, %s66
      %p78 = scmp.eq.s32.totalorder %s35, 1
      %p79 = por %p77, %p78
      %p81 = scmp.ne.s32.totalorder %s66, %s80
      %p82 = scmp.eq.s32.totalorder %s35, 0
      %p83 = por %p81, %p82
      %s85 = sadd.s32 %s84, 1
      %p88 = scmp.eq.s32.totalorder %s29, 1
      %p89 = scmp.ne.s32.totalorder %s84, %s86
      %p90 = scmp.eq.s32.totalorder %s29, 0
      %p91 = por %p89, %p90
      %p92 = scmp.ne.s32.totalorder %s84, %s86
      %p93 = scmp.eq.s32.totalorder %s34, 1
      %p94 = por %p92, %p93
      %p95 = scmp.ne.s32.totalorder %s86, %s87
      %p96 = scmp.eq.s32.totalorder %s34, 0
      %p97 = por %p95, %p96
      %p98 = scmp.ne.s32.totalorder %s86, %s87
      %p99 = scmp.eq.s32.totalorder %s35, 1
      %p100 = por %p98, %p99
      %p102 = scmp.ne.s32.totalorder %s87, %s101
      %p103 = scmp.eq.s32.totalorder %s35, 0
      %p104 = por %p102, %p103
      %s106 = sadd.s32 %s105, 1
      %p109 = scmp.eq.s32.totalorder %s29, 1
      %p110 = scmp.ne.s32.totalorder %s105, %s107
      %p111 = scmp.eq.s32.totalorder %s29, 0
      %p112 = por %p110, %p111
      %p113 = scmp.ne.s32.totalorder %s105, %s107
      %p114 = scmp.eq.s32.totalorder %s34, 1
      %p115 = por %p113, %p114
      %p116 = scmp.ne.s32.totalorder %s107, %s108
      %p117 = scmp.eq.s32.totalorder %s34, 0
      %p118 = por %p116, %p117
      %p119 = scmp.ne.s32.totalorder %s107, %s108
      %p120 = scmp.eq.s32.totalorder %s35, 1
      %p121 = por %p119, %p120
      %p123 = scmp.ne.s32.totalorder %s108, %s122
      %p124 = scmp.eq.s32.totalorder %s35, 0
      %p125 = por %p123, %p124
      %s127 = sadd.s32 %s126, 1
      %p130 = scmp.eq.s32.totalorder %s29, 1
      %p131 = scmp.ne.s32.totalorder %s126, %s128
      %p132 = scmp.eq.s32.totalorder %s29, 0
      %p133 = por %p131, %p132
      %p134 = scmp.ne.s32.totalorder %s126, %s128
      %p135 = scmp.eq.s32.totalorder %s34, 1
      %p136 = por %p134, %p135
      %p137 = scmp.ne.s32.totalorder %s128, %s129
      %p138 = scmp.eq.s32.totalorder %s34, 0
      %p139 = por %p137, %p138
      %p140 = scmp.ne.s32.totalorder %s128, %s129
      %p141 = scmp.eq.s32.totalorder %s35, 1
      %p142 = por %p140, %p141
      %p144 = scmp.ne.s32.totalorder %s129, %s143
      %p145 = scmp.eq.s32.totalorder %s35, 0
      %p146 = por %p144, %p145
      %s148 = sadd.s32 %s147, 1
      %p151 = scmp.eq.s32.totalorder %s29, 1
      %p152 = scmp.ne.s32.totalorder %s147, %s149
      %p153 = scmp.eq.s32.totalorder %s29, 0
      %p154 = por %p152, %p153
      %p155 = scmp.ne.s32.totalorder %s147, %s149
      %p156 = scmp.eq.s32.totalorder %s34, 1
      %p157 = por %p155, %p156
      %p158 = scmp.ne.s32.totalorder %s149, %s150
      %p159 = scmp.eq.s32.totalorder %s34, 0
      %p160 = por %p158, %p159
      %p161 = scmp.ne.s32.totalorder %s149, %s150
      %p162 = scmp.eq.s32.totalorder %s35, 1
      %p163 = por %p161, %p162
      %p165 = scmp.ne.s32.totalorder %s150, %s164
      %p166 = scmp.eq.s32.totalorder %s35, 0
      %p167 = por %p165, %p166
      %s169 = sadd.s32 %s168, 1
      %p172 = scmp.eq.s32.totalorder %s29, 1
      %p173 = scmp.ne.s32.totalorder %s168, %s170
      %p174 = scmp.eq.s32.totalorder %s29, 0
      %p175 = por %p173, %p174
      %p176 = scmp.ne.s32.totalorder %s168, %s170
      %p177 = scmp.eq.s32.totalorder %s34, 1
      %p178 = por %p176, %p177
      %p179 = scmp.ne.s32.totalorder %s170, %s171
      %p180 = scmp.eq.s32.totalorder %s34, 0
      %p181 = por %p179, %p180
      %p182 = scmp.ne.s32.totalorder %s170, %s171
      %p183 = scmp.eq.s32.totalorder %s35, 1
      %p184 = por %p182, %p183
      %p186 = scmp.ne.s32.totalorder %s171, %s185
      %p187 = scmp.eq.s32.totalorder %s35, 0
      %p188 = por %p186, %p187
      %s190 = sadd.s32 %s189, 1
      %p193 = scmp.eq.s32.totalorder %s29, 1
      %p194 = scmp.ne.s32.totalorder %s189, %s191
      %p195 = scmp.eq.s32.totalorder %s29, 0
      %p196 = por %p194, %p195
      %p197 = scmp.ne.s32.totalorder %s189, %s191
      %p198 = scmp.eq.s32.totalorder %s34, 1
      %p199 = por %p197, %p198
      %p200 = scmp.ne.s32.totalorder %s191, %s192
      %p201 = scmp.eq.s32.totalorder %s34, 0
      %p202 = por %p200, %p201
      %p203 = scmp.ne.s32.totalorder %s191, %s192
      %p204 = scmp.eq.s32.totalorder %s35, 1
      %p205 = por %p203, %p204
      %p207 = scmp.ne.s32.totalorder %s192, %s206
      %p208 = scmp.eq.s32.totalorder %s35, 0
      %p209 = por %p207, %p208
      %s211 = sadd.s32 %s210, 1
      %p214 = scmp.eq.s32.totalorder %s29, 1
      %p215 = scmp.ne.s32.totalorder %s210, %s212
      %p216 = scmp.eq.s32.totalorder %s29, 0
      %p217 = por %p215, %p216
      %p218 = scmp.ne.s32.totalorder %s210, %s212
      %p219 = scmp.eq.s32.totalorder %s34, 1
      %p220 = por %p218, %p219
      %p221 = scmp.ne.s32.totalorder %s212, %s213
      %p222 = scmp.eq.s32.totalorder %s34, 0
      %p223 = por %p221, %p222
      %p224 = scmp.ne.s32.totalorder %s212, %s213
      %p225 = scmp.eq.s32.totalorder %s35, 1
      %p226 = por %p224, %p225
      %p228 = scmp.ne.s32.totalorder %s213, %s227
      %p229 = scmp.eq.s32.totalorder %s35, 0
      %p230 = por %p228, %p229
      %s232 = sadd.s32 %s231, 1
      %p235 = scmp.eq.s32.totalorder %s29, 1
      %p236 = scmp.ne.s32.totalorder %s231, %s233
      %p237 = scmp.eq.s32.totalorder %s29, 0
      %p238 = por %p236, %p237
      %p239 = scmp.ne.s32.totalorder %s231, %s233
      %p240 = scmp.eq.s32.totalorder %s34, 1
      %p241 = por %p239, %p240
      %p242 = scmp.ne.s32.totalorder %s233, %s234
      %p243 = scmp.eq.s32.totalorder %s34, 0
      %p244 = por %p242, %p243
      %p245 = scmp.ne.s32.totalorder %s233, %s234
      %p246 = scmp.eq.s32.totalorder %s35, 1
      %p247 = por %p245, %p246
      %p249 = scmp.ne.s32.totalorder %s234, %s248
      %p250 = scmp.eq.s32.totalorder %s35, 0
      %p251 = por %p249, %p250
      %s253 = sadd.s32 %s252, 1
      %p256 = scmp.eq.s32.totalorder %s29, 1
      %p257 = scmp.ne.s32.totalorder %s252, %s254
      %p258 = scmp.eq.s32.totalorder %s29, 0
      %p259 = por %p257, %p258
      %p260 = scmp.ne.s32.totalorder %s252, %s254
      %p261 = scmp.eq.s32.totalorder %s34, 1
      %p262 = por %p260, %p261
      %p263 = scmp.ne.s32.totalorder %s254, %s255
      %p264 = scmp.eq.s32.totalorder %s34, 0
      %p265 = por %p263, %p264
      %p266 = scmp.ne.s32.totalorder %s254, %s255
      %p267 = scmp.eq.s32.totalorder %s35, 1
      %p268 = por %p266, %p267
      %p270 = scmp.ne.s32.totalorder %s255, %s269
      %p271 = scmp.eq.s32.totalorder %s35, 0
      %p272 = por %p270, %p271
      %s274 = sadd.s32 %s273, 1
      %p277 = scmp.eq.s32.totalorder %s29, 1
      %p278 = scmp.ne.s32.totalorder %s273, %s275
      %p279 = scmp.eq.s32.totalorder %s29, 0
      %p280 = por %p278, %p279
      %p281 = scmp.ne.s32.totalorder %s273, %s275
      %p282 = scmp.eq.s32.totalorder %s34, 1
      %p283 = por %p281, %p282
      %p284 = scmp.ne.s32.totalorder %s275, %s276
      %p285 = scmp.eq.s32.totalorder %s34, 0
      %p286 = por %p284, %p285
      %p287 = scmp.ne.s32.totalorder %s275, %s276
      %p288 = scmp.eq.s32.totalorder %s35, 1
      %p289 = por %p287, %p288
      %p291 = scmp.ne.s32.totalorder %s276, %s290
      %p292 = scmp.eq.s32.totalorder %s35, 0
      %p293 = por %p291, %p292
      %s295 = sadd.s32 %s294, 1
      %p298 = scmp.eq.s32.totalorder %s29, 1
      %p299 = scmp.ne.s32.totalorder %s294, %s296
      %p300 = scmp.eq.s32.totalorder %s29, 0
      %p301 = por %p299, %p300
      %p302 = scmp.ne.s32.totalorder %s294, %s296
      %p303 = scmp.eq.s32.totalorder %s34, 1
      %p304 = por %p302, %p303
      %p305 = scmp.ne.s32.totalorder %s296, %s297
      %p306 = scmp.eq.s32.totalorder %s34, 0
      %p307 = por %p305, %p306
      %p308 = scmp.ne.s32.totalorder %s296, %s297
      %p309 = scmp.eq.s32.totalorder %s35, 1
      %p310 = por %p308, %p309
      %p312 = scmp.ne.s32.totalorder %s297, %s311
      %p313 = scmp.eq.s32.totalorder %s35, 0
      %p314 = por %p312, %p313
      %s316 = sadd.s32 %s315, 1
      %p319 = scmp.eq.s32.totalorder %s29, 1
      %p320 = scmp.ne.s32.totalorder %s315, %s317
      %p321 = scmp.eq.s32.totalorder %s29, 0
      %p322 = por %p320, %p321
      %p323 = scmp.ne.s32.totalorder %s315, %s317
      %p324 = scmp.eq.s32.totalorder %s34, 1
      %p325 = por %p323, %p324
      %p326 = scmp.ne.s32.totalorder %s317, %s318
      %p327 = scmp.eq.s32.totalorder %s34, 0
      %p328 = por %p326, %p327
      %p329 = scmp.ne.s32.totalorder %s317, %s318
      %p330 = scmp.eq.s32.totalorder %s35, 1
      %p331 = por %p329, %p330
      %p333 = scmp.ne.s32.totalorder %s318, %s332
      %p334 = scmp.eq.s32.totalorder %s35, 0
      %p335 = por %p333, %p334
      %s337 = sadd.s32 %s336, 1
      %p340 = scmp.eq.s32.totalorder %s29, 1
      %p341 = scmp.ne.s32.totalorder %s336, %s338
      %p342 = scmp.eq.s32.totalorder %s29, 0
      %p343 = por %p341, %p342
      %p344 = scmp.ne.s32.totalorder %s336, %s338
      %p345 = scmp.eq.s32.totalorder %s34, 1
      %p346 = por %p344, %p345
      %p347 = scmp.ne.s32.totalorder %s338, %s339
      %p348 = scmp.eq.s32.totalorder %s34, 0
      %p349 = por %p347, %p348
      %p350 = scmp.ne.s32.totalorder %s338, %s339
      %p351 = scmp.eq.s32.totalorder %s35, 1
      %p352 = por %p350, %p351
      %p354 = scmp.ne.s32.totalorder %s339, %s353
      %p355 = scmp.eq.s32.totalorder %s35, 0
      %p356 = por %p354, %p355
      %s358 = sadd.s32 %s357, 1
      %p361 = scmp.eq.s32.totalorder %s29, 1
      %p362 = scmp.ne.s32.totalorder %s357, %s359
      %p363 = scmp.eq.s32.totalorder %s29, 0
      %p364 = por %p362, %p363
      %p365 = scmp.ne.s32.totalorder %s357, %s359
      %p366 = scmp.eq.s32.totalorder %s34, 1
      %p367 = por %p365, %p366
      %p368 = scmp.ne.s32.totalorder %s359, %s360
      %p369 = scmp.eq.s32.totalorder %s34, 0
      %p370 = por %p368, %p369
      %p371 = scmp.ne.s32.totalorder %s359, %s360
      %p372 = scmp.eq.s32.totalorder %s35, 1
      %p373 = por %p371, %p372
      %p375 = scmp.ne.s32.totalorder %s360, %s374
      %p376 = scmp.eq.s32.totalorder %s35, 0
      %p377 = por %p375, %p376
      %s379 = sadd.s32 %s378, 1
      %p382 = scmp.eq.s32.totalorder %s29, 1
      %p383 = scmp.ne.s32.totalorder %s378, %s380
      %p384 = scmp.eq.s32.totalorder %s29, 0
      %p385 = por %p383, %p384
      %p386 = scmp.ne.s32.totalorder %s378, %s380
      %p387 = scmp.eq.s32.totalorder %s34, 1
      %p388 = por %p386, %p387
      %p389 = scmp.ne.s32.totalorder %s380, %s381
      %p390 = scmp.eq.s32.totalorder %s34, 0
      %p391 = por %p389, %p390
      %p392 = scmp.ne.s32.totalorder %s380, %s381
      %p393 = scmp.eq.s32.totalorder %s35, 1
      %p394 = por %p392, %p393
      %p396 = scmp.ne.s32.totalorder %s381, %s395
      %p397 = scmp.eq.s32.totalorder %s35, 0
      %p398 = por %p396, %p397
      %s399 = ssub.s32 %s29, %s36
      %p400 = scmp.eq.s32.totalorder %s399, 0
      %s402 = sadd.s32 %s401, 1
      %s403 = scalar_select %p400, %s401, %s402
      %p406 = pneg %p400
      %p407 = scmp.eq.s32.totalorder %s29, 1
      %p408 = por %p406, %p407
      %p409 = scmp.ne.s32.totalorder %s401, %s404
      %p410 = scmp.eq.s32.totalorder %s29, 0
      %p411 = por %p409, %p410
      %p412 = scmp.ne.s32.totalorder %s401, %s404
      %p413 = scmp.eq.s32.totalorder %s34, 1
      %p414 = por %p412, %p413
      %p415 = scmp.ne.s32.totalorder %s404, %s405
      %p416 = scmp.eq.s32.totalorder %s34, 0
      %p417 = por %p415, %p416
      %p418 = scmp.ne.s32.totalorder %s404, %s405
      %p419 = scmp.eq.s32.totalorder %s35, 1
      %p420 = por %p418, %p419
      %p422 = scmp.ne.s32.totalorder %s405, %s421
      %p423 = scmp.eq.s32.totalorder %s35, 0
      %p424 = por %p422, %p423
      %p425 = scmp.le.s32.totalorder 1, %s29
      %p426 = scmp.lt.s32.totalorder %s29, 3
      %p427 = pnand %p425, %p426
      %p428 = pneg %p427
      // Predicated region
      $region9: #{tpu_custom_call.1} parent=5 // pred_check
        _
      $region10: #{tpu_custom_call.1} parent=5 // pred_check_branch
        %430 = sbr.rel (%p427) target = $region12
      $region11: #{tpu_custom_call.1} parent=5 // pred_region
        %s431 = ssub.s32 %s29, 1
        // Predicated region
        $region13: #{tpu_custom_call.1} parent=11 // pred_check
          %p432 = pneg %p76
        $region14: #{tpu_custom_call.1} parent=11 // pred_check_branch
          %434 = sbr.rel (%p432) target = $region16
        $region15: #{tpu_custom_call.1} parent=11 // pred_region
          _
        $region16: #{tpu_custom_call.1} parent=11 // pred_fallthru
          _
        // Predicated region
        $region17: #{tpu_custom_call.1} parent=11 // pred_check
          %p435 = pneg %p97
        $region18: #{tpu_custom_call.1} parent=11 // pred_check_branch
          %437 = sbr.rel (%p435) target = $region20
        $region19: #{tpu_custom_call.1} parent=11 // pred_region
          _
        $region20: #{tpu_custom_call.1} parent=11 // pred_fallthru
          _
        // Predicated region
        $region21: #{tpu_custom_call.1} parent=11 // pred_check
          %p438 = pneg %p118
        $region22: #{tpu_custom_call.1} parent=11 // pred_check_branch
          %440 = sbr.rel (%p438) target = $region24
        $region23: #{tpu_custom_call.1} parent=11 // pred_region
          _
        $region24: #{tpu_custom_call.1} parent=11 // pred_fallthru
          _
        // Predicated region
        $region25: #{tpu_custom_call.1} parent=11 // pred_check
          %p441 = pneg %p139
        $region26: #{tpu_custom_call.1} parent=11 // pred_check_branch
          %443 = sbr.rel (%p441) target = $region28
        $region27: #{tpu_custom_call.1} parent=11 // pred_region
          %445 = vsyncadd [#allocation3], 0
          %s446 = sshll.u32 %s4, 4
          %s447 = int_to_ptr.hbm [resolvable:$true] %s446
          %s448 = sshll.u32 [#allocation2], 4
          %s449 = int_to_ptr.vmem [resolvable:$true] %s448
          %454 = dma.hbm_to_vmem [thread:$0]  %s447, 4096, %s449, [#allocation3], 128, 128, 8
        $region28: #{tpu_custom_call.1} parent=11 // pred_fallthru
          _
        // Predicated region
        $region29: #{tpu_custom_call.1} parent=11 // pred_check
          %p455 = pneg %p160
        $region30: #{tpu_custom_call.1} parent=11 // pred_check_branch
          %457 = sbr.rel (%p455) target = $region32
        $region31: #{tpu_custom_call.1} parent=11 // pred_region
          _
        $region32: #{tpu_custom_call.1} parent=11 // pred_fallthru
          _
        // Predicated region
        $region33: #{tpu_custom_call.1} parent=11 // pred_check
          %p458 = pneg %p181
        $region34: #{tpu_custom_call.1} parent=11 // pred_check_branch
          %460 = sbr.rel (%p458) target = $region36
        $region35: #{tpu_custom_call.1} parent=11 // pred_region
          _
        $region36: #{tpu_custom_call.1} parent=11 // pred_fallthru
          _
        // Predicated region
        $region37: #{tpu_custom_call.1} parent=11 // pred_check
          %p461 = pneg %p202
        $region38: #{tpu_custom_call.1} parent=11 // pred_check_branch
          %463 = sbr.rel (%p461) target = $region40
        $region39: #{tpu_custom_call.1} parent=11 // pred_region
          _
        $region40: #{tpu_custom_call.1} parent=11 // pred_fallthru
          _
        // Predicated region
        $region41: #{tpu_custom_call.1} parent=11 // pred_check
          %p464 = pneg %p223
        $region42: #{tpu_custom_call.1} parent=11 // pred_check_branch
          %466 = sbr.rel (%p464) target = $region44
        $region43: #{tpu_custom_call.1} parent=11 // pred_region
          _
        $region44: #{tpu_custom_call.1} parent=11 // pred_fallthru
          _
        // Predicated region
        $region45: #{tpu_custom_call.1} parent=11 // pred_check
          %p467 = pneg %p244
        $region46: #{tpu_custom_call.1} parent=11 // pred_check_branch
          %469 = sbr.rel (%p467) target = $region48
        $region47: #{tpu_custom_call.1} parent=11 // pred_region
          _
        $region48: #{tpu_custom_call.1} parent=11 // pred_fallthru
          _
        // Predicated region
        $region49: #{tpu_custom_call.1} parent=11 // pred_check
          %p470 = pneg %p265
        $region50: #{tpu_custom_call.1} parent=11 // pred_check_branch
          %472 = sbr.rel (%p470) target = $region52
        $region51: #{tpu_custom_call.1} parent=11 // pred_region
          _
        $region52: #{tpu_custom_call.1} parent=11 // pred_fallthru
          _
        // Predicated region
        $region53: #{tpu_custom_call.1} parent=11 // pred_check
          %p473 = pneg %p286
        $region54: #{tpu_custom_call.1} parent=11 // pred_check_branch
          %475 = sbr.rel (%p473) target = $region56
        $region55: #{tpu_custom_call.1} parent=11 // pred_region
          %477 = vsyncadd [#allocation6], 0
          %s478 = sshll.u32 %s11, 4
          %s479 = int_to_ptr.hbm [resolvable:$true] %s478
          %s480 = sshll.u32 [#allocation5], 4
          %s481 = int_to_ptr.vmem [resolvable:$true] %s480
          %486 = dma.hbm_to_vmem [thread:$0]  %s479, 8192, %s481, [#allocation6], 512, 512, 32
        $region56: #{tpu_custom_call.1} parent=11 // pred_fallthru
          _
        // Predicated region
        $region57: #{tpu_custom_call.1} parent=11 // pred_check
          %p487 = pneg %p307
        $region58: #{tpu_custom_call.1} parent=11 // pred_check_branch
          %489 = sbr.rel (%p487) target = $region60
        $region59: #{tpu_custom_call.1} parent=11 // pred_region
          _
        $region60: #{tpu_custom_call.1} parent=11 // pred_fallthru
          _
        // Predicated region
        $region61: #{tpu_custom_call.1} parent=11 // pred_check
          %p490 = pneg %p328
        $region62: #{tpu_custom_call.1} parent=11 // pred_check_branch
          %492 = sbr.rel (%p490) target = $region64
        $region63: #{tpu_custom_call.1} parent=11 // pred_region
          %494 = vsyncadd [#allocation6], 0
          %s495 = sshll.u32 %s13, 4
          %s496 = int_to_ptr.hbm [resolvable:$true] %s495
          %s497 = sshll.u32 [#allocation7], 4
          %s498 = int_to_ptr.vmem [resolvable:$true] %s497
          %503 = dma.hbm_to_vmem [thread:$0]  %s496, 32768, %s498, [#allocation6], 256, 256, 16
        $region64: #{tpu_custom_call.1} parent=11 // pred_fallthru
          _
        // Predicated region
        $region65: #{tpu_custom_call.1} parent=11 // pred_check
          %p504 = pneg %p349
        $region66: #{tpu_custom_call.1} parent=11 // pred_check_branch
          %506 = sbr.rel (%p504) target = $region68
        $region67: #{tpu_custom_call.1} parent=11 // pred_region
          _
        $region68: #{tpu_custom_call.1} parent=11 // pred_fallthru
          _
        // Predicated region
        $region69: #{tpu_custom_call.1} parent=11 // pred_check
          %p507 = pneg %p370
        $region70: #{tpu_custom_call.1} parent=11 // pred_check_branch
          %509 = sbr.rel (%p507) target = $region72
        $region71: #{tpu_custom_call.1} parent=11 // pred_region
          %511 = vsyncadd [#allocation9], 0
          %s512 = sshll.u32 %s15, 4
          %s513 = int_to_ptr.hbm [resolvable:$true] %s512
          %s514 = sshll.u32 [#allocation8], 4
          %s515 = int_to_ptr.vmem [resolvable:$true] %s514
          %520 = dma.hbm_to_vmem [thread:$0]  %s513, 4096, %s515, [#allocation9], 64, 64, 4
        $region72: #{tpu_custom_call.1} parent=11 // pred_fallthru
          _
        // Predicated region
        $region73: #{tpu_custom_call.1} parent=11 // pred_check
          %p521 = pneg %p391
        $region74: #{tpu_custom_call.1} parent=11 // pred_check_branch
          %523 = sbr.rel (%p521) target = $region76
        $region75: #{tpu_custom_call.1} parent=11 // pred_region
          _
        $region76: #{tpu_custom_call.1} parent=11 // pred_fallthru
          _
      $region12: #{tpu_custom_call.1} parent=5 // pred_fallthru
        _
      %p524 = scmp.lt.s32.totalorder %s29, 2
      // Predicated region
      $region77: #{tpu_custom_call.1} parent=5 // pred_check
        %p525 = pneg %p524
      $region78: #{tpu_custom_call.1} parent=5 // pred_check_branch
        %527 = sbr.rel (%p525) target = $region80
      $region79: #{tpu_custom_call.1} parent=5 // pred_region
        // Predicated region
        $region81: #{tpu_custom_call.1} parent=79 // pred_check
          %p528 = pneg %p49
        $region82: #{tpu_custom_call.1} parent=79 // pred_check_branch
          %530 = sbr.rel (%p528) target = $region84
        $region83: #{tpu_custom_call.1} parent=79 // pred_region
          %p531 = scmp.lt.s32.totalorder %s29, 1
          %s532 = scalar_select %p531, %s29, 1
          %s533 = smul.addr %s532, 8
          %s534 = scalar_lea.vmem %s0, %s533
        $region84: #{tpu_custom_call.1} parent=79 // pred_fallthru
          _
      $region80: #{tpu_custom_call.1} parent=5 // pred_fallthru
        _
      %p535 = scmp.le.s32.totalorder 1, %s29
      %p536 = scmp.lt.s32.totalorder %s29, 3
      %p537 = pnand %p535, %p536
      %p538 = pneg %p537
      // Predicated region
      $region85: #{tpu_custom_call.1} parent=5 // pred_check
        _
      $region86: #{tpu_custom_call.1} parent=5 // pred_check_branch
        %540 = sbr.rel (%p537) target = $region88
      $region87: #{tpu_custom_call.1} parent=5 // pred_region
        %s541 = ssub.s32 %s29, 1
        // Predicated region
        $region89: #{tpu_custom_call.1} parent=87 // pred_check
          %p542 = pneg %p139
        $region90: #{tpu_custom_call.1} parent=87 // pred_check_branch
          %544 = sbr.rel (%p542) target = $region92
        $region91: #{tpu_custom_call.1} parent=87 // pred_region
          %546 = dma.done [#allocation3], 4096
        $region92: #{tpu_custom_call.1} parent=87 // pred_fallthru
          _
        // Predicated region
        $region93: #{tpu_custom_call.1} parent=87 // pred_check
          %p547 = pneg %p286
        $region94: #{tpu_custom_call.1} parent=87 // pred_check_branch
          %549 = sbr.rel (%p547) target = $region96
        $region95: #{tpu_custom_call.1} parent=87 // pred_region
          %551 = dma.done [#allocation6], 8192
        $region96: #{tpu_custom_call.1} parent=87 // pred_fallthru
          _
        // Predicated region
        $region97: #{tpu_custom_call.1} parent=87 // pred_check
          %p552 = pneg %p328
        $region98: #{tpu_custom_call.1} parent=87 // pred_check_branch
          %554 = sbr.rel (%p552) target = $region100
        $region99: #{tpu_custom_call.1} parent=87 // pred_region
          %556 = dma.done [#allocation6], 32768
        $region100: #{tpu_custom_call.1} parent=87 // pred_fallthru
          _
        // Predicated region
        $region101: #{tpu_custom_call.1} parent=87 // pred_check
          %p557 = pneg %p370
        $region102: #{tpu_custom_call.1} parent=87 // pred_check_branch
          %559 = sbr.rel (%p557) target = $region104
        $region103: #{tpu_custom_call.1} parent=87 // pred_region
          %561 = dma.done [#allocation9], 4096
        $region104: #{tpu_custom_call.1} parent=87 // pred_fallthru
          _
        %p562 = scmp.lt.s32.totalorder %s34, 1
        %s563 = scalar_select %p562, %s34, 1
        %s564 = smul.addr %s563, 8
        %s565 = scalar_lea.vmem %s0, %s564
        %p566 = pneg %p55
        %p567 = pneg %p52
        %p568 = pneg %p76
        %p569 = pneg %p73
        %p570 = pneg %p97
        %p571 = pneg %p94
        %p572 = pneg %p118
        %p573 = pneg %p115
        %p574 = pneg %p139
        %p575 = pneg %p136
        %p576 = pneg %p160
        %p577 = pneg %p157
        %p578 = pneg %p181
        %p579 = pneg %p178
        %p580 = pneg %p202
        %p581 = pneg %p199
        %p582 = pneg %p223
        %p583 = pneg %p220
        %p584 = pneg %p244
        %p585 = pneg %p241
        %p586 = pneg %p265
        %p587 = pneg %p262
        %p588 = pneg %p286
        %p589 = pneg %p283
        %p590 = pneg %p307
        %p591 = pneg %p304
        %p592 = pneg %p328
        %p593 = pneg %p325
        %p594 = pneg %p349
        %p595 = pneg %p346
        %p596 = pneg %p370
        %p597 = pneg %p367
        %p598 = pneg %p391
        %p599 = pneg %p388
        %p600 = pneg %p417
        %p601 = pneg %p414
        %s602 = sand.u32 %s404, 1
        %s603 = scalar_lea.sflag [#allocation4], %s602
        %s604 = sand.u32 %s404, 1
        %s605 = scalar_lea.vmem [#allocation10], %s604
        %p606 = scmp.lt.s32.totalorder %s34, 1
        %s607 = scalar_select %p606, %s34, 1
        %s608 = smul.addr %s607, 8
        %s609 = scalar_lea.vmem %s0, %s608
        %v611 = vld [vmem:[%s609] sm:$0xff]
        %v612 = vld [vmem:[%s1] sm:$0xf]
        %v613 = vld [vmem:[%s2] sm:$0xf]
        %v614 = vld [vmem:[%s3] sm:$0x3]
        %v615 = vld [vmem:[#allocation2] sm:$0xff]
        %v616 = vld [vmem:[#allocation2 + $0x8] sm:$0xff]
        %v617 = vld [vmem:[#allocation2 + $0x10] sm:$0xff]
        %v618 = vld [vmem:[#allocation2 + $0x18] sm:$0xff]
        %v619 = vld [vmem:[#allocation2 + $0x20] sm:$0xff]
        %v620 = vld [vmem:[#allocation2 + $0x28] sm:$0xff]
        %v621 = vld [vmem:[#allocation2 + $0x30] sm:$0xff]
        %v622 = vld [vmem:[#allocation2 + $0x38] sm:$0xff]
        %v623 = vld [vmem:[#allocation2 + $0x40] sm:$0xff]
        %v624 = vld [vmem:[#allocation2 + $0x48] sm:$0xff]
        %v625 = vld [vmem:[#allocation2 + $0x50] sm:$0xff]
        %v626 = vld [vmem:[#allocation2 + $0x58] sm:$0xff]
        %v627 = vld [vmem:[#allocation2 + $0x60] sm:$0xff]
        %v628 = vld [vmem:[#allocation2 + $0x68] sm:$0xff]
        %v629 = vld [vmem:[#allocation2 + $0x70] sm:$0xff]
        %v630 = vld [vmem:[#allocation2 + $0x78] sm:$0xff]
        %v631 = vld [vmem:[#allocation2 + $0x80] sm:$0xff]
        %v632 = vld [vmem:[#allocation2 + $0x88] sm:$0xff]
        %v633 = vld [vmem:[#allocation2 + $0x90] sm:$0xff]
        %v634 = vld [vmem:[#allocation2 + $0x98] sm:$0xff]
        %v635 = vld [vmem:[#allocation2 + $0xa0] sm:$0xff]
        %v636 = vld [vmem:[#allocation2 + $0xa8] sm:$0xff]
        %v637 = vld [vmem:[#allocation2 + $0xb0] sm:$0xff]
        %v638 = vld [vmem:[#allocation2 + $0xb8] sm:$0xff]
        %v639 = vld [vmem:[#allocation2 + $0xc0] sm:$0xff]
        %v640 = vld [vmem:[#allocation2 + $0xc8] sm:$0xff]
        %v641 = vld [vmem:[#allocation2 + $0xd0] sm:$0xff]
        %v642 = vld [vmem:[#allocation2 + $0xd8] sm:$0xff]
        %v643 = vld [vmem:[#allocation2 + $0xe0] sm:$0xff]
        %v644 = vld [vmem:[#allocation2 + $0xe8] sm:$0xff]
        %v645 = vld [vmem:[#allocation2 + $0xf0] sm:$0xff]
        %v646 = vld [vmem:[#allocation2 + $0xf8] sm:$0xff]
        %v647 = vld [vmem:[%s5] sm:$0x3]
        %v648 = vld [vmem:[%s6] sm:$0xf]
        %v649 = vld [vmem:[%s6 + $0x4] sm:$0xf]
        %v650 = vld [vmem:[%s6 + $0x8] sm:$0xf]
        %v651 = vld [vmem:[%s6 + $0xc] sm:$0xf]
        %v652 = vld [vmem:[%s6 + $0x10] sm:$0xf]
        %v653 = vld [vmem:[%s6 + $0x14] sm:$0xf]
        %v654 = vld [vmem:[%s6 + $0x18] sm:$0xf]
        %v655 = vld [vmem:[%s6 + $0x1c] sm:$0xf]
        %v656 = vld [vmem:[%s6 + $0x20] sm:$0xf]
        %v657 = vld [vmem:[%s6 + $0x24] sm:$0xf]
        %v658 = vld [vmem:[%s6 + $0x28] sm:$0xf]
        %v659 = vld [vmem:[%s6 + $0x2c] sm:$0xf]
        %v660 = vld [vmem:[%s6 + $0x30] sm:$0xf]
        %v661 = vld [vmem:[%s6 + $0x34] sm:$0xf]
        %v662 = vld [vmem:[%s6 + $0x38] sm:$0xf]
        %v663 = vld [vmem:[%s6 + $0x3c] sm:$0xf]
        %v664 = vld [vmem:[%s6 + $0x40] sm:$0xf]
        %v665 = vld [vmem:[%s6 + $0x44] sm:$0xf]
        %v666 = vld [vmem:[%s6 + $0x48] sm:$0xf]
        %v667 = vld [vmem:[%s6 + $0x4c] sm:$0xf]
        %v668 = vld [vmem:[%s6 + $0x50] sm:$0xf]
        %v669 = vld [vmem:[%s6 + $0x54] sm:$0xf]
        %v670 = vld [vmem:[%s6 + $0x58] sm:$0xf]
        %v671 = vld [vmem:[%s6 + $0x5c] sm:$0xf]
        %v672 = vld [vmem:[%s6 + $0x60] sm:$0xf]
        %v673 = vld [vmem:[%s6 + $0x64] sm:$0xf]
        %v674 = vld [vmem:[%s6 + $0x68] sm:$0xf]
        %v675 = vld [vmem:[%s6 + $0x6c] sm:$0xf]
        %v676 = vld [vmem:[%s6 + $0x70] sm:$0xf]
        %v677 = vld [vmem:[%s6 + $0x74] sm:$0xf]
        %v678 = vld [vmem:[%s6 + $0x78] sm:$0xf]
        %v679 = vld [vmem:[%s6 + $0x7c] sm:$0xf]
        %v680 = vld [vmem:[%s7] sm:$0x1]
        %v682 = vrot.slane %v611, 1
        %v683 = vrot.slane %v611, 2
        %v684 = vrot.slane %v611, 3
        %v685 = vrot.slane %v611, 4
        %v686 = vrot.slane %v611, 5
        %v687 = vrot.slane %v611, 6
        %v688 = vrot.slane %v611, 7
        %v689 = vperm.slane %v611, 0
        %v690 = vperm.slane %v682, 0
        %v691 = vperm.slane %v683, 0
        %v692 = vperm.slane %v684, 0
        %v693 = vperm.slane %v685, 0
        %v694 = vperm.slane %v686, 0
        %v695 = vperm.slane %v687, 0
        %v696 = vperm.slane %v688, 0
        %v705 = vsub.f32 %v689, %v611
        %v706 = vsub.f32 %v690, %v611
        %v707 = vsub.f32 %v691, %v611
        %v708 = vsub.f32 %v692, %v611
        %v709 = vsub.f32 %v693, %v611
        %v710 = vsub.f32 %v694, %v611
        %v711 = vsub.f32 %v695, %v611
        %v712 = vsub.f32 %v696, %v611
        %v713 = vmul.f32 %v705, %v705
        %v714 = vmul.f32 %v706, %v706
        %v715 = vmul.f32 %v707, %v707
        %v716 = vmul.f32 %v708, %v708
        %v717 = vmul.f32 %v709, %v709
        %v718 = vmul.f32 %v710, %v710
        %v719 = vmul.f32 %v711, %v711
        %v720 = vmul.f32 %v712, %v712
        %vm721 = vcmask 15360
        %v722 = vsel %vm721, %v713, 0.0
        %723 = vadd.xlane.f32.xlu0 %v722
        %v724 = vpop.xlane.xlu0 %723
        %v725 = vsel %vm721, %v714, 0.0
        %726 = vadd.xlane.f32.xlu0 %v725
        %v727 = vpop.xlane.xlu0 %726
        %v728 = vsel %vm721, %v715, 0.0
        %729 = vadd.xlane.f32.xlu0 %v728
        %v730 = vpop.xlane.xlu0 %729
        %v731 = vsel %vm721, %v716, 0.0
        %732 = vadd.xlane.f32.xlu0 %v731
        %v733 = vpop.xlane.xlu0 %732
        %v734 = vsel %vm721, %v717, 0.0
        %735 = vadd.xlane.f32.xlu0 %v734
        %v736 = vpop.xlane.xlu0 %735
        %v737 = vsel %vm721, %v718, 0.0
        %738 = vadd.xlane.f32.xlu0 %v737
        %v739 = vpop.xlane.xlu0 %738
        %v740 = vsel %vm721, %v719, 0.0
        %741 = vadd.xlane.f32.xlu0 %v740
        %v742 = vpop.xlane.xlu0 %741
        %v743 = vsel %vm721, %v720, 0.0
        %744 = vadd.xlane.f32.xlu0 %v743
        %v745 = vpop.xlane.xlu0 %744
        %v746 = vlaneseq
        %v747 = vshrl.u32 %v746, 7
        %v748 = vlaneseq
        %v749 = vand.u32 %v748, 127
        %vm750 = vcmp.eq.s32.totalorder %v747, %v749
        %v759 = vperm.slane %v724, %v749
        %v760 = vperm.slane %v727, %v749
        %v761 = vperm.slane %v730, %v749
        %v762 = vperm.slane %v733, %v749
        %v763 = vperm.slane %v736, %v749
        %v764 = vperm.slane %v739, %v749
        %v765 = vperm.slane %v742, %v749
        %v766 = vperm.slane %v745, %v749
        %vm767 = vcmask 1041409
        %v768 = vsel %vm767, %v760, %v759
        %vm769 = vcmask 1042434
        %v770 = vsel %vm769, %v761, %v768
        %vm771 = vcmask 1043459
        %v772 = vsel %vm771, %v762, %v770
        %vm773 = vcmask 1044484
        %v774 = vsel %vm773, %v763, %v772
        %vm775 = vcmask 1045509
        %v776 = vsel %vm775, %v764, %v774
        %vm777 = vcmask 1046534
        %v778 = vsel %vm777, %v765, %v776
        %vm779 = vcmask 1047559
        %v780 = vsel %vm779, %v766, %v778
        %v782 = vsel %vm750, 1e+30, %v780
        %v783 = vcvt.s32.f32 %v749
        %vm784 = vcmask 64512
        %v785 = vsel %vm784, %v782, inf
        %786 = vmin.xlane.f32.xlu0 %v785
        %v787 = vpop.xlane.xlu0 %786
        %vm788 = vcmp.eq.f32.partialorder %v782, %v787
        %v789 = vsel %vm788, %v783, 8.0
        %v790 = vsel %vm784, %v789, inf
        %791 = vmin.xlane.f32.xlu0 %v790
        %v792 = vpop.xlane.xlu0 %791
        %vm793 = vcmp.eq.f32.partialorder %v783, %v792
        %v794 = vsel %vm793, 1, 0
        %v795 = vcvt.s32.f32 %v794
        %vm796 = vcmp.gt.f32.partialorder %v795, 0.0
        %v797 = vsel %vm796, 1e+30, %v782
        %v798 = vsel %vm784, %v797, inf
        %799 = vmin.xlane.f32.xlu0 %v798
        %v800 = vpop.xlane.xlu0 %799
        %vm801 = vcmp.eq.f32.partialorder %v797, %v800
        %v802 = vsel %vm801, %v783, 8.0
        %v803 = vsel %vm784, %v802, inf
        %804 = vmin.xlane.f32.xlu0 %v803
        %v805 = vpop.xlane.xlu0 %804
        %vm806 = vcmp.eq.f32.partialorder %v783, %v805
        %v807 = vsel %vm806, 1, 0
        %v808 = vcvt.s32.f32 %v807
        %vm809 = vcmp.gt.f32.partialorder %v808, 0.0
        %v810 = vsel %vm809, 1e+30, %v797
        %v811 = vsel %vm784, %v810, inf
        %812 = vmin.xlane.f32.xlu0 %v811
        %v813 = vpop.xlane.xlu0 %812
        %vm814 = vcmp.eq.f32.partialorder %v810, %v813
        %v815 = vsel %vm814, %v783, 8.0
        %v816 = vsel %vm784, %v815, inf
        %817 = vmin.xlane.f32.xlu0 %v816
        %v818 = vpop.xlane.xlu0 %817
        %vm819 = vcmp.eq.f32.partialorder %v783, %v818
        %v820 = vsel %vm819, 1, 0
        %v821 = vcvt.s32.f32 %v820
        %v823 = vsel %vm784, %v795, 0
        %v826 = vsel %vm784, %v808, 0
        %v829 = vsel %vm784, %v821, 0
        %831 = vmatpush.msra.mxu0 0.0
        %832 = vmatpush.msra.mxu0 0.0
        %833 = vmatpush.msra.mxu0 0.0
        %834 = vmatpush.msra.mxu0 0.0
        %835 = vmatpush.msra.mxu0 0.0
        %836 = vmatpush.msra.mxu0 0.0
        %837 = vmatpush.msra.mxu0 0.0
        %838 = vmatpush.msra.mxu0 0.0
        %839 = vmatpush.msra.mxu0 0.0
        %840 = vmatpush.msra.mxu0 0.0
        %841 = vmatpush.msra.mxu0 0.0
        %842 = vmatpush.msra.mxu0 0.0
        %843 = vmatpush.msra.mxu0 0.0
        %844 = vmatpush.msra.mxu0 0.0
        %845 = vmatpush.msra.mxu0 0.0
        %846 = vmatpush.msra.mxu0 %v611
        %847 = vmatmul.f32.gmra.mxu0 %v823
        %v848 = vpop.f32.mrf.mxu0
        %v849 = vadd.f32 0.0, %v848
        %850 = vmatmul.f32.gmra.mxu0 %v826
        %v851 = vpop.f32.mrf.mxu0
        %v852 = vadd.f32 0.0, %v851
        %853 = vmatmul.f32.gmra.mxu0 %v829
        %v854 = vpop.f32.mrf.mxu0
        %v855 = vadd.f32 0.0, %v854
        %856 = vdwg.mxu0
        %v857 = vsub.f32 %v849, %v611
        %v858 = vsub.f32 %v852, %v611
        %v859 = vsub.f32 %v855, %v611
        %860 = vset.pattern.permute.xlu0 0
        %861 = vperm.xlu0 %860, %v611
        %v862 = vpop.permute.xlu0 %861
        %v865 = vperm.slane %v612, 0
        %v866 = vperm.slane %v612, 2
        %v869 = vperm.slane %v865, 0
        %v870 = vperm.slane %v866, 0
        %v871 = vmul.f32 %v862, %v869
        %v872 = vmul.f32 %v862, %v870
        %873 = vset.pattern.permute.xlu0 1
        %874 = vperm.xlu0 %873, %v611
        %v875 = vpop.permute.xlu0 %874
        %v877 = vperm.slane %v612, 1
        %v878 = vperm.slane %v612, 3
        %v881 = vperm.slane %v877, 1
        %v882 = vperm.slane %v878, 1
        %v883 = vmul.f32 %v875, %v881
        %v884 = vmul.f32 %v875, %v882
        %v885 = vadd.f32 %v871, %v883
        %v886 = vadd.f32 %v872, %v884
        %888 = vset.pattern.permute.xlu0 0
        %889 = vperm.xlu0 %888, %v857
        %v890 = vpop.permute.xlu0 %889
        %893 = vset.pattern.permute.xlu0 0
        %894 = vperm.xlu0 %893, %v858
        %v895 = vpop.permute.xlu0 %894
        %898 = vset.pattern.permute.xlu0 0
        %899 = vperm.xlu0 %898, %v859
        %v900 = vpop.permute.xlu0 %899
        %v903 = vperm.slane %v613, 0
        %v904 = vperm.slane %v613, 2
        %v907 = vperm.slane %v903, 0
        %v908 = vperm.slane %v904, 0
        %v909 = vmul.f32 %v890, %v907
        %v910 = vmul.f32 %v890, %v908
        %v911 = vmul.f32 %v895, %v907
        %v912 = vmul.f32 %v895, %v908
        %v913 = vmul.f32 %v900, %v907
        %v914 = vmul.f32 %v900, %v908
        %915 = vset.pattern.permute.xlu0 1
        %916 = vperm.xlu0 %915, %v857
        %v917 = vpop.permute.xlu0 %916
        %919 = vset.pattern.permute.xlu0 1
        %920 = vperm.xlu0 %919, %v858
        %v921 = vpop.permute.xlu0 %920
        %923 = vset.pattern.permute.xlu0 1
        %924 = vperm.xlu0 %923, %v859
        %v925 = vpop.permute.xlu0 %924
        %v927 = vperm.slane %v613, 1
        %v928 = vperm.slane %v613, 3
        %v931 = vperm.slane %v927, 1
        %v932 = vperm.slane %v928, 1
        %v933 = vmul.f32 %v917, %v931
        %v934 = vmul.f32 %v917, %v932
        %v935 = vmul.f32 %v921, %v931
        %v936 = vmul.f32 %v921, %v932
        %v937 = vmul.f32 %v925, %v931
        %v938 = vmul.f32 %v925, %v932
        %v939 = vadd.f32 %v909, %v933
        %v940 = vadd.f32 %v910, %v934
        %v941 = vadd.f32 %v911, %v935
        %v942 = vadd.f32 %v912, %v936
        %v943 = vadd.f32 %v913, %v937
        %v944 = vadd.f32 %v914, %v938
        %v945 = vadd.f32 %v939, %v885
        %v946 = vadd.f32 %v940, %v886
        %v947 = vadd.f32 %v941, %v885
        %v948 = vadd.f32 %v942, %v886
        %v949 = vadd.f32 %v943, %v885
        %v950 = vadd.f32 %v944, %v886
        %v952 = vperm.slane %v614, 0
        %v953 = vperm.slane %v614, 1
        %v956 = vadd.f32 %v945, %v952
        %v957 = vadd.f32 %v946, %v953
        %v958 = vadd.f32 %v947, %v952
        %v959 = vadd.f32 %v948, %v953
        %v960 = vadd.f32 %v949, %v952
        %v961 = vadd.f32 %v950, %v953
        %v962 = vmax.f32 %v956, 0.0
        %v963 = vmax.f32 %v957, 0.0
        %v964 = vmax.f32 %v958, 0.0
        %v965 = vmax.f32 %v959, 0.0
        %v966 = vmax.f32 %v960, 0.0
        %v967 = vmax.f32 %v961, 0.0
        %v968 = vpack.c.bf16 %v964, %v962
        %v969 = vpack.c.bf16 %v965, %v963
        %v970 = vpack.c.bf16 %v966, %v966
        %v971 = vpack.c.bf16 %v967, %v967
        %v973 = vperm.slane %v647, 0
        %v974 = vperm.slane %v647, 1
        %v1009 = vunpack.c.l.b16 %v615
        %v1010 = vunpack.c.h.b16 %v615
        %v1011 = vunpack.c.l.b16 %v616
        %v1012 = vunpack.c.h.b16 %v616
        %v1013 = vunpack.c.l.b16 %v617
        %v1014 = vunpack.c.h.b16 %v617
        %v1015 = vunpack.c.l.b16 %v618
        %v1016 = vunpack.c.h.b16 %v618
        %v1017 = vunpack.c.l.b16 %v619
        %v1018 = vunpack.c.h.b16 %v619
        %v1019 = vunpack.c.l.b16 %v620
        %v1020 = vunpack.c.h.b16 %v620
        %v1021 = vunpack.c.l.b16 %v621
        %v1022 = vunpack.c.h.b16 %v621
        %v1023 = vunpack.c.l.b16 %v622
        %v1024 = vunpack.c.h.b16 %v622
        %v1025 = vunpack.c.l.b16 %v623
        %v1026 = vunpack.c.h.b16 %v623
        %v1027 = vunpack.c.l.b16 %v624
        %v1028 = vunpack.c.h.b16 %v624
        %v1029 = vunpack.c.l.b16 %v625
        %v1030 = vunpack.c.h.b16 %v625
        %v1031 = vunpack.c.l.b16 %v626
        %v1032 = vunpack.c.h.b16 %v626
        %v1033 = vunpack.c.l.b16 %v627
        %v1034 = vunpack.c.h.b16 %v627
        %v1035 = vunpack.c.l.b16 %v628
        %v1036 = vunpack.c.h.b16 %v628
        %v1037 = vunpack.c.l.b16 %v629
        %v1038 = vunpack.c.h.b16 %v629
        %v1039 = vunpack.c.l.b16 %v630
        %v1040 = vunpack.c.h.b16 %v630
        %v1041 = vunpack.c.l.b16 %v631
        %v1042 = vunpack.c.h.b16 %v631
        %v1043 = vunpack.c.l.b16 %v632
        %v1044 = vunpack.c.h.b16 %v632
        %v1045 = vunpack.c.l.b16 %v633
        %v1046 = vunpack.c.h.b16 %v633
        %v1047 = vunpack.c.l.b16 %v634
        %v1048 = vunpack.c.h.b16 %v634
        %v1049 = vunpack.c.l.b16 %v635
        %v1050 = vunpack.c.h.b16 %v635
        %v1051 = vunpack.c.l.b16 %v636
        %v1052 = vunpack.c.h.b16 %v636
        %v1053 = vunpack.c.l.b16 %v637
        %v1054 = vunpack.c.h.b16 %v637
        %v1055 = vunpack.c.l.b16 %v638
        %v1056 = vunpack.c.h.b16 %v638
        %v1057 = vunpack.c.l.b16 %v639
        %v1058 = vunpack.c.h.b16 %v639
        %v1059 = vunpack.c.l.b16 %v640
        %v1060 = vunpack.c.h.b16 %v640
        %v1061 = vunpack.c.l.b16 %v641
        %v1062 = vunpack.c.h.b16 %v641
        %v1063 = vunpack.c.l.b16 %v642
        %v1064 = vunpack.c.h.b16 %v642
        %v1065 = vunpack.c.l.b16 %v643
        %v1066 = vunpack.c.h.b16 %v643
        %v1067 = vunpack.c.l.b16 %v644
        %v1068 = vunpack.c.h.b16 %v644
        %v1069 = vunpack.c.l.b16 %v645
        %v1070 = vunpack.c.h.b16 %v645
        %v1071 = vunpack.c.l.b16 %v646
        %v1072 = vunpack.c.h.b16 %v646
        %v1073 = vpack.c.b16 %v1011, %v1009
        %v1074 = vpack.c.b16 %v1012, %v1010
        %v1075 = vpack.c.b16 %v1015, %v1013
        %v1076 = vpack.c.b16 %v1016, %v1014
        %v1077 = vpack.c.b16 %v1019, %v1017
        %v1078 = vpack.c.b16 %v1020, %v1018
        %v1079 = vpack.c.b16 %v1023, %v1021
        %v1080 = vpack.c.b16 %v1024, %v1022
        %v1081 = vpack.c.b16 %v1027, %v1025
        %v1082 = vpack.c.b16 %v1028, %v1026
        %v1083 = vpack.c.b16 %v1031, %v1029
        %v1084 = vpack.c.b16 %v1032, %v1030
        %v1085 = vpack.c.b16 %v1035, %v1033
        %v1086 = vpack.c.b16 %v1036, %v1034
        %v1087 = vpack.c.b16 %v1039, %v1037
        %v1088 = vpack.c.b16 %v1040, %v1038
        %v1089 = vpack.c.b16 %v1043, %v1041
        %v1090 = vpack.c.b16 %v1044, %v1042
        %v1091 = vpack.c.b16 %v1047, %v1045
        %v1092 = vpack.c.b16 %v1048, %v1046
        %v1093 = vpack.c.b16 %v1051, %v1049
        %v1094 = vpack.c.b16 %v1052, %v1050
        %v1095 = vpack.c.b16 %v1055, %v1053
        %v1096 = vpack.c.b16 %v1056, %v1054
        %v1097 = vpack.c.b16 %v1059, %v1057
        %v1098 = vpack.c.b16 %v1060, %v1058
        %v1099 = vpack.c.b16 %v1063, %v1061
        %v1100 = vpack.c.b16 %v1064, %v1062
        %v1101 = vpack.c.b16 %v1067, %v1065
        %v1102 = vpack.c.b16 %v1068, %v1066
        %v1103 = vpack.c.b16 %v1071, %v1069
        %v1104 = vpack.c.b16 %v1072, %v1070
        %1137 = vmatpush.bf16.msra.mxu0 %v1087
        %1138 = vmatpush.bf16.msra.mxu0 %v1085
        %1139 = vmatpush.bf16.msra.mxu0 %v1083
        %1140 = vmatpush.bf16.msra.mxu0 %v1081
        %1141 = vmatpush.bf16.msra.mxu0 %v1079
        %1142 = vmatpush.bf16.msra.mxu0 %v1077
        %1143 = vmatpush.bf16.msra.mxu0 %v1075
        %1144 = vmatpush.bf16.msra.mxu0 %v1073
        %1145 = vmatmul.bf16.gmra.mxu0 %v968
        %v1146 = vpop.f32.mrf.mxu0
        %v1147 = vadd.f32 %v973, %v1146
        %v1148 = vpop.f32.mrf.mxu0
        %v1149 = vadd.f32 %v973, %v1148
        %1150 = vmatmul.bf16.gmra.mxu0 %v970
        %v1151 = vpop.f32.mrf.mxu0
        %v1152 = vadd.f32 %v973, %v1151
        %v1153 = vpop.f32.mrf.mxu0
        %1154 = vdwg.mxu0
        %1155 = vmatpush.bf16.msra.mxu0 %v1103
        %1156 = vmatpush.bf16.msra.mxu0 %v1101
        %1157 = vmatpush.bf16.msra.mxu0 %v1099
        %1158 = vmatpush.bf16.msra.mxu0 %v1097
        %1159 = vmatpush.bf16.msra.mxu0 %v1095
        %1160 = vmatpush.bf16.msra.mxu0 %v1093
        %1161 = vmatpush.bf16.msra.mxu0 %v1091
        %1162 = vmatpush.bf16.msra.mxu0 %v1089
        %1163 = vmatmul.bf16.gmra.mxu0 %v969
        %v1164 = vpop.f32.mrf.mxu0
        %v1165 = vadd.f32 %v1147, %v1164
        %v1166 = vpop.f32.mrf.mxu0
        %v1167 = vadd.f32 %v1149, %v1166
        %1168 = vmatmul.bf16.gmra.mxu0 %v971
        %v1169 = vpop.f32.mrf.mxu0
        %v1170 = vadd.f32 %v1152, %v1169
        %v1171 = vpop.f32.mrf.mxu0
        %1172 = vdwg.mxu0
        %1173 = vmatpush.bf16.msra.mxu0 %v1088
        %1174 = vmatpush.bf16.msra.mxu0 %v1086
        %1175 = vmatpush.bf16.msra.mxu0 %v1084
        %1176 = vmatpush.bf16.msra.mxu0 %v1082
        %1177 = vmatpush.bf16.msra.mxu0 %v1080
        %1178 = vmatpush.bf16.msra.mxu0 %v1078
        %1179 = vmatpush.bf16.msra.mxu0 %v1076
        %1180 = vmatpush.bf16.msra.mxu0 %v1074
        %1181 = vmatmul.bf16.gmra.mxu0 %v968
        %v1182 = vpop.f32.mrf.mxu0
        %v1183 = vadd.f32 %v974, %v1182
        %v1184 = vpop.f32.mrf.mxu0
        %v1185 = vadd.f32 %v974, %v1184
        %1186 = vmatmul.bf16.gmra.mxu0 %v970
        %v1187 = vpop.f32.mrf.mxu0
        %v1188 = vadd.f32 %v974, %v1187
        %v1189 = vpop.f32.mrf.mxu0
        %1190 = vdwg.mxu0
        %1191 = vmatpush.bf16.msra.mxu0 %v1104
        %1192 = vmatpush.bf16.msra.mxu0 %v1102
        %1193 = vmatpush.bf16.msra.mxu0 %v1100
        %1194 = vmatpush.bf16.msra.mxu0 %v1098
        %1195 = vmatpush.bf16.msra.mxu0 %v1096
        %1196 = vmatpush.bf16.msra.mxu0 %v1094
        %1197 = vmatpush.bf16.msra.mxu0 %v1092
        %1198 = vmatpush.bf16.msra.mxu0 %v1090
        %1199 = vmatmul.bf16.gmra.mxu0 %v969
        %v1200 = vpop.f32.mrf.mxu0
        %v1201 = vadd.f32 %v1183, %v1200
        %v1202 = vpop.f32.mrf.mxu0
        %v1203 = vadd.f32 %v1185, %v1202
        %1204 = vmatmul.bf16.gmra.mxu0 %v971
        %v1205 = vpop.f32.mrf.mxu0
        %v1206 = vadd.f32 %v1188, %v1205
        %v1207 = vpop.f32.mrf.mxu0
        %1208 = vdwg.mxu0
        %v1209 = vmax.f32 %v1165, 0.0
        %v1210 = vmax.f32 %v1201, 0.0
        %v1211 = vmax.f32 %v1167, 0.0
        %v1212 = vmax.f32 %v1203, 0.0
        %v1213 = vmax.f32 %v1170, 0.0
        %v1214 = vmax.f32 %v1206, 0.0
        %v1215 = vpack.c.bf16 %v1211, %v1209
        %v1216 = vpack.c.bf16 %v1212, %v1210
        %v1217 = vpack.c.bf16 %v1213, %v1213
        %v1218 = vpack.c.bf16 %v1214, %v1214
        %v1220 = vperm.slane %v680, 0
        %v1254 = vunpack.c.l.b16 %v648
        %v1255 = vunpack.c.l.b16 %v649
        %v1256 = vunpack.c.l.b16 %v650
        %v1257 = vunpack.c.l.b16 %v651
        %v1258 = vunpack.c.l.b16 %v652
        %v1259 = vunpack.c.l.b16 %v653
        %v1260 = vunpack.c.l.b16 %v654
        %v1261 = vunpack.c.l.b16 %v655
        %v1262 = vunpack.c.l.b16 %v656
        %v1263 = vunpack.c.l.b16 %v657
        %v1264 = vunpack.c.l.b16 %v658
        %v1265 = vunpack.c.l.b16 %v659
        %v1266 = vunpack.c.l.b16 %v660
        %v1267 = vunpack.c.l.b16 %v661
        %v1268 = vunpack.c.l.b16 %v662
        %v1269 = vunpack.c.l.b16 %v663
        %v1270 = vunpack.c.l.b16 %v664
        %v1271 = vunpack.c.l.b16 %v665
        %v1272 = vunpack.c.l.b16 %v666
        %v1273 = vunpack.c.l.b16 %v667
        %v1274 = vunpack.c.l.b16 %v668
        %v1275 = vunpack.c.l.b16 %v669
        %v1276 = vunpack.c.l.b16 %v670
        %v1277 = vunpack.c.l.b16 %v671
        %v1278 = vunpack.c.l.b16 %v672
        %v1279 = vunpack.c.l.b16 %v673
        %v1280 = vunpack.c.l.b16 %v674
        %v1281 = vunpack.c.l.b16 %v675
        %v1282 = vunpack.c.l.b16 %v676
        %v1283 = vunpack.c.l.b16 %v677
        %v1284 = vunpack.c.l.b16 %v678
        %v1285 = vunpack.c.l.b16 %v679
        %v1286 = vpack.c.b16 %v1255, %v1254
        %v1287 = vpack.c.b16 %v1257, %v1256
        %v1288 = vpack.c.b16 %v1259, %v1258
        %v1289 = vpack.c.b16 %v1261, %v1260
        %v1290 = vpack.c.b16 %v1263, %v1262
        %v1291 = vpack.c.b16 %v1265, %v1264
        %v1292 = vpack.c.b16 %v1267, %v1266
        %v1293 = vpack.c.b16 %v1269, %v1268
        %v1294 = vpack.c.b16 %v1271, %v1270
        %v1295 = vpack.c.b16 %v1273, %v1272
        %v1296 = vpack.c.b16 %v1275, %v1274
        %v1297 = vpack.c.b16 %v1277, %v1276
        %v1298 = vpack.c.b16 %v1279, %v1278
        %v1299 = vpack.c.b16 %v1281, %v1280
        %v1300 = vpack.c.b16 %v1283, %v1282
        %v1301 = vpack.c.b16 %v1285, %v1284
        %1318 = vmatpush.bf16.msra.mxu0 %v1293
        %1319 = vmatpush.bf16.msra.mxu0 %v1292
        %1320 = vmatpush.bf16.msra.mxu0 %v1291
        %1321 = vmatpush.bf16.msra.mxu0 %v1290
        %1322 = vmatpush.bf16.msra.mxu0 %v1289
        %1323 = vmatpush.bf16.msra.mxu0 %v1288
        %1324 = vmatpush.bf16.msra.mxu0 %v1287
        %1325 = vmatpush.bf16.msra.mxu0 %v1286
        %1326 = vmatmul.bf16.gmra.mxu0 %v1215
        %v1327 = vpop.f32.mrf.mxu0
        %v1328 = vadd.f32 %v1220, %v1327
        %v1329 = vpop.f32.mrf.mxu0
        %v1330 = vadd.f32 %v1220, %v1329
        %1331 = vmatmul.bf16.gmra.mxu0 %v1217
        %v1332 = vpop.f32.mrf.mxu0
        %v1333 = vadd.f32 %v1220, %v1332
        %v1334 = vpop.f32.mrf.mxu0
        %1335 = vdwg.mxu0
        %1336 = vmatpush.bf16.msra.mxu0 %v1301
        %1337 = vmatpush.bf16.msra.mxu0 %v1300
        %1338 = vmatpush.bf16.msra.mxu0 %v1299
        %1339 = vmatpush.bf16.msra.mxu0 %v1298
        %1340 = vmatpush.bf16.msra.mxu0 %v1297
        %1341 = vmatpush.bf16.msra.mxu0 %v1296
        %1342 = vmatpush.bf16.msra.mxu0 %v1295
        %1343 = vmatpush.bf16.msra.mxu0 %v1294
        %1344 = vmatmul.bf16.gmra.mxu0 %v1216
        %v1345 = vpop.f32.mrf.mxu0
        %v1346 = vadd.f32 %v1328, %v1345
        %v1347 = vpop.f32.mrf.mxu0
        %v1348 = vadd.f32 %v1330, %v1347
        %1349 = vmatmul.bf16.gmra.mxu0 %v1218
        %v1350 = vpop.f32.mrf.mxu0
        %v1351 = vadd.f32 %v1333, %v1350
        %v1352 = vpop.f32.mrf.mxu0
        %1353 = vdwg.mxu0
        %v1354 = vmax.f32 %v1346, 0.0
        %v1355 = vmax.f32 %v1348, 0.0
        %v1356 = vmax.f32 %v1351, 0.0
        %vm1357 = vcmask 523264
        %v1358 = vsel %vm1357, %v1354, -inf
        %v1359 = vsel %vm1357, %v1355, -inf
        %v1360 = vsel %vm1357, %v1356, -inf
        %v1361 = vmax.f32 %v1358, %v1359
        %v1362 = vmax.f32 %v1361, %v1360
        %v1363 = vld [vmem:[%s8] sm:$0xf]
        %v1364 = vld [vmem:[%s8 + $0x4] sm:$0xf]
        %v1365 = vld [vmem:[%s8 + $0x8] sm:$0xf]
        %v1366 = vld [vmem:[%s8 + $0xc] sm:$0xf]
        %v1367 = vld [vmem:[%s8 + $0x10] sm:$0xf]
        %v1368 = vld [vmem:[%s8 + $0x14] sm:$0xf]
        %v1369 = vld [vmem:[%s8 + $0x18] sm:$0xf]
        %v1370 = vld [vmem:[%s8 + $0x1c] sm:$0xf]
        %v1371 = vld [vmem:[%s9] sm:$0xf]
        %v1372 = vld [vmem:[%s9 + $0x4] sm:$0xf]
        %v1373 = vld [vmem:[%s9 + $0x8] sm:$0xf]
        %v1374 = vld [vmem:[%s9 + $0xc] sm:$0xf]
        %v1375 = vld [vmem:[%s9 + $0x10] sm:$0xf]
        %v1376 = vld [vmem:[%s9 + $0x14] sm:$0xf]
        %v1377 = vld [vmem:[%s9 + $0x18] sm:$0xf]
        %v1378 = vld [vmem:[%s9 + $0x1c] sm:$0xf]
        %v1379 = vld [vmem:[%s10] sm:$0x1]
        %v1380 = vmul.f32 %v1362, %v1362
        %v1381 = vsel %vm1357, %v1380, 0.0
        %1382 = vadd.xlane.f32.xlu0 %v1381
        %v1383 = vpop.xlane.xlu0 %1382
        %v1385 = vsel %vm1357, %v1362, 0
        %1387 = vmatpush.xpose.msra.mxu0 0.0
        %1388 = vmatpush.xpose.msra.mxu0 0.0
        %1389 = vmatpush.xpose.msra.mxu0 0.0
        %1390 = vmatpush.xpose.msra.mxu0 0.0
        %1391 = vmatpush.xpose.msra.mxu0 0.0
        %1392 = vmatpush.xpose.msra.mxu0 0.0
        %1393 = vmatpush.xpose.msra.mxu0 0.0
        %1394 = vmatpush.xpose.msra.mxu0 0.0
        %1395 = vmatpush.xpose.msra.mxu0 0.0
        %1396 = vmatpush.xpose.msra.mxu0 0.0
        %1397 = vmatpush.xpose.msra.mxu0 0.0
        %1398 = vmatpush.xpose.msra.mxu0 0.0
        %1399 = vmatpush.xpose.msra.mxu0 0.0
        %1400 = vmatpush.xpose.msra.mxu0 0.0
        %1401 = vmatpush.xpose.msra.mxu0 0.0
        %1402 = vmatpush.xpose.msra.mxu0 %v1385
        %1403 = vmatmul.f32.gmra.mxu0 %v1385
        %v1404 = vpop.f32.mrf.mxu0
        %v1405 = vadd.f32 0.0, %v1404
        %1406 = vdwg.mxu0
        %v1408 = vperm.slane %v1383, %v749
        %v1409 = vsel %vm769, %v1408, %v1408
        %v1410 = vsel %vm771, %v1408, %v1409
        %v1411 = vsel %vm773, %v1408, %v1410
        %v1412 = vsel %vm775, %v1408, %v1411
        %v1413 = vsel %vm777, %v1408, %v1412
        %v1414 = vsel %vm779, %v1408, %v1413
        %v1416 = vadd.f32 %v1383, %v1414
        %v1417 = vmul.f32 %v1405, 2.0
        %v1418 = vsub.f32 %v1416, %v1417
        %v1419 = vsel %vm750, 1e+30, %v1418
        %v1420 = vsel %vm784, %v1419, inf
        %1421 = vmin.xlane.f32.xlu0 %v1420
        %v1422 = vpop.xlane.xlu0 %1421
        %vm1423 = vcmp.eq.f32.partialorder %v1419, %v1422
        %v1424 = vsel %vm1423, %v783, 8.0
        %v1425 = vsel %vm784, %v1424, inf
        %1426 = vmin.xlane.f32.xlu0 %v1425
        %v1427 = vpop.xlane.xlu0 %1426
        %vm1428 = vcmp.eq.f32.partialorder %v783, %v1427
        %v1429 = vsel %vm1428, 1, 0
        %v1430 = vcvt.s32.f32 %v1429
        %vm1431 = vcmp.gt.f32.partialorder %v1430, 0.0
        %v1432 = vsel %vm1431, 1e+30, %v1419
        %v1433 = vsel %vm784, %v1432, inf
        %1434 = vmin.xlane.f32.xlu0 %v1433
        %v1435 = vpop.xlane.xlu0 %1434
        %vm1436 = vcmp.eq.f32.partialorder %v1432, %v1435
        %v1437 = vsel %vm1436, %v783, 8.0
        %v1438 = vsel %vm784, %v1437, inf
        %1439 = vmin.xlane.f32.xlu0 %v1438
        %v1440 = vpop.xlane.xlu0 %1439
        %vm1441 = vcmp.eq.f32.partialorder %v783, %v1440
        %v1442 = vsel %vm1441, 1, 0
        %v1443 = vcvt.s32.f32 %v1442
        %vm1444 = vcmp.gt.f32.partialorder %v1443, 0.0
        %v1445 = vsel %vm1444, 1e+30, %v1432
        %v1446 = vsel %vm784, %v1445, inf
        %1447 = vmin.xlane.f32.xlu0 %v1446
        %v1448 = vpop.xlane.xlu0 %1447
        %vm1449 = vcmp.eq.f32.partialorder %v1445, %v1448
        %v1450 = vsel %vm1449, %v783, 8.0
        %v1451 = vsel %vm784, %v1450, inf
        %1452 = vmin.xlane.f32.xlu0 %v1451
        %v1453 = vpop.xlane.xlu0 %1452
        %vm1454 = vcmp.eq.f32.partialorder %v783, %v1453
        %v1455 = vsel %vm1454, 1, 0
        %v1456 = vcvt.s32.f32 %v1455
        %v1458 = vsel %vm784, %v1430, 0
        %v1461 = vsel %vm784, %v1443, 0
        %v1464 = vsel %vm784, %v1456, 0
        %1466 = vmatpush.msra.mxu0 0.0
        %1467 = vmatpush.msra.mxu0 0.0
        %1468 = vmatpush.msra.mxu0 0.0
        %1469 = vmatpush.msra.mxu0 0.0
        %1470 = vmatpush.msra.mxu0 0.0
        %1471 = vmatpush.msra.mxu0 0.0
        %1472 = vmatpush.msra.mxu0 0.0
        %1473 = vmatpush.msra.mxu0 0.0
        %1474 = vmatpush.msra.mxu0 0.0
        %1475 = vmatpush.msra.mxu0 0.0
        %1476 = vmatpush.msra.mxu0 0.0
        %1477 = vmatpush.msra.mxu0 0.0
        %1478 = vmatpush.msra.mxu0 0.0
        %1479 = vmatpush.msra.mxu0 0.0
        %1480 = vmatpush.msra.mxu0 0.0
        %1481 = vmatpush.msra.mxu0 %v1362
        %1482 = vmatmul.f32.gmra.mxu0 %v1458
        %v1483 = vpop.f32.mrf.mxu0
        %v1484 = vadd.f32 0.0, %v1483
        %1485 = vmatmul.f32.gmra.mxu0 %v1461
        %v1486 = vpop.f32.mrf.mxu0
        %v1487 = vadd.f32 0.0, %v1486
        %1488 = vmatmul.f32.gmra.mxu0 %v1464
        %v1489 = vpop.f32.mrf.mxu0
        %v1490 = vadd.f32 0.0, %v1489
        %1491 = vdwg.mxu0
        %v1492 = vsub.f32 %v1484, %v1362
        %v1493 = vsub.f32 %v1487, %v1362
        %v1494 = vsub.f32 %v1490, %v1362
        %v1495 = vpack.c.bf16 %v1362, %v1362
        %v1504 = vunpack.c.l.b16 %v1363
        %v1505 = vunpack.c.l.b16 %v1364
        %v1506 = vunpack.c.l.b16 %v1365
        %v1507 = vunpack.c.l.b16 %v1366
        %v1508 = vunpack.c.l.b16 %v1367
        %v1509 = vunpack.c.l.b16 %v1368
        %v1510 = vunpack.c.l.b16 %v1369
        %v1511 = vunpack.c.l.b16 %v1370
        %v1512 = vpack.c.b16 %v1505, %v1504
        %v1513 = vpack.c.b16 %v1507, %v1506
        %v1514 = vpack.c.b16 %v1509, %v1508
        %v1515 = vpack.c.b16 %v1511, %v1510
        %v1521 = vsel %vm1357, %v1495, 0
        %1523 = vmatpush.bf16.msra.mxu0 0
        %1524 = vmatpush.bf16.msra.mxu0 0
        %1525 = vmatpush.bf16.msra.mxu0 0
        %1526 = vmatpush.bf16.msra.mxu0 0
        %1527 = vmatpush.bf16.msra.mxu0 %v1515
        %1528 = vmatpush.bf16.msra.mxu0 %v1514
        %1529 = vmatpush.bf16.msra.mxu0 %v1513
        %1530 = vmatpush.bf16.msra.mxu0 %v1512
        %1531 = vmatmul.bf16.gmra.mxu0 %v1521
        %v1532 = vpop.f32.mrf.mxu0
        %v1533 = vadd.f32 0.0, %v1532
        %v1534 = vpop.f32.mrf.mxu0
        %1535 = vdwg.mxu0
        %v1536 = vpack.c.bf16 %v1493, %v1492
        %v1537 = vpack.c.bf16 %v1494, %v1494
        %v1546 = vunpack.c.l.b16 %v1371
        %v1547 = vunpack.c.l.b16 %v1372
        %v1548 = vunpack.c.l.b16 %v1373
        %v1549 = vunpack.c.l.b16 %v1374
        %v1550 = vunpack.c.l.b16 %v1375
        %v1551 = vunpack.c.l.b16 %v1376
        %v1552 = vunpack.c.l.b16 %v1377
        %v1553 = vunpack.c.l.b16 %v1378
        %v1554 = vpack.c.b16 %v1547, %v1546
        %v1555 = vpack.c.b16 %v1549, %v1548
        %v1556 = vpack.c.b16 %v1551, %v1550
        %v1557 = vpack.c.b16 %v1553, %v1552
        %v1563 = vsel %vm1357, %v1536, 0
        %v1566 = vsel %vm1357, %v1537, 0
        %1568 = vmatpush.bf16.msra.mxu0 0
        %1569 = vmatpush.bf16.msra.mxu0 0
        %1570 = vmatpush.bf16.msra.mxu0 0
        %1571 = vmatpush.bf16.msra.mxu0 0
        %1572 = vmatpush.bf16.msra.mxu0 %v1557
        %1573 = vmatpush.bf16.msra.mxu0 %v1556
        %1574 = vmatpush.bf16.msra.mxu0 %v1555
        %1575 = vmatpush.bf16.msra.mxu0 %v1554
        %1576 = vmatmul.bf16.gmra.mxu0 %v1563
        %v1577 = vpop.f32.mrf.mxu0
        %v1578 = vadd.f32 0.0, %v1577
        %v1579 = vpop.f32.mrf.mxu0
        %v1580 = vadd.f32 0.0, %v1579
        %1581 = vmatmul.bf16.gmra.mxu0 %v1566
        %v1582 = vpop.f32.mrf.mxu0
        %v1583 = vadd.f32 0.0, %v1582
        %v1584 = vpop.f32.mrf.mxu0
        %1585 = vdwg.mxu0
        %v1586 = vadd.f32 %v1578, %v1533
        %v1587 = vadd.f32 %v1580, %v1533
        %v1588 = vadd.f32 %v1583, %v1533
        %v1590 = vperm.slane %v1379, 0
        %v1592 = vadd.f32 %v1586, %v1590
        %v1593 = vadd.f32 %v1587, %v1590
        %v1594 = vadd.f32 %v1588, %v1590
        %v1595 = vmax.f32 %v1592, 0.0
        %v1596 = vmax.f32 %v1593, 0.0
        %v1597 = vmax.f32 %v1594, 0.0
        %v1598 = vmax.f32 %v1595, %v1596
        %v1599 = vmax.f32 %v1598, %v1597
        %v1600 = vld [vmem:[#allocation5] sm:$0xff]
        %v1601 = vld [vmem:[#allocation5 + $0x8] sm:$0xff]
        %v1602 = vld [vmem:[#allocation5 + $0x10] sm:$0xff]
        %v1603 = vld [vmem:[#allocation5 + $0x18] sm:$0xff]
        %v1604 = vld [vmem:[#allocation5 + $0x20] sm:$0xff]
        %v1605 = vld [vmem:[#allocation5 + $0x28] sm:$0xff]
        %v1606 = vld [vmem:[#allocation5 + $0x30] sm:$0xff]
        %v1607 = vld [vmem:[#allocation5 + $0x38] sm:$0xff]
        %v1608 = vld [vmem:[#allocation5 + $0x40] sm:$0xff]
        %v1609 = vld [vmem:[#allocation5 + $0x48] sm:$0xff]
        %v1610 = vld [vmem:[#allocation5 + $0x50] sm:$0xff]
        %v1611 = vld [vmem:[#allocation5 + $0x58] sm:$0xff]
        %v1612 = vld [vmem:[#allocation5 + $0x60] sm:$0xff]
        %v1613 = vld [vmem:[#allocation5 + $0x68] sm:$0xff]
        %v1614 = vld [vmem:[#allocation5 + $0x70] sm:$0xff]
        %v1615 = vld [vmem:[#allocation5 + $0x78] sm:$0xff]
        %v1616 = vld [vmem:[#allocation5 + $0x80] sm:$0xff]
        %v1617 = vld [vmem:[#allocation5 + $0x88] sm:$0xff]
        %v1618 = vld [vmem:[#allocation5 + $0x90] sm:$0xff]
        %v1619 = vld [vmem:[#allocation5 + $0x98] sm:$0xff]
        %v1620 = vld [vmem:[#allocation5 + $0xa0] sm:$0xff]
        %v1621 = vld [vmem:[#allocation5 + $0xa8] sm:$0xff]
        %v1622 = vld [vmem:[#allocation5 + $0xb0] sm:$0xff]
        %v1623 = vld [vmem:[#allocation5 + $0xb8] sm:$0xff]
        %v1624 = vld [vmem:[#allocation5 + $0xc0] sm:$0xff]
        %v1625 = vld [vmem:[#allocation5 + $0xc8] sm:$0xff]
        %v1626 = vld [vmem:[#allocation5 + $0xd0] sm:$0xff]
        %v1627 = vld [vmem:[#allocation5 + $0xd8] sm:$0xff]
        %v1628 = vld [vmem:[#allocation5 + $0xe0] sm:$0xff]
        %v1629 = vld [vmem:[#allocation5 + $0xe8] sm:$0xff]
        %v1630 = vld [vmem:[#allocation5 + $0xf0] sm:$0xff]
        %v1631 = vld [vmem:[#allocation5 + $0xf8] sm:$0xff]
        %v1632 = vld [vmem:[#allocation5 + $0x100] sm:$0xff]
        %v1633 = vld [vmem:[#allocation5 + $0x108] sm:$0xff]
        %v1634 = vld [vmem:[#allocation5 + $0x110] sm:$0xff]
        %v1635 = vld [vmem:[#allocation5 + $0x118] sm:$0xff]
        %v1636 = vld [vmem:[#allocation5 + $0x120] sm:$0xff]
        %v1637 = vld [vmem:[#allocation5 + $0x128] sm:$0xff]
        %v1638 = vld [vmem:[#allocation5 + $0x130] sm:$0xff]
        %v1639 = vld [vmem:[#allocation5 + $0x138] sm:$0xff]
        %v1640 = vld [vmem:[#allocation5 + $0x140] sm:$0xff]
        %v1641 = vld [vmem:[#allocation5 + $0x148] sm:$0xff]
        %v1642 = vld [vmem:[#allocation5 + $0x150] sm:$0xff]
        %v1643 = vld [vmem:[#allocation5 + $0x158] sm:$0xff]
        %v1644 = vld [vmem:[#allocation5 + $0x160] sm:$0xff]
        %v1645 = vld [vmem:[#allocation5 + $0x168] sm:$0xff]
        %v1646 = vld [vmem:[#allocation5 + $0x170] sm:$0xff]
        %v1647 = vld [vmem:[#allocation5 + $0x178] sm:$0xff]
        %v1648 = vld [vmem:[#allocation5 + $0x180] sm:$0xff]
        %v1649 = vld [vmem:[#allocation5 + $0x188] sm:$0xff]
        %v1650 = vld [vmem:[#allocation5 + $0x190] sm:$0xff]
        %v1651 = vld [vmem:[#allocation5 + $0x198] sm:$0xff]
        %v1652 = vld [vmem:[#allocation5 + $0x1a0] sm:$0xff]
        %v1653 = vld [vmem:[#allocation5 + $0x1a8] sm:$0xff]
        %v1654 = vld [vmem:[#allocation5 + $0x1b0] sm:$0xff]
        %v1655 = vld [vmem:[#allocation5 + $0x1b8] sm:$0xff]
        %v1656 = vld [vmem:[#allocation5 + $0x1c0] sm:$0xff]
        %v1657 = vld [vmem:[#allocation5 + $0x1c8] sm:$0xff]
        %v1658 = vld [vmem:[#allocation5 + $0x1d0] sm:$0xff]
        %v1659 = vld [vmem:[#allocation5 + $0x1d8] sm:$0xff]
        %v1660 = vld [vmem:[#allocation5 + $0x1e0] sm:$0xff]
        %v1661 = vld [vmem:[#allocation5 + $0x1e8] sm:$0xff]
        %v1662 = vld [vmem:[#allocation5 + $0x1f0] sm:$0xff]
        %v1663 = vld [vmem:[#allocation5 + $0x1f8] sm:$0xff]
        %v1664 = vpack.c.bf16 %v1599, %v1599
        %v1665 = vld [vmem:[%s12] sm:$0xff]
        %v1667 = vperm.slane %v1665, 0
        %v1668 = vperm.slane %v1665, 1
        %v1669 = vperm.slane %v1665, 2
        %v1670 = vperm.slane %v1665, 3
        %v1671 = vperm.slane %v1665, 4
        %v1672 = vperm.slane %v1665, 5
        %v1673 = vperm.slane %v1665, 6
        %v1674 = vperm.slane %v1665, 7
        %v1747 = vunpack.c.l.b16 %v1600
        %v1748 = vunpack.c.h.b16 %v1600
        %v1749 = vunpack.c.l.b16 %v1601
        %v1750 = vunpack.c.h.b16 %v1601
        %v1751 = vunpack.c.l.b16 %v1602
        %v1752 = vunpack.c.h.b16 %v1602
        %v1753 = vunpack.c.l.b16 %v1603
        %v1754 = vunpack.c.h.b16 %v1603
        %v1755 = vunpack.c.l.b16 %v1604
        %v1756 = vunpack.c.h.b16 %v1604
        %v1757 = vunpack.c.l.b16 %v1605
        %v1758 = vunpack.c.h.b16 %v1605
        %v1759 = vunpack.c.l.b16 %v1606
        %v1760 = vunpack.c.h.b16 %v1606
        %v1761 = vunpack.c.l.b16 %v1607
        %v1762 = vunpack.c.h.b16 %v1607
        %v1763 = vunpack.c.l.b16 %v1608
        %v1764 = vunpack.c.h.b16 %v1608
        %v1765 = vunpack.c.l.b16 %v1609
        %v1766 = vunpack.c.h.b16 %v1609
        %v1767 = vunpack.c.l.b16 %v1610
        %v1768 = vunpack.c.h.b16 %v1610
        %v1769 = vunpack.c.l.b16 %v1611
        %v1770 = vunpack.c.h.b16 %v1611
        %v1771 = vunpack.c.l.b16 %v1612
        %v1772 = vunpack.c.h.b16 %v1612
        %v1773 = vunpack.c.l.b16 %v1613
        %v1774 = vunpack.c.h.b16 %v1613
        %v1775 = vunpack.c.l.b16 %v1614
        %v1776 = vunpack.c.h.b16 %v1614
        %v1777 = vunpack.c.l.b16 %v1615
        %v1778 = vunpack.c.h.b16 %v1615
        %v1779 = vunpack.c.l.b16 %v1616
        %v1780 = vunpack.c.h.b16 %v1616
        %v1781 = vunpack.c.l.b16 %v1617
        %v1782 = vunpack.c.h.b16 %v1617
        %v1783 = vunpack.c.l.b16 %v1618
        %v1784 = vunpack.c.h.b16 %v1618
        %v1785 = vunpack.c.l.b16 %v1619
        %v1786 = vunpack.c.h.b16 %v1619
        %v1787 = vunpack.c.l.b16 %v1620
        %v1788 = vunpack.c.h.b16 %v1620
        %v1789 = vunpack.c.l.b16 %v1621
        %v1790 = vunpack.c.h.b16 %v1621
        %v1791 = vunpack.c.l.b16 %v1622
        %v1792 = vunpack.c.h.b16 %v1622
        %v1793 = vunpack.c.l.b16 %v1623
        %v1794 = vunpack.c.h.b16 %v1623
        %v1795 = vunpack.c.l.b16 %v1624
        %v1796 = vunpack.c.h.b16 %v1624
        %v1797 = vunpack.c.l.b16 %v1625
        %v1798 = vunpack.c.h.b16 %v1625
        %v1799 = vunpack.c.l.b16 %v1626
        %v1800 = vunpack.c.h.b16 %v1626
        %v1801 = vunpack.c.l.b16 %v1627
        %v1802 = vunpack.c.h.b16 %v1627
        %v1803 = vunpack.c.l.b16 %v1628
        %v1804 = vunpack.c.h.b16 %v1628
        %v1805 = vunpack.c.l.b16 %v1629
        %v1806 = vunpack.c.h.b16 %v1629
        %v1807 = vunpack.c.l.b16 %v1630
        %v1808 = vunpack.c.h.b16 %v1630
        %v1809 = vunpack.c.l.b16 %v1631
        %v1810 = vunpack.c.h.b16 %v1631
        %v1811 = vunpack.c.l.b16 %v1632
        %v1812 = vunpack.c.h.b16 %v1632
        %v1813 = vunpack.c.l.b16 %v1633
        %v1814 = vunpack.c.h.b16 %v1633
        %v1815 = vunpack.c.l.b16 %v1634
        %v1816 = vunpack.c.h.b16 %v1634
        %v1817 = vunpack.c.l.b16 %v1635
        %v1818 = vunpack.c.h.b16 %v1635
        %v1819 = vunpack.c.l.b16 %v1636
        %v1820 = vunpack.c.h.b16 %v1636
        %v1821 = vunpack.c.l.b16 %v1637
        %v1822 = vunpack.c.h.b16 %v1637
        %v1823 = vunpack.c.l.b16 %v1638
        %v1824 = vunpack.c.h.b16 %v1638
        %v1825 = vunpack.c.l.b16 %v1639
        %v1826 = vunpack.c.h.b16 %v1639
        %v1827 = vunpack.c.l.b16 %v1640
        %v1828 = vunpack.c.h.b16 %v1640
        %v1829 = vunpack.c.l.b16 %v1641
        %v1830 = vunpack.c.h.b16 %v1641
        %v1831 = vunpack.c.l.b16 %v1642
        %v1832 = vunpack.c.h.b16 %v1642
        %v1833 = vunpack.c.l.b16 %v1643
        %v1834 = vunpack.c.h.b16 %v1643
        %v1835 = vunpack.c.l.b16 %v1644
        %v1836 = vunpack.c.h.b16 %v1644
        %v1837 = vunpack.c.l.b16 %v1645
        %v1838 = vunpack.c.h.b16 %v1645
        %v1839 = vunpack.c.l.b16 %v1646
        %v1840 = vunpack.c.h.b16 %v1646
        %v1841 = vunpack.c.l.b16 %v1647
        %v1842 = vunpack.c.h.b16 %v1647
        %v1843 = vunpack.c.l.b16 %v1648
        %v1844 = vunpack.c.h.b16 %v1648
        %v1845 = vunpack.c.l.b16 %v1649
        %v1846 = vunpack.c.h.b16 %v1649
        %v1847 = vunpack.c.l.b16 %v1650
        %v1848 = vunpack.c.h.b16 %v1650
        %v1849 = vunpack.c.l.b16 %v1651
        %v1850 = vunpack.c.h.b16 %v1651
        %v1851 = vunpack.c.l.b16 %v1652
        %v1852 = vunpack.c.h.b16 %v1652
        %v1853 = vunpack.c.l.b16 %v1653
        %v1854 = vunpack.c.h.b16 %v1653
        %v1855 = vunpack.c.l.b16 %v1654
        %v1856 = vunpack.c.h.b16 %v1654
        %v1857 = vunpack.c.l.b16 %v1655
        %v1858 = vunpack.c.h.b16 %v1655
        %v1859 = vunpack.c.l.b16 %v1656
        %v1860 = vunpack.c.h.b16 %v1656
        %v1861 = vunpack.c.l.b16 %v1657
        %v1862 = vunpack.c.h.b16 %v1657
        %v1863 = vunpack.c.l.b16 %v1658
        %v1864 = vunpack.c.h.b16 %v1658
        %v1865 = vunpack.c.l.b16 %v1659
        %v1866 = vunpack.c.h.b16 %v1659
        %v1867 = vunpack.c.l.b16 %v1660
        %v1868 = vunpack.c.h.b16 %v1660
        %v1869 = vunpack.c.l.b16 %v1661
        %v1870 = vunpack.c.h.b16 %v1661
        %v1871 = vunpack.c.l.b16 %v1662
        %v1872 = vunpack.c.h.b16 %v1662
        %v1873 = vunpack.c.l.b16 %v1663
        %v1874 = vunpack.c.h.b16 %v1663
        %v1875 = vpack.c.b16 %v1755, %v1747
        %v1876 = vpack.c.b16 %v1756, %v1748
        %v1877 = vpack.c.b16 %v1757, %v1749
        %v1878 = vpack.c.b16 %v1758, %v1750
        %v1879 = vpack.c.b16 %v1759, %v1751
        %v1880 = vpack.c.b16 %v1760, %v1752
        %v1881 = vpack.c.b16 %v1761, %v1753
        %v1882 = vpack.c.b16 %v1762, %v1754
        %v1883 = vpack.c.b16 %v1771, %v1763
        %v1884 = vpack.c.b16 %v1772, %v1764
        %v1885 = vpack.c.b16 %v1773, %v1765
        %v1886 = vpack.c.b16 %v1774, %v1766
        %v1887 = vpack.c.b16 %v1775, %v1767
        %v1888 = vpack.c.b16 %v1776, %v1768
        %v1889 = vpack.c.b16 %v1777, %v1769
        %v1890 = vpack.c.b16 %v1778, %v1770
        %v1891 = vpack.c.b16 %v1787, %v1779
        %v1892 = vpack.c.b16 %v1788, %v1780
        %v1893 = vpack.c.b16 %v1789, %v1781
        %v1894 = vpack.c.b16 %v1790, %v1782
        %v1895 = vpack.c.b16 %v1791, %v1783
        %v1896 = vpack.c.b16 %v1792, %v1784
        %v1897 = vpack.c.b16 %v1793, %v1785
        %v1898 = vpack.c.b16 %v1794, %v1786
        %v1899 = vpack.c.b16 %v1803, %v1795
        %v1900 = vpack.c.b16 %v1804, %v1796
        %v1901 = vpack.c.b16 %v1805, %v1797
        %v1902 = vpack.c.b16 %v1806, %v1798
        %v1903 = vpack.c.b16 %v1807, %v1799
        %v1904 = vpack.c.b16 %v1808, %v1800
        %v1905 = vpack.c.b16 %v1809, %v1801
        %v1906 = vpack.c.b16 %v1810, %v1802
        %v1907 = vpack.c.b16 %v1819, %v1811
        %v1908 = vpack.c.b16 %v1820, %v1812
        %v1909 = vpack.c.b16 %v1821, %v1813
        %v1910 = vpack.c.b16 %v1822, %v1814
        %v1911 = vpack.c.b16 %v1823, %v1815
        %v1912 = vpack.c.b16 %v1824, %v1816
        %v1913 = vpack.c.b16 %v1825, %v1817
        %v1914 = vpack.c.b16 %v1826, %v1818
        %v1915 = vpack.c.b16 %v1835, %v1827
        %v1916 = vpack.c.b16 %v1836, %v1828
        %v1917 = vpack.c.b16 %v1837, %v1829
        %v1918 = vpack.c.b16 %v1838, %v1830
        %v1919 = vpack.c.b16 %v1839, %v1831
        %v1920 = vpack.c.b16 %v1840, %v1832
        %v1921 = vpack.c.b16 %v1841, %v1833
        %v1922 = vpack.c.b16 %v1842, %v1834
        %v1923 = vpack.c.b16 %v1851, %v1843
        %v1924 = vpack.c.b16 %v1852, %v1844
        %v1925 = vpack.c.b16 %v1853, %v1845
        %v1926 = vpack.c.b16 %v1854, %v1846
        %v1927 = vpack.c.b16 %v1855, %v1847
        %v1928 = vpack.c.b16 %v1856, %v1848
        %v1929 = vpack.c.b16 %v1857, %v1849
        %v1930 = vpack.c.b16 %v1858, %v1850
        %v1931 = vpack.c.b16 %v1867, %v1859
        %v1932 = vpack.c.b16 %v1868, %v1860
        %v1933 = vpack.c.b16 %v1869, %v1861
        %v1934 = vpack.c.b16 %v1870, %v1862
        %v1935 = vpack.c.b16 %v1871, %v1863
        %v1936 = vpack.c.b16 %v1872, %v1864
        %v1937 = vpack.c.b16 %v1873, %v1865
        %v1938 = vpack.c.b16 %v1874, %v1866
        %2003 = vmatpush.bf16.msra.mxu0 %v1931
        %2004 = vmatpush.bf16.msra.mxu0 %v1923
        %2005 = vmatpush.bf16.msra.mxu0 %v1915
        %2006 = vmatpush.bf16.msra.mxu0 %v1907
        %2007 = vmatpush.bf16.msra.mxu0 %v1899
        %2008 = vmatpush.bf16.msra.mxu0 %v1891
        %2009 = vmatpush.bf16.msra.mxu0 %v1883
        %2010 = vmatpush.bf16.msra.mxu0 %v1875
        %2011 = vmatmul.bf16.gmra.mxu0 %v1664
        %v2012 = vpop.f32.mrf.mxu0
        %v2013 = vadd.f32 %v1667, %v2012
        %v2014 = vpop.f32.mrf.mxu0
        %2015 = vdwg.mxu0
        %2016 = vmatpush.bf16.msra.mxu0 %v1932
        %2017 = vmatpush.bf16.msra.mxu0 %v1924
        %2018 = vmatpush.bf16.msra.mxu0 %v1916
        %2019 = vmatpush.bf16.msra.mxu0 %v1908
        %2020 = vmatpush.bf16.msra.mxu0 %v1900
        %2021 = vmatpush.bf16.msra.mxu0 %v1892
        %2022 = vmatpush.bf16.msra.mxu0 %v1884
        %2023 = vmatpush.bf16.msra.mxu0 %v1876
        %2024 = vmatmul.bf16.gmra.mxu0 %v1664
        %v2025 = vpop.f32.mrf.mxu0
        %v2026 = vadd.f32 %v1668, %v2025
        %v2027 = vpop.f32.mrf.mxu0
        %2028 = vdwg.mxu0
        %2029 = vmatpush.bf16.msra.mxu0 %v1933
        %2030 = vmatpush.bf16.msra.mxu0 %v1925
        %2031 = vmatpush.bf16.msra.mxu0 %v1917
        %2032 = vmatpush.bf16.msra.mxu0 %v1909
        %2033 = vmatpush.bf16.msra.mxu0 %v1901
        %2034 = vmatpush.bf16.msra.mxu0 %v1893
        %2035 = vmatpush.bf16.msra.mxu0 %v1885
        %2036 = vmatpush.bf16.msra.mxu0 %v1877
        %2037 = vmatmul.bf16.gmra.mxu0 %v1664
        %v2038 = vpop.f32.mrf.mxu0
        %v2039 = vadd.f32 %v1669, %v2038
        %v2040 = vpop.f32.mrf.mxu0
        %2041 = vdwg.mxu0
        %2042 = vmatpush.bf16.msra.mxu0 %v1934
        %2043 = vmatpush.bf16.msra.mxu0 %v1926
        %2044 = vmatpush.bf16.msra.mxu0 %v1918
        %2045 = vmatpush.bf16.msra.mxu0 %v1910
        %2046 = vmatpush.bf16.msra.mxu0 %v1902
        %2047 = vmatpush.bf16.msra.mxu0 %v1894
        %2048 = vmatpush.bf16.msra.mxu0 %v1886
        %2049 = vmatpush.bf16.msra.mxu0 %v1878
        %2050 = vmatmul.bf16.gmra.mxu0 %v1664
        %v2051 = vpop.f32.mrf.mxu0
        %v2052 = vadd.f32 %v1670, %v2051
        %v2053 = vpop.f32.mrf.mxu0
        %2054 = vdwg.mxu0
        %2055 = vmatpush.bf16.msra.mxu0 %v1935
        %2056 = vmatpush.bf16.msra.mxu0 %v1927
        %2057 = vmatpush.bf16.msra.mxu0 %v1919
        %2058 = vmatpush.bf16.msra.mxu0 %v1911
        %2059 = vmatpush.bf16.msra.mxu0 %v1903
        %2060 = vmatpush.bf16.msra.mxu0 %v1895
        %2061 = vmatpush.bf16.msra.mxu0 %v1887
        %2062 = vmatpush.bf16.msra.mxu0 %v1879
        %2063 = vmatmul.bf16.gmra.mxu0 %v1664
        %v2064 = vpop.f32.mrf.mxu0
        %v2065 = vadd.f32 %v1671, %v2064
        %v2066 = vpop.f32.mrf.mxu0
        %2067 = vdwg.mxu0
        %2068 = vmatpush.bf16.msra.mxu0 %v1936
        %2069 = vmatpush.bf16.msra.mxu0 %v1928
        %2070 = vmatpush.bf16.msra.mxu0 %v1920
        %2071 = vmatpush.bf16.msra.mxu0 %v1912
        %2072 = vmatpush.bf16.msra.mxu0 %v1904
        %2073 = vmatpush.bf16.msra.mxu0 %v1896
        %2074 = vmatpush.bf16.msra.mxu0 %v1888
        %2075 = vmatpush.bf16.msra.mxu0 %v1880
        %2076 = vmatmul.bf16.gmra.mxu0 %v1664
        %v2077 = vpop.f32.mrf.mxu0
        %v2078 = vadd.f32 %v1672, %v2077
        %v2079 = vpop.f32.mrf.mxu0
        %2080 = vdwg.mxu0
        %2081 = vmatpush.bf16.msra.mxu0 %v1937
        %2082 = vmatpush.bf16.msra.mxu0 %v1929
        %2083 = vmatpush.bf16.msra.mxu0 %v1921
        %2084 = vmatpush.bf16.msra.mxu0 %v1913
        %2085 = vmatpush.bf16.msra.mxu0 %v1905
        %2086 = vmatpush.bf16.msra.mxu0 %v1897
        %2087 = vmatpush.bf16.msra.mxu0 %v1889
        %2088 = vmatpush.bf16.msra.mxu0 %v1881
        %2089 = vmatmul.bf16.gmra.mxu0 %v1664
        %v2090 = vpop.f32.mrf.mxu0
        %v2091 = vadd.f32 %v1673, %v2090
        %v2092 = vpop.f32.mrf.mxu0
        %2093 = vdwg.mxu0
        %2094 = vmatpush.bf16.msra.mxu0 %v1938
        %2095 = vmatpush.bf16.msra.mxu0 %v1930
        %2096 = vmatpush.bf16.msra.mxu0 %v1922
        %2097 = vmatpush.bf16.msra.mxu0 %v1914
        %2098 = vmatpush.bf16.msra.mxu0 %v1906
        %2099 = vmatpush.bf16.msra.mxu0 %v1898
        %2100 = vmatpush.bf16.msra.mxu0 %v1890
        %2101 = vmatpush.bf16.msra.mxu0 %v1882
        %2102 = vmatmul.bf16.gmra.mxu0 %v1664
        %v2103 = vpop.f32.mrf.mxu0
        %v2104 = vadd.f32 %v1674, %v2103
        %v2105 = vpop.f32.mrf.mxu0
        %2106 = vdwg.mxu0
        %v2107 = vmax.f32 %v2013, 0.0
        %v2108 = vmax.f32 %v2026, 0.0
        %v2109 = vmax.f32 %v2039, 0.0
        %v2110 = vmax.f32 %v2052, 0.0
        %v2111 = vmax.f32 %v2065, 0.0
        %v2112 = vmax.f32 %v2078, 0.0
        %v2113 = vmax.f32 %v2091, 0.0
        %v2114 = vmax.f32 %v2104, 0.0
        %v2115 = vrot.slane %v2107, 4
        %v2116 = vadd.f32 %v2107, %v2115
        %v2117 = vrot.slane %v2116, 2
        %v2118 = vadd.f32 %v2116, %v2117
        %v2119 = vrot.slane %v2118, 1
        %v2120 = vadd.f32 %v2118, %v2119
        %v2121 = vrot.slane %v2108, 4
        %v2122 = vadd.f32 %v2108, %v2121
        %v2123 = vrot.slane %v2122, 2
        %v2124 = vadd.f32 %v2122, %v2123
        %v2125 = vrot.slane %v2124, 1
        %v2126 = vadd.f32 %v2124, %v2125
        %v2127 = vrot.slane %v2109, 4
        %v2128 = vadd.f32 %v2109, %v2127
        %v2129 = vrot.slane %v2128, 2
        %v2130 = vadd.f32 %v2128, %v2129
        %v2131 = vrot.slane %v2130, 1
        %v2132 = vadd.f32 %v2130, %v2131
        %v2133 = vrot.slane %v2110, 4
        %v2134 = vadd.f32 %v2110, %v2133
        %v2135 = vrot.slane %v2134, 2
        %v2136 = vadd.f32 %v2134, %v2135
        %v2137 = vrot.slane %v2136, 1
        %v2138 = vadd.f32 %v2136, %v2137
        %v2139 = vrot.slane %v2111, 4
        %v2140 = vadd.f32 %v2111, %v2139
        %v2141 = vrot.slane %v2140, 2
        %v2142 = vadd.f32 %v2140, %v2141
        %v2143 = vrot.slane %v2142, 1
        %v2144 = vadd.f32 %v2142, %v2143
        %v2145 = vrot.slane %v2112, 4
        %v2146 = vadd.f32 %v2112, %v2145
        %v2147 = vrot.slane %v2146, 2
        %v2148 = vadd.f32 %v2146, %v2147
        %v2149 = vrot.slane %v2148, 1
        %v2150 = vadd.f32 %v2148, %v2149
        %v2151 = vrot.slane %v2113, 4
        %v2152 = vadd.f32 %v2113, %v2151
        %v2153 = vrot.slane %v2152, 2
        %v2154 = vadd.f32 %v2152, %v2153
        %v2155 = vrot.slane %v2154, 1
        %v2156 = vadd.f32 %v2154, %v2155
        %v2157 = vrot.slane %v2114, 4
        %v2158 = vadd.f32 %v2114, %v2157
        %v2159 = vrot.slane %v2158, 2
        %v2160 = vadd.f32 %v2158, %v2159
        %v2161 = vrot.slane %v2160, 1
        %v2162 = vadd.f32 %v2160, %v2161
        %v2163 = vmul.f32 %v2120, 0.125
        %v2164 = vmul.f32 %v2126, 0.125
        %v2165 = vmul.f32 %v2132, 0.125
        %v2166 = vmul.f32 %v2138, 0.125
        %v2167 = vmul.f32 %v2144, 0.125
        %v2168 = vmul.f32 %v2150, 0.125
        %v2169 = vmul.f32 %v2156, 0.125
        %v2170 = vmul.f32 %v2162, 0.125
        %v2171 = vld [vmem:[#allocation7] sm:$0xff]
        %v2172 = vld [vmem:[#allocation7 + $0x8] sm:$0xff]
        %v2173 = vld [vmem:[#allocation7 + $0x10] sm:$0xff]
        %v2174 = vld [vmem:[#allocation7 + $0x18] sm:$0xff]
        %v2175 = vld [vmem:[#allocation7 + $0x20] sm:$0xff]
        %v2176 = vld [vmem:[#allocation7 + $0x28] sm:$0xff]
        %v2177 = vld [vmem:[#allocation7 + $0x30] sm:$0xff]
        %v2178 = vld [vmem:[#allocation7 + $0x38] sm:$0xff]
        %v2179 = vld [vmem:[#allocation7 + $0x40] sm:$0xff]
        %v2180 = vld [vmem:[#allocation7 + $0x48] sm:$0xff]
        %v2181 = vld [vmem:[#allocation7 + $0x50] sm:$0xff]
        %v2182 = vld [vmem:[#allocation7 + $0x58] sm:$0xff]
        %v2183 = vld [vmem:[#allocation7 + $0x60] sm:$0xff]
        %v2184 = vld [vmem:[#allocation7 + $0x68] sm:$0xff]
        %v2185 = vld [vmem:[#allocation7 + $0x70] sm:$0xff]
        %v2186 = vld [vmem:[#allocation7 + $0x78] sm:$0xff]
        %v2187 = vld [vmem:[#allocation7 + $0x80] sm:$0xff]
        %v2188 = vld [vmem:[#allocation7 + $0x88] sm:$0xff]
        %v2189 = vld [vmem:[#allocation7 + $0x90] sm:$0xff]
        %v2190 = vld [vmem:[#allocation7 + $0x98] sm:$0xff]
        %v2191 = vld [vmem:[#allocation7 + $0xa0] sm:$0xff]
        %v2192 = vld [vmem:[#allocation7 + $0xa8] sm:$0xff]
        %v2193 = vld [vmem:[#allocation7 + $0xb0] sm:$0xff]
        %v2194 = vld [vmem:[#allocation7 + $0xb8] sm:$0xff]
        %v2195 = vld [vmem:[#allocation7 + $0xc0] sm:$0xff]
        %v2196 = vld [vmem:[#allocation7 + $0xc8] sm:$0xff]
        %v2197 = vld [vmem:[#allocation7 + $0xd0] sm:$0xff]
        %v2198 = vld [vmem:[#allocation7 + $0xd8] sm:$0xff]
        %v2199 = vld [vmem:[#allocation7 + $0xe0] sm:$0xff]
        %v2200 = vld [vmem:[#allocation7 + $0xe8] sm:$0xff]
        %v2201 = vld [vmem:[#allocation7 + $0xf0] sm:$0xff]
        %v2202 = vld [vmem:[#allocation7 + $0xf8] sm:$0xff]
        %v2203 = vld [vmem:[#allocation7 + $0x100] sm:$0xff]
        %v2204 = vld [vmem:[#allocation7 + $0x108] sm:$0xff]
        %v2205 = vld [vmem:[#allocation7 + $0x110] sm:$0xff]
        %v2206 = vld [vmem:[#allocation7 + $0x118] sm:$0xff]
        %v2207 = vld [vmem:[#allocation7 + $0x120] sm:$0xff]
        %v2208 = vld [vmem:[#allocation7 + $0x128] sm:$0xff]
        %v2209 = vld [vmem:[#allocation7 + $0x130] sm:$0xff]
        %v2210 = vld [vmem:[#allocation7 + $0x138] sm:$0xff]
        %v2211 = vld [vmem:[#allocation7 + $0x140] sm:$0xff]
        %v2212 = vld [vmem:[#allocation7 + $0x148] sm:$0xff]
        %v2213 = vld [vmem:[#allocation7 + $0x150] sm:$0xff]
        %v2214 = vld [vmem:[#allocation7 + $0x158] sm:$0xff]
        %v2215 = vld [vmem:[#allocation7 + $0x160] sm:$0xff]
        %v2216 = vld [vmem:[#allocation7 + $0x168] sm:$0xff]
        %v2217 = vld [vmem:[#allocation7 + $0x170] sm:$0xff]
        %v2218 = vld [vmem:[#allocation7 + $0x178] sm:$0xff]
        %v2219 = vld [vmem:[#allocation7 + $0x180] sm:$0xff]
        %v2220 = vld [vmem:[#allocation7 + $0x188] sm:$0xff]
        %v2221 = vld [vmem:[#allocation7 + $0x190] sm:$0xff]
        %v2222 = vld [vmem:[#allocation7 + $0x198] sm:$0xff]
        %v2223 = vld [vmem:[#allocation7 + $0x1a0] sm:$0xff]
        %v2224 = vld [vmem:[#allocation7 + $0x1a8] sm:$0xff]
        %v2225 = vld [vmem:[#allocation7 + $0x1b0] sm:$0xff]
        %v2226 = vld [vmem:[#allocation7 + $0x1b8] sm:$0xff]
        %v2227 = vld [vmem:[#allocation7 + $0x1c0] sm:$0xff]
        %v2228 = vld [vmem:[#allocation7 + $0x1c8] sm:$0xff]
        %v2229 = vld [vmem:[#allocation7 + $0x1d0] sm:$0xff]
        %v2230 = vld [vmem:[#allocation7 + $0x1d8] sm:$0xff]
        %v2231 = vld [vmem:[#allocation7 + $0x1e0] sm:$0xff]
        %v2232 = vld [vmem:[#allocation7 + $0x1e8] sm:$0xff]
        %v2233 = vld [vmem:[#allocation7 + $0x1f0] sm:$0xff]
        %v2234 = vld [vmem:[#allocation7 + $0x1f8] sm:$0xff]
        %v2235 = vld [vmem:[#allocation7 + $0x200] sm:$0xff]
        %v2236 = vld [vmem:[#allocation7 + $0x208] sm:$0xff]
        %v2237 = vld [vmem:[#allocation7 + $0x210] sm:$0xff]
        %v2238 = vld [vmem:[#allocation7 + $0x218] sm:$0xff]
        %v2239 = vld [vmem:[#allocation7 + $0x220] sm:$0xff]
        %v2240 = vld [vmem:[#allocation7 + $0x228] sm:$0xff]
        %v2241 = vld [vmem:[#allocation7 + $0x230] sm:$0xff]
        %v2242 = vld [vmem:[#allocation7 + $0x238] sm:$0xff]
        %v2243 = vld [vmem:[#allocation7 + $0x240] sm:$0xff]
        %v2244 = vld [vmem:[#allocation7 + $0x248] sm:$0xff]
        %v2245 = vld [vmem:[#allocation7 + $0x250] sm:$0xff]
        %v2246 = vld [vmem:[#allocation7 + $0x258] sm:$0xff]
        %v2247 = vld [vmem:[#allocation7 + $0x260] sm:$0xff]
        %v2248 = vld [vmem:[#allocation7 + $0x268] sm:$0xff]
        %v2249 = vld [vmem:[#allocation7 + $0x270] sm:$0xff]
        %v2250 = vld [vmem:[#allocation7 + $0x278] sm:$0xff]
        %v2251 = vld [vmem:[#allocation7 + $0x280] sm:$0xff]
        %v2252 = vld [vmem:[#allocation7 + $0x288] sm:$0xff]
        %v2253 = vld [vmem:[#allocation7 + $0x290] sm:$0xff]
        %v2254 = vld [vmem:[#allocation7 + $0x298] sm:$0xff]
        %v2255 = vld [vmem:[#allocation7 + $0x2a0] sm:$0xff]
        %v2256 = vld [vmem:[#allocation7 + $0x2a8] sm:$0xff]
        %v2257 = vld [vmem:[#allocation7 + $0x2b0] sm:$0xff]
        %v2258 = vld [vmem:[#allocation7 + $0x2b8] sm:$0xff]
        %v2259 = vld [vmem:[#allocation7 + $0x2c0] sm:$0xff]
        %v2260 = vld [vmem:[#allocation7 + $0x2c8] sm:$0xff]
        %v2261 = vld [vmem:[#allocation7 + $0x2d0] sm:$0xff]
        %v2262 = vld [vmem:[#allocation7 + $0x2d8] sm:$0xff]
        %v2263 = vld [vmem:[#allocation7 + $0x2e0] sm:$0xff]
        %v2264 = vld [vmem:[#allocation7 + $0x2e8] sm:$0xff]
        %v2265 = vld [vmem:[#allocation7 + $0x2f0] sm:$0xff]
        %v2266 = vld [vmem:[#allocation7 + $0x2f8] sm:$0xff]
        %v2267 = vld [vmem:[#allocation7 + $0x300] sm:$0xff]
        %v2268 = vld [vmem:[#allocation7 + $0x308] sm:$0xff]
        %v2269 = vld [vmem:[#allocation7 + $0x310] sm:$0xff]
        %v2270 = vld [vmem:[#allocation7 + $0x318] sm:$0xff]
        %v2271 = vld [vmem:[#allocation7 + $0x320] sm:$0xff]
        %v2272 = vld [vmem:[#allocation7 + $0x328] sm:$0xff]
        %v2273 = vld [vmem:[#allocation7 + $0x330] sm:$0xff]
        %v2274 = vld [vmem:[#allocation7 + $0x338] sm:$0xff]
        %v2275 = vld [vmem:[#allocation7 + $0x340] sm:$0xff]
        %v2276 = vld [vmem:[#allocation7 + $0x348] sm:$0xff]
        %v2277 = vld [vmem:[#allocation7 + $0x350] sm:$0xff]
        %v2278 = vld [vmem:[#allocation7 + $0x358] sm:$0xff]
        %v2279 = vld [vmem:[#allocation7 + $0x360] sm:$0xff]
        %v2280 = vld [vmem:[#allocation7 + $0x368] sm:$0xff]
        %v2281 = vld [vmem:[#allocation7 + $0x370] sm:$0xff]
        %v2282 = vld [vmem:[#allocation7 + $0x378] sm:$0xff]
        %v2283 = vld [vmem:[#allocation7 + $0x380] sm:$0xff]
        %v2284 = vld [vmem:[#allocation7 + $0x388] sm:$0xff]
        %v2285 = vld [vmem:[#allocation7 + $0x390] sm:$0xff]
        %v2286 = vld [vmem:[#allocation7 + $0x398] sm:$0xff]
        %v2287 = vld [vmem:[#allocation7 + $0x3a0] sm:$0xff]
        %v2288 = vld [vmem:[#allocation7 + $0x3a8] sm:$0xff]
        %v2289 = vld [vmem:[#allocation7 + $0x3b0] sm:$0xff]
        %v2290 = vld [vmem:[#allocation7 + $0x3b8] sm:$0xff]
        %v2291 = vld [vmem:[#allocation7 + $0x3c0] sm:$0xff]
        %v2292 = vld [vmem:[#allocation7 + $0x3c8] sm:$0xff]
        %v2293 = vld [vmem:[#allocation7 + $0x3d0] sm:$0xff]
        %v2294 = vld [vmem:[#allocation7 + $0x3d8] sm:$0xff]
        %v2295 = vld [vmem:[#allocation7 + $0x3e0] sm:$0xff]
        %v2296 = vld [vmem:[#allocation7 + $0x3e8] sm:$0xff]
        %v2297 = vld [vmem:[#allocation7 + $0x3f0] sm:$0xff]
        %v2298 = vld [vmem:[#allocation7 + $0x3f8] sm:$0xff]
        %v2299 = vld [vmem:[#allocation7 + $0x400] sm:$0xff]
        %v2300 = vld [vmem:[#allocation7 + $0x408] sm:$0xff]
        %v2301 = vld [vmem:[#allocation7 + $0x410] sm:$0xff]
        %v2302 = vld [vmem:[#allocation7 + $0x418] sm:$0xff]
        %v2303 = vld [vmem:[#allocation7 + $0x420] sm:$0xff]
        %v2304 = vld [vmem:[#allocation7 + $0x428] sm:$0xff]
        %v2305 = vld [vmem:[#allocation7 + $0x430] sm:$0xff]
        %v2306 = vld [vmem:[#allocation7 + $0x438] sm:$0xff]
        %v2307 = vld [vmem:[#allocation7 + $0x440] sm:$0xff]
        %v2308 = vld [vmem:[#allocation7 + $0x448] sm:$0xff]
        %v2309 = vld [vmem:[#allocation7 + $0x450] sm:$0xff]
        %v2310 = vld [vmem:[#allocation7 + $0x458] sm:$0xff]
        %v2311 = vld [vmem:[#allocation7 + $0x460] sm:$0xff]
        %v2312 = vld [vmem:[#allocation7 + $0x468] sm:$0xff]
        %v2313 = vld [vmem:[#allocation7 + $0x470] sm:$0xff]
        %v2314 = vld [vmem:[#allocation7 + $0x478] sm:$0xff]
        %v2315 = vld [vmem:[#allocation7 + $0x480] sm:$0xff]
        %v2316 = vld [vmem:[#allocation7 + $0x488] sm:$0xff]
        %v2317 = vld [vmem:[#allocation7 + $0x490] sm:$0xff]
        %v2318 = vld [vmem:[#allocation7 + $0x498] sm:$0xff]
        %v2319 = vld [vmem:[#allocation7 + $0x4a0] sm:$0xff]
        %v2320 = vld [vmem:[#allocation7 + $0x4a8] sm:$0xff]
        %v2321 = vld [vmem:[#allocation7 + $0x4b0] sm:$0xff]
        %v2322 = vld [vmem:[#allocation7 + $0x4b8] sm:$0xff]
        %v2323 = vld [vmem:[#allocation7 + $0x4c0] sm:$0xff]
        %v2324 = vld [vmem:[#allocation7 + $0x4c8] sm:$0xff]
        %v2325 = vld [vmem:[#allocation7 + $0x4d0] sm:$0xff]
        %v2326 = vld [vmem:[#allocation7 + $0x4d8] sm:$0xff]
        %v2327 = vld [vmem:[#allocation7 + $0x4e0] sm:$0xff]
        %v2328 = vld [vmem:[#allocation7 + $0x4e8] sm:$0xff]
        %v2329 = vld [vmem:[#allocation7 + $0x4f0] sm:$0xff]
        %v2330 = vld [vmem:[#allocation7 + $0x4f8] sm:$0xff]
        %v2331 = vld [vmem:[#allocation7 + $0x500] sm:$0xff]
        %v2332 = vld [vmem:[#allocation7 + $0x508] sm:$0xff]
        %v2333 = vld [vmem:[#allocation7 + $0x510] sm:$0xff]
        %v2334 = vld [vmem:[#allocation7 + $0x518] sm:$0xff]
        %v2335 = vld [vmem:[#allocation7 + $0x520] sm:$0xff]
        %v2336 = vld [vmem:[#allocation7 + $0x528] sm:$0xff]
        %v2337 = vld [vmem:[#allocation7 + $0x530] sm:$0xff]
        %v2338 = vld [vmem:[#allocation7 + $0x538] sm:$0xff]
        %v2339 = vld [vmem:[#allocation7 + $0x540] sm:$0xff]
        %v2340 = vld [vmem:[#allocation7 + $0x548] sm:$0xff]
        %v2341 = vld [vmem:[#allocation7 + $0x550] sm:$0xff]
        %v2342 = vld [vmem:[#allocation7 + $0x558] sm:$0xff]
        %v2343 = vld [vmem:[#allocation7 + $0x560] sm:$0xff]
        %v2344 = vld [vmem:[#allocation7 + $0x568] sm:$0xff]
        %v2345 = vld [vmem:[#allocation7 + $0x570] sm:$0xff]
        %v2346 = vld [vmem:[#allocation7 + $0x578] sm:$0xff]
        %v2347 = vld [vmem:[#allocation7 + $0x580] sm:$0xff]
        %v2348 = vld [vmem:[#allocation7 + $0x588] sm:$0xff]
        %v2349 = vld [vmem:[#allocation7 + $0x590] sm:$0xff]
        %v2350 = vld [vmem:[#allocation7 + $0x598] sm:$0xff]
        %v2351 = vld [vmem:[#allocation7 + $0x5a0] sm:$0xff]
        %v2352 = vld [vmem:[#allocation7 + $0x5a8] sm:$0xff]
        %v2353 = vld [vmem:[#allocation7 + $0x5b0] sm:$0xff]
        %v2354 = vld [vmem:[#allocation7 + $0x5b8] sm:$0xff]
        %v2355 = vld [vmem:[#allocation7 + $0x5c0] sm:$0xff]
        %v2356 = vld [vmem:[#allocation7 + $0x5c8] sm:$0xff]
        %v2357 = vld [vmem:[#allocation7 + $0x5d0] sm:$0xff]
        %v2358 = vld [vmem:[#allocation7 + $0x5d8] sm:$0xff]
        %v2359 = vld [vmem:[#allocation7 + $0x5e0] sm:$0xff]
        %v2360 = vld [vmem:[#allocation7 + $0x5e8] sm:$0xff]
        %v2361 = vld [vmem:[#allocation7 + $0x5f0] sm:$0xff]
        %v2362 = vld [vmem:[#allocation7 + $0x5f8] sm:$0xff]
        %v2363 = vld [vmem:[#allocation7 + $0x600] sm:$0xff]
        %v2364 = vld [vmem:[#allocation7 + $0x608] sm:$0xff]
        %v2365 = vld [vmem:[#allocation7 + $0x610] sm:$0xff]
        %v2366 = vld [vmem:[#allocation7 + $0x618] sm:$0xff]
        %v2367 = vld [vmem:[#allocation7 + $0x620] sm:$0xff]
        %v2368 = vld [vmem:[#allocation7 + $0x628] sm:$0xff]
        %v2369 = vld [vmem:[#allocation7 + $0x630] sm:$0xff]
        %v2370 = vld [vmem:[#allocation7 + $0x638] sm:$0xff]
        %v2371 = vld [vmem:[#allocation7 + $0x640] sm:$0xff]
        %v2372 = vld [vmem:[#allocation7 + $0x648] sm:$0xff]
        %v2373 = vld [vmem:[#allocation7 + $0x650] sm:$0xff]
        %v2374 = vld [vmem:[#allocation7 + $0x658] sm:$0xff]
        %v2375 = vld [vmem:[#allocation7 + $0x660] sm:$0xff]
        %v2376 = vld [vmem:[#allocation7 + $0x668] sm:$0xff]
        %v2377 = vld [vmem:[#allocation7 + $0x670] sm:$0xff]
        %v2378 = vld [vmem:[#allocation7 + $0x678] sm:$0xff]
        %v2379 = vld [vmem:[#allocation7 + $0x680] sm:$0xff]
        %v2380 = vld [vmem:[#allocation7 + $0x688] sm:$0xff]
        %v2381 = vld [vmem:[#allocation7 + $0x690] sm:$0xff]
        %v2382 = vld [vmem:[#allocation7 + $0x698] sm:$0xff]
        %v2383 = vld [vmem:[#allocation7 + $0x6a0] sm:$0xff]
        %v2384 = vld [vmem:[#allocation7 + $0x6a8] sm:$0xff]
        %v2385 = vld [vmem:[#allocation7 + $0x6b0] sm:$0xff]
        %v2386 = vld [vmem:[#allocation7 + $0x6b8] sm:$0xff]
        %v2387 = vld [vmem:[#allocation7 + $0x6c0] sm:$0xff]
        %v2388 = vld [vmem:[#allocation7 + $0x6c8] sm:$0xff]
        %v2389 = vld [vmem:[#allocation7 + $0x6d0] sm:$0xff]
        %v2390 = vld [vmem:[#allocation7 + $0x6d8] sm:$0xff]
        %v2391 = vld [vmem:[#allocation7 + $0x6e0] sm:$0xff]
        %v2392 = vld [vmem:[#allocation7 + $0x6e8] sm:$0xff]
        %v2393 = vld [vmem:[#allocation7 + $0x6f0] sm:$0xff]
        %v2394 = vld [vmem:[#allocation7 + $0x6f8] sm:$0xff]
        %v2395 = vld [vmem:[#allocation7 + $0x700] sm:$0xff]
        %v2396 = vld [vmem:[#allocation7 + $0x708] sm:$0xff]
        %v2397 = vld [vmem:[#allocation7 + $0x710] sm:$0xff]
        %v2398 = vld [vmem:[#allocation7 + $0x718] sm:$0xff]
        %v2399 = vld [vmem:[#allocation7 + $0x720] sm:$0xff]
        %v2400 = vld [vmem:[#allocation7 + $0x728] sm:$0xff]
        %v2401 = vld [vmem:[#allocation7 + $0x730] sm:$0xff]
        %v2402 = vld [vmem:[#allocation7 + $0x738] sm:$0xff]
        %v2403 = vld [vmem:[#allocation7 + $0x740] sm:$0xff]
        %v2404 = vld [vmem:[#allocation7 + $0x748] sm:$0xff]
        %v2405 = vld [vmem:[#allocation7 + $0x750] sm:$0xff]
        %v2406 = vld [vmem:[#allocation7 + $0x758] sm:$0xff]
        %v2407 = vld [vmem:[#allocation7 + $0x760] sm:$0xff]
        %v2408 = vld [vmem:[#allocation7 + $0x768] sm:$0xff]
        %v2409 = vld [vmem:[#allocation7 + $0x770] sm:$0xff]
        %v2410 = vld [vmem:[#allocation7 + $0x778] sm:$0xff]
        %v2411 = vld [vmem:[#allocation7 + $0x780] sm:$0xff]
        %v2412 = vld [vmem:[#allocation7 + $0x788] sm:$0xff]
        %v2413 = vld [vmem:[#allocation7 + $0x790] sm:$0xff]
        %v2414 = vld [vmem:[#allocation7 + $0x798] sm:$0xff]
        %v2415 = vld [vmem:[#allocation7 + $0x7a0] sm:$0xff]
        %v2416 = vld [vmem:[#allocation7 + $0x7a8] sm:$0xff]
        %v2417 = vld [vmem:[#allocation7 + $0x7b0] sm:$0xff]
        %v2418 = vld [vmem:[#allocation7 + $0x7b8] sm:$0xff]
        %v2419 = vld [vmem:[#allocation7 + $0x7c0] sm:$0xff]
        %v2420 = vld [vmem:[#allocation7 + $0x7c8] sm:$0xff]
        %v2421 = vld [vmem:[#allocation7 + $0x7d0] sm:$0xff]
        %v2422 = vld [vmem:[#allocation7 + $0x7d8] sm:$0xff]
        %v2423 = vld [vmem:[#allocation7 + $0x7e0] sm:$0xff]
        %v2424 = vld [vmem:[#allocation7 + $0x7e8] sm:$0xff]
        %v2425 = vld [vmem:[#allocation7 + $0x7f0] sm:$0xff]
        %v2426 = vld [vmem:[#allocation7 + $0x7f8] sm:$0xff]
        %v2427 = vpack.c.bf16 %v2163, %v2163
        %v2428 = vpack.c.bf16 %v2164, %v2164
        %v2429 = vpack.c.bf16 %v2165, %v2165
        %v2430 = vpack.c.bf16 %v2166, %v2166
        %v2431 = vpack.c.bf16 %v2167, %v2167
        %v2432 = vpack.c.bf16 %v2168, %v2168
        %v2433 = vpack.c.bf16 %v2169, %v2169
        %v2434 = vpack.c.bf16 %v2170, %v2170
        %v2435 = vld [vmem:[%s14] sm:$0xf]
        %v2692 = vunpack.c.l.b16 %v2171
        %v2693 = vunpack.c.h.b16 %v2171
        %v2694 = vunpack.c.l.b16 %v2172
        %v2695 = vunpack.c.h.b16 %v2172
        %v2696 = vunpack.c.l.b16 %v2173
        %v2697 = vunpack.c.h.b16 %v2173
        %v2698 = vunpack.c.l.b16 %v2174
        %v2699 = vunpack.c.h.b16 %v2174
        %v2700 = vunpack.c.l.b16 %v2175
        %v2701 = vunpack.c.h.b16 %v2175
        %v2702 = vunpack.c.l.b16 %v2176
        %v2703 = vunpack.c.h.b16 %v2176
        %v2704 = vunpack.c.l.b16 %v2177
        %v2705 = vunpack.c.h.b16 %v2177
        %v2706 = vunpack.c.l.b16 %v2178
        %v2707 = vunpack.c.h.b16 %v2178
        %v2708 = vunpack.c.l.b16 %v2179
        %v2709 = vunpack.c.h.b16 %v2179
        %v2710 = vunpack.c.l.b16 %v2180
        %v2711 = vunpack.c.h.b16 %v2180
        %v2712 = vunpack.c.l.b16 %v2181
        %v2713 = vunpack.c.h.b16 %v2181
        %v2714 = vunpack.c.l.b16 %v2182
        %v2715 = vunpack.c.h.b16 %v2182
        %v2716 = vunpack.c.l.b16 %v2183
        %v2717 = vunpack.c.h.b16 %v2183
        %v2718 = vunpack.c.l.b16 %v2184
        %v2719 = vunpack.c.h.b16 %v2184
        %v2720 = vunpack.c.l.b16 %v2185
        %v2721 = vunpack.c.h.b16 %v2185
        %v2722 = vunpack.c.l.b16 %v2186
        %v2723 = vunpack.c.h.b16 %v2186
        %v2724 = vunpack.c.l.b16 %v2187
        %v2725 = vunpack.c.h.b16 %v2187
        %v2726 = vunpack.c.l.b16 %v2188
        %v2727 = vunpack.c.h.b16 %v2188
        %v2728 = vunpack.c.l.b16 %v2189
        %v2729 = vunpack.c.h.b16 %v2189
        %v2730 = vunpack.c.l.b16 %v2190
        %v2731 = vunpack.c.h.b16 %v2190
        %v2732 = vunpack.c.l.b16 %v2191
        %v2733 = vunpack.c.h.b16 %v2191
        %v2734 = vunpack.c.l.b16 %v2192
        %v2735 = vunpack.c.h.b16 %v2192
        %v2736 = vunpack.c.l.b16 %v2193
        %v2737 = vunpack.c.h.b16 %v2193
        %v2738 = vunpack.c.l.b16 %v2194
        %v2739 = vunpack.c.h.b16 %v2194
        %v2740 = vunpack.c.l.b16 %v2195
        %v2741 = vunpack.c.h.b16 %v2195
        %v2742 = vunpack.c.l.b16 %v2196
        %v2743 = vunpack.c.h.b16 %v2196
        %v2744 = vunpack.c.l.b16 %v2197
        %v2745 = vunpack.c.h.b16 %v2197
        %v2746 = vunpack.c.l.b16 %v2198
        %v2747 = vunpack.c.h.b16 %v2198
        %v2748 = vunpack.c.l.b16 %v2199
        %v2749 = vunpack.c.h.b16 %v2199
        %v2750 = vunpack.c.l.b16 %v2200
        %v2751 = vunpack.c.h.b16 %v2200
        %v2752 = vunpack.c.l.b16 %v2201
        %v2753 = vunpack.c.h.b16 %v2201
        %v2754 = vunpack.c.l.b16 %v2202
        %v2755 = vunpack.c.h.b16 %v2202
        %v2756 = vunpack.c.l.b16 %v2203
        %v2757 = vunpack.c.h.b16 %v2203
        %v2758 = vunpack.c.l.b16 %v2204
        %v2759 = vunpack.c.h.b16 %v2204
        %v2760 = vunpack.c.l.b16 %v2205
        %v2761 = vunpack.c.h.b16 %v2205
        %v2762 = vunpack.c.l.b16 %v2206
        %v2763 = vunpack.c.h.b16 %v2206
        %v2764 = vunpack.c.l.b16 %v2207
        %v2765 = vunpack.c.h.b16 %v2207
        %v2766 = vunpack.c.l.b16 %v2208
        %v2767 = vunpack.c.h.b16 %v2208
        %v2768 = vunpack.c.l.b16 %v2209
        %v2769 = vunpack.c.h.b16 %v2209
        %v2770 = vunpack.c.l.b16 %v2210
        %v2771 = vunpack.c.h.b16 %v2210
        %v2772 = vunpack.c.l.b16 %v2211
        %v2773 = vunpack.c.h.b16 %v2211
        %v2774 = vunpack.c.l.b16 %v2212
        %v2775 = vunpack.c.h.b16 %v2212
        %v2776 = vunpack.c.l.b16 %v2213
        %v2777 = vunpack.c.h.b16 %v2213
        %v2778 = vunpack.c.l.b16 %v2214
        %v2779 = vunpack.c.h.b16 %v2214
        %v2780 = vunpack.c.l.b16 %v2215
        %v2781 = vunpack.c.h.b16 %v2215
        %v2782 = vunpack.c.l.b16 %v2216
        %v2783 = vunpack.c.h.b16 %v2216
        %v2784 = vunpack.c.l.b16 %v2217
        %v2785 = vunpack.c.h.b16 %v2217
        %v2786 = vunpack.c.l.b16 %v2218
        %v2787 = vunpack.c.h.b16 %v2218
        %v2788 = vunpack.c.l.b16 %v2219
        %v2789 = vunpack.c.h.b16 %v2219
        %v2790 = vunpack.c.l.b16 %v2220
        %v2791 = vunpack.c.h.b16 %v2220
        %v2792 = vunpack.c.l.b16 %v2221
        %v2793 = vunpack.c.h.b16 %v2221
        %v2794 = vunpack.c.l.b16 %v2222
        %v2795 = vunpack.c.h.b16 %v2222
        %v2796 = vunpack.c.l.b16 %v2223
        %v2797 = vunpack.c.h.b16 %v2223
        %v2798 = vunpack.c.l.b16 %v2224
        %v2799 = vunpack.c.h.b16 %v2224
        %v2800 = vunpack.c.l.b16 %v2225
        %v2801 = vunpack.c.h.b16 %v2225
        %v2802 = vunpack.c.l.b16 %v2226
        %v2803 = vunpack.c.h.b16 %v2226
        %v2804 = vunpack.c.l.b16 %v2227
        %v2805 = vunpack.c.h.b16 %v2227
        %v2806 = vunpack.c.l.b16 %v2228
        %v2807 = vunpack.c.h.b16 %v2228
        %v2808 = vunpack.c.l.b16 %v2229
        %v2809 = vunpack.c.h.b16 %v2229
        %v2810 = vunpack.c.l.b16 %v2230
        %v2811 = vunpack.c.h.b16 %v2230
        %v2812 = vunpack.c.l.b16 %v2231
        %v2813 = vunpack.c.h.b16 %v2231
        %v2814 = vunpack.c.l.b16 %v2232
        %v2815 = vunpack.c.h.b16 %v2232
        %v2816 = vunpack.c.l.b16 %v2233
        %v2817 = vunpack.c.h.b16 %v2233
        %v2818 = vunpack.c.l.b16 %v2234
        %v2819 = vunpack.c.h.b16 %v2234
        %v2820 = vunpack.c.l.b16 %v2235
        %v2821 = vunpack.c.h.b16 %v2235
        %v2822 = vunpack.c.l.b16 %v2236
        %v2823 = vunpack.c.h.b16 %v2236
        %v2824 = vunpack.c.l.b16 %v2237
        %v2825 = vunpack.c.h.b16 %v2237
        %v2826 = vunpack.c.l.b16 %v2238
        %v2827 = vunpack.c.h.b16 %v2238
        %v2828 = vunpack.c.l.b16 %v2239
        %v2829 = vunpack.c.h.b16 %v2239
        %v2830 = vunpack.c.l.b16 %v2240
        %v2831 = vunpack.c.h.b16 %v2240
        %v2832 = vunpack.c.l.b16 %v2241
        %v2833 = vunpack.c.h.b16 %v2241
        %v2834 = vunpack.c.l.b16 %v2242
        %v2835 = vunpack.c.h.b16 %v2242
        %v2836 = vunpack.c.l.b16 %v2243
        %v2837 = vunpack.c.h.b16 %v2243
        %v2838 = vunpack.c.l.b16 %v2244
        %v2839 = vunpack.c.h.b16 %v2244
        %v2840 = vunpack.c.l.b16 %v2245
        %v2841 = vunpack.c.h.b16 %v2245
        %v2842 = vunpack.c.l.b16 %v2246
        %v2843 = vunpack.c.h.b16 %v2246
        %v2844 = vunpack.c.l.b16 %v2247
        %v2845 = vunpack.c.h.b16 %v2247
        %v2846 = vunpack.c.l.b16 %v2248
        %v2847 = vunpack.c.h.b16 %v2248
        %v2848 = vunpack.c.l.b16 %v2249
        %v2849 = vunpack.c.h.b16 %v2249
        %v2850 = vunpack.c.l.b16 %v2250
        %v2851 = vunpack.c.h.b16 %v2250
        %v2852 = vunpack.c.l.b16 %v2251
        %v2853 = vunpack.c.h.b16 %v2251
        %v2854 = vunpack.c.l.b16 %v2252
        %v2855 = vunpack.c.h.b16 %v2252
        %v2856 = vunpack.c.l.b16 %v2253
        %v2857 = vunpack.c.h.b16 %v2253
        %v2858 = vunpack.c.l.b16 %v2254
        %v2859 = vunpack.c.h.b16 %v2254
        %v2860 = vunpack.c.l.b16 %v2255
        %v2861 = vunpack.c.h.b16 %v2255
        %v2862 = vunpack.c.l.b16 %v2256
        %v2863 = vunpack.c.h.b16 %v2256
        %v2864 = vunpack.c.l.b16 %v2257
        %v2865 = vunpack.c.h.b16 %v2257
        %v2866 = vunpack.c.l.b16 %v2258
        %v2867 = vunpack.c.h.b16 %v2258
        %v2868 = vunpack.c.l.b16 %v2259
        %v2869 = vunpack.c.h.b16 %v2259
        %v2870 = vunpack.c.l.b16 %v2260
        %v2871 = vunpack.c.h.b16 %v2260
        %v2872 = vunpack.c.l.b16 %v2261
        %v2873 = vunpack.c.h.b16 %v2261
        %v2874 = vunpack.c.l.b16 %v2262
        %v2875 = vunpack.c.h.b16 %v2262
        %v2876 = vunpack.c.l.b16 %v2263
        %v2877 = vunpack.c.h.b16 %v2263
        %v2878 = vunpack.c.l.b16 %v2264
        %v2879 = vunpack.c.h.b16 %v2264
        %v2880 = vunpack.c.l.b16 %v2265
        %v2881 = vunpack.c.h.b16 %v2265
        %v2882 = vunpack.c.l.b16 %v2266
        %v2883 = vunpack.c.h.b16 %v2266
        %v2884 = vunpack.c.l.b16 %v2267
        %v2885 = vunpack.c.h.b16 %v2267
        %v2886 = vunpack.c.l.b16 %v2268
        %v2887 = vunpack.c.h.b16 %v2268
        %v2888 = vunpack.c.l.b16 %v2269
        %v2889 = vunpack.c.h.b16 %v2269
        %v2890 = vunpack.c.l.b16 %v2270
        %v2891 = vunpack.c.h.b16 %v2270
        %v2892 = vunpack.c.l.b16 %v2271
        %v2893 = vunpack.c.h.b16 %v2271
        %v2894 = vunpack.c.l.b16 %v2272
        %v2895 = vunpack.c.h.b16 %v2272
        %v2896 = vunpack.c.l.b16 %v2273
        %v2897 = vunpack.c.h.b16 %v2273
        %v2898 = vunpack.c.l.b16 %v2274
        %v2899 = vunpack.c.h.b16 %v2274
        %v2900 = vunpack.c.l.b16 %v2275
        %v2901 = vunpack.c.h.b16 %v2275
        %v2902 = vunpack.c.l.b16 %v2276
        %v2903 = vunpack.c.h.b16 %v2276
        %v2904 = vunpack.c.l.b16 %v2277
        %v2905 = vunpack.c.h.b16 %v2277
        %v2906 = vunpack.c.l.b16 %v2278
        %v2907 = vunpack.c.h.b16 %v2278
        %v2908 = vunpack.c.l.b16 %v2279
        %v2909 = vunpack.c.h.b16 %v2279
        %v2910 = vunpack.c.l.b16 %v2280
        %v2911 = vunpack.c.h.b16 %v2280
        %v2912 = vunpack.c.l.b16 %v2281
        %v2913 = vunpack.c.h.b16 %v2281
        %v2914 = vunpack.c.l.b16 %v2282
        %v2915 = vunpack.c.h.b16 %v2282
        %v2916 = vunpack.c.l.b16 %v2283
        %v2917 = vunpack.c.h.b16 %v2283
        %v2918 = vunpack.c.l.b16 %v2284
        %v2919 = vunpack.c.h.b16 %v2284
        %v2920 = vunpack.c.l.b16 %v2285
        %v2921 = vunpack.c.h.b16 %v2285
        %v2922 = vunpack.c.l.b16 %v2286
        %v2923 = vunpack.c.h.b16 %v2286
        %v2924 = vunpack.c.l.b16 %v2287
        %v2925 = vunpack.c.h.b16 %v2287
        %v2926 = vunpack.c.l.b16 %v2288
        %v2927 = vunpack.c.h.b16 %v2288
        %v2928 = vunpack.c.l.b16 %v2289
        %v2929 = vunpack.c.h.b16 %v2289
        %v2930 = vunpack.c.l.b16 %v2290
        %v2931 = vunpack.c.h.b16 %v2290
        %v2932 = vunpack.c.l.b16 %v2291
        %v2933 = vunpack.c.h.b16 %v2291
        %v2934 = vunpack.c.l.b16 %v2292
        %v2935 = vunpack.c.h.b16 %v2292
        %v2936 = vunpack.c.l.b16 %v2293
        %v2937 = vunpack.c.h.b16 %v2293
        %v2938 = vunpack.c.l.b16 %v2294
        %v2939 = vunpack.c.h.b16 %v2294
        %v2940 = vunpack.c.l.b16 %v2295
        %v2941 = vunpack.c.h.b16 %v2295
        %v2942 = vunpack.c.l.b16 %v2296
        %v2943 = vunpack.c.h.b16 %v2296
        %v2944 = vunpack.c.l.b16 %v2297
        %v2945 = vunpack.c.h.b16 %v2297
        %v2946 = vunpack.c.l.b16 %v2298
        %v2947 = vunpack.c.h.b16 %v2298
        %v2948 = vunpack.c.l.b16 %v2299
        %v2949 = vunpack.c.h.b16 %v2299
        %v2950 = vunpack.c.l.b16 %v2300
        %v2951 = vunpack.c.h.b16 %v2300
        %v2952 = vunpack.c.l.b16 %v2301
        %v2953 = vunpack.c.h.b16 %v2301
        %v2954 = vunpack.c.l.b16 %v2302
        %v2955 = vunpack.c.h.b16 %v2302
        %v2956 = vunpack.c.l.b16 %v2303
        %v2957 = vunpack.c.h.b16 %v2303
        %v2958 = vunpack.c.l.b16 %v2304
        %v2959 = vunpack.c.h.b16 %v2304
        %v2960 = vunpack.c.l.b16 %v2305
        %v2961 = vunpack.c.h.b16 %v2305
        %v2962 = vunpack.c.l.b16 %v2306
        %v2963 = vunpack.c.h.b16 %v2306
        %v2964 = vunpack.c.l.b16 %v2307
        %v2965 = vunpack.c.h.b16 %v2307
        %v2966 = vunpack.c.l.b16 %v2308
        %v2967 = vunpack.c.h.b16 %v2308
        %v2968 = vunpack.c.l.b16 %v2309
        %v2969 = vunpack.c.h.b16 %v2309
        %v2970 = vunpack.c.l.b16 %v2310
        %v2971 = vunpack.c.h.b16 %v2310
        %v2972 = vunpack.c.l.b16 %v2311
        %v2973 = vunpack.c.h.b16 %v2311
        %v2974 = vunpack.c.l.b16 %v2312
        %v2975 = vunpack.c.h.b16 %v2312
        %v2976 = vunpack.c.l.b16 %v2313
        %v2977 = vunpack.c.h.b16 %v2313
        %v2978 = vunpack.c.l.b16 %v2314
        %v2979 = vunpack.c.h.b16 %v2314
        %v2980 = vunpack.c.l.b16 %v2315
        %v2981 = vunpack.c.h.b16 %v2315
        %v2982 = vunpack.c.l.b16 %v2316
        %v2983 = vunpack.c.h.b16 %v2316
        %v2984 = vunpack.c.l.b16 %v2317
        %v2985 = vunpack.c.h.b16 %v2317
        %v2986 = vunpack.c.l.b16 %v2318
        %v2987 = vunpack.c.h.b16 %v2318
        %v2988 = vunpack.c.l.b16 %v2319
        %v2989 = vunpack.c.h.b16 %v2319
        %v2990 = vunpack.c.l.b16 %v2320
        %v2991 = vunpack.c.h.b16 %v2320
        %v2992 = vunpack.c.l.b16 %v2321
        %v2993 = vunpack.c.h.b16 %v2321
        %v2994 = vunpack.c.l.b16 %v2322
        %v2995 = vunpack.c.h.b16 %v2322
        %v2996 = vunpack.c.l.b16 %v2323
        %v2997 = vunpack.c.h.b16 %v2323
        %v2998 = vunpack.c.l.b16 %v2324
        %v2999 = vunpack.c.h.b16 %v2324
        %v3000 = vunpack.c.l.b16 %v2325
        %v3001 = vunpack.c.h.b16 %v2325
        %v3002 = vunpack.c.l.b16 %v2326
        %v3003 = vunpack.c.h.b16 %v2326
        %v3004 = vunpack.c.l.b16 %v2327
        %v3005 = vunpack.c.h.b16 %v2327
        %v3006 = vunpack.c.l.b16 %v2328
        %v3007 = vunpack.c.h.b16 %v2328
        %v3008 = vunpack.c.l.b16 %v2329
        %v3009 = vunpack.c.h.b16 %v2329
        %v3010 = vunpack.c.l.b16 %v2330
        %v3011 = vunpack.c.h.b16 %v2330
        %v3012 = vunpack.c.l.b16 %v2331
        %v3013 = vunpack.c.h.b16 %v2331
        %v3014 = vunpack.c.l.b16 %v2332
        %v3015 = vunpack.c.h.b16 %v2332
        %v3016 = vunpack.c.l.b16 %v2333
        %v3017 = vunpack.c.h.b16 %v2333
        %v3018 = vunpack.c.l.b16 %v2334
        %v3019 = vunpack.c.h.b16 %v2334
        %v3020 = vunpack.c.l.b16 %v2335
        %v3021 = vunpack.c.h.b16 %v2335
        %v3022 = vunpack.c.l.b16 %v2336
        %v3023 = vunpack.c.h.b16 %v2336
        %v3024 = vunpack.c.l.b16 %v2337
        %v3025 = vunpack.c.h.b16 %v2337
        %v3026 = vunpack.c.l.b16 %v2338
        %v3027 = vunpack.c.h.b16 %v2338
        %v3028 = vunpack.c.l.b16 %v2339
        %v3029 = vunpack.c.h.b16 %v2339
        %v3030 = vunpack.c.l.b16 %v2340
        %v3031 = vunpack.c.h.b16 %v2340
        %v3032 = vunpack.c.l.b16 %v2341
        %v3033 = vunpack.c.h.b16 %v2341
        %v3034 = vunpack.c.l.b16 %v2342
        %v3035 = vunpack.c.h.b16 %v2342
        %v3036 = vunpack.c.l.b16 %v2343
        %v3037 = vunpack.c.h.b16 %v2343
        %v3038 = vunpack.c.l.b16 %v2344
        %v3039 = vunpack.c.h.b16 %v2344
        %v3040 = vunpack.c.l.b16 %v2345
        %v3041 = vunpack.c.h.b16 %v2345
        %v3042 = vunpack.c.l.b16 %v2346
        %v3043 = vunpack.c.h.b16 %v2346
        %v3044 = vunpack.c.l.b16 %v2347
        %v3045 = vunpack.c.h.b16 %v2347
        %v3046 = vunpack.c.l.b16 %v2348
        %v3047 = vunpack.c.h.b16 %v2348
        %v3048 = vunpack.c.l.b16 %v2349
        %v3049 = vunpack.c.h.b16 %v2349
        %v3050 = vunpack.c.l.b16 %v2350
        %v3051 = vunpack.c.h.b16 %v2350
        %v3052 = vunpack.c.l.b16 %v2351
        %v3053 = vunpack.c.h.b16 %v2351
        %v3054 = vunpack.c.l.b16 %v2352
        %v3055 = vunpack.c.h.b16 %v2352
        %v3056 = vunpack.c.l.b16 %v2353
        %v3057 = vunpack.c.h.b16 %v2353
        %v3058 = vunpack.c.l.b16 %v2354
        %v3059 = vunpack.c.h.b16 %v2354
        %v3060 = vunpack.c.l.b16 %v2355
        %v3061 = vunpack.c.h.b16 %v2355
        %v3062 = vunpack.c.l.b16 %v2356
        %v3063 = vunpack.c.h.b16 %v2356
        %v3064 = vunpack.c.l.b16 %v2357
        %v3065 = vunpack.c.h.b16 %v2357
        %v3066 = vunpack.c.l.b16 %v2358
        %v3067 = vunpack.c.h.b16 %v2358
        %v3068 = vunpack.c.l.b16 %v2359
        %v3069 = vunpack.c.h.b16 %v2359
        %v3070 = vunpack.c.l.b16 %v2360
        %v3071 = vunpack.c.h.b16 %v2360
        %v3072 = vunpack.c.l.b16 %v2361
        %v3073 = vunpack.c.h.b16 %v2361
        %v3074 = vunpack.c.l.b16 %v2362
        %v3075 = vunpack.c.h.b16 %v2362
        %v3076 = vunpack.c.l.b16 %v2363
        %v3077 = vunpack.c.h.b16 %v2363
        %v3078 = vunpack.c.l.b16 %v2364
        %v3079 = vunpack.c.h.b16 %v2364
        %v3080 = vunpack.c.l.b16 %v2365
        %v3081 = vunpack.c.h.b16 %v2365
        %v3082 = vunpack.c.l.b16 %v2366
        %v3083 = vunpack.c.h.b16 %v2366
        %v3084 = vunpack.c.l.b16 %v2367
        %v3085 = vunpack.c.h.b16 %v2367
        %v3086 = vunpack.c.l.b16 %v2368
        %v3087 = vunpack.c.h.b16 %v2368
        %v3088 = vunpack.c.l.b16 %v2369
        %v3089 = vunpack.c.h.b16 %v2369
        %v3090 = vunpack.c.l.b16 %v2370
        %v3091 = vunpack.c.h.b16 %v2370
        %v3092 = vunpack.c.l.b16 %v2371
        %v3093 = vunpack.c.h.b16 %v2371
        %v3094 = vunpack.c.l.b16 %v2372
        %v3095 = vunpack.c.h.b16 %v2372
        %v3096 = vunpack.c.l.b16 %v2373
        %v3097 = vunpack.c.h.b16 %v2373
        %v3098 = vunpack.c.l.b16 %v2374
        %v3099 = vunpack.c.h.b16 %v2374
        %v3100 = vunpack.c.l.b16 %v2375
        %v3101 = vunpack.c.h.b16 %v2375
        %v3102 = vunpack.c.l.b16 %v2376
        %v3103 = vunpack.c.h.b16 %v2376
        %v3104 = vunpack.c.l.b16 %v2377
        %v3105 = vunpack.c.h.b16 %v2377
        %v3106 = vunpack.c.l.b16 %v2378
        %v3107 = vunpack.c.h.b16 %v2378
        %v3108 = vunpack.c.l.b16 %v2379
        %v3109 = vunpack.c.h.b16 %v2379
        %v3110 = vunpack.c.l.b16 %v2380
        %v3111 = vunpack.c.h.b16 %v2380
        %v3112 = vunpack.c.l.b16 %v2381
        %v3113 = vunpack.c.h.b16 %v2381
        %v3114 = vunpack.c.l.b16 %v2382
        %v3115 = vunpack.c.h.b16 %v2382
        %v3116 = vunpack.c.l.b16 %v2383
        %v3117 = vunpack.c.h.b16 %v2383
        %v3118 = vunpack.c.l.b16 %v2384
        %v3119 = vunpack.c.h.b16 %v2384
        %v3120 = vunpack.c.l.b16 %v2385
        %v3121 = vunpack.c.h.b16 %v2385
        %v3122 = vunpack.c.l.b16 %v2386
        %v3123 = vunpack.c.h.b16 %v2386
        %v3124 = vunpack.c.l.b16 %v2387
        %v3125 = vunpack.c.h.b16 %v2387
        %v3126 = vunpack.c.l.b16 %v2388
        %v3127 = vunpack.c.h.b16 %v2388
        %v3128 = vunpack.c.l.b16 %v2389
        %v3129 = vunpack.c.h.b16 %v2389
        %v3130 = vunpack.c.l.b16 %v2390
        %v3131 = vunpack.c.h.b16 %v2390
        %v3132 = vunpack.c.l.b16 %v2391
        %v3133 = vunpack.c.h.b16 %v2391
        %v3134 = vunpack.c.l.b16 %v2392
        %v3135 = vunpack.c.h.b16 %v2392
        %v3136 = vunpack.c.l.b16 %v2393
        %v3137 = vunpack.c.h.b16 %v2393
        %v3138 = vunpack.c.l.b16 %v2394
        %v3139 = vunpack.c.h.b16 %v2394
        %v3140 = vunpack.c.l.b16 %v2395
        %v3141 = vunpack.c.h.b16 %v2395
        %v3142 = vunpack.c.l.b16 %v2396
        %v3143 = vunpack.c.h.b16 %v2396
        %v3144 = vunpack.c.l.b16 %v2397
        %v3145 = vunpack.c.h.b16 %v2397
        %v3146 = vunpack.c.l.b16 %v2398
        %v3147 = vunpack.c.h.b16 %v2398
        %v3148 = vunpack.c.l.b16 %v2399
        %v3149 = vunpack.c.h.b16 %v2399
        %v3150 = vunpack.c.l.b16 %v2400
        %v3151 = vunpack.c.h.b16 %v2400
        %v3152 = vunpack.c.l.b16 %v2401
        %v3153 = vunpack.c.h.b16 %v2401
        %v3154 = vunpack.c.l.b16 %v2402
        %v3155 = vunpack.c.h.b16 %v2402
        %v3156 = vunpack.c.l.b16 %v2403
        %v3157 = vunpack.c.h.b16 %v2403
        %v3158 = vunpack.c.l.b16 %v2404
        %v3159 = vunpack.c.h.b16 %v2404
        %v3160 = vunpack.c.l.b16 %v2405
        %v3161 = vunpack.c.h.b16 %v2405
        %v3162 = vunpack.c.l.b16 %v2406
        %v3163 = vunpack.c.h.b16 %v2406
        %v3164 = vunpack.c.l.b16 %v2407
        %v3165 = vunpack.c.h.b16 %v2407
        %v3166 = vunpack.c.l.b16 %v2408
        %v3167 = vunpack.c.h.b16 %v2408
        %v3168 = vunpack.c.l.b16 %v2409
        %v3169 = vunpack.c.h.b16 %v2409
        %v3170 = vunpack.c.l.b16 %v2410
        %v3171 = vunpack.c.h.b16 %v2410
        %v3172 = vunpack.c.l.b16 %v2411
        %v3173 = vunpack.c.h.b16 %v2411
        %v3174 = vunpack.c.l.b16 %v2412
        %v3175 = vunpack.c.h.b16 %v2412
        %v3176 = vunpack.c.l.b16 %v2413
        %v3177 = vunpack.c.h.b16 %v2413
        %v3178 = vunpack.c.l.b16 %v2414
        %v3179 = vunpack.c.h.b16 %v2414
        %v3180 = vunpack.c.l.b16 %v2415
        %v3181 = vunpack.c.h.b16 %v2415
        %v3182 = vunpack.c.l.b16 %v2416
        %v3183 = vunpack.c.h.b16 %v2416
        %v3184 = vunpack.c.l.b16 %v2417
        %v3185 = vunpack.c.h.b16 %v2417
        %v3186 = vunpack.c.l.b16 %v2418
        %v3187 = vunpack.c.h.b16 %v2418
        %v3188 = vunpack.c.l.b16 %v2419
        %v3189 = vunpack.c.h.b16 %v2419
        %v3190 = vunpack.c.l.b16 %v2420
        %v3191 = vunpack.c.h.b16 %v2420
        %v3192 = vunpack.c.l.b16 %v2421
        %v3193 = vunpack.c.h.b16 %v2421
        %v3194 = vunpack.c.l.b16 %v2422
        %v3195 = vunpack.c.h.b16 %v2422
        %v3196 = vunpack.c.l.b16 %v2423
        %v3197 = vunpack.c.h.b16 %v2423
        %v3198 = vunpack.c.l.b16 %v2424
        %v3199 = vunpack.c.h.b16 %v2424
        %v3200 = vunpack.c.l.b16 %v2425
        %v3201 = vunpack.c.h.b16 %v2425
        %v3202 = vunpack.c.l.b16 %v2426
        %v3203 = vunpack.c.h.b16 %v2426
        %v3204 = vpack.c.b16 %v2696, %v2692
        %v3205 = vpack.c.b16 %v2697, %v2693
        %v3206 = vpack.c.b16 %v2698, %v2694
        %v3207 = vpack.c.b16 %v2699, %v2695
        %v3208 = vpack.c.b16 %v2704, %v2700
        %v3209 = vpack.c.b16 %v2705, %v2701
        %v3210 = vpack.c.b16 %v2706, %v2702
        %v3211 = vpack.c.b16 %v2707, %v2703
        %v3212 = vpack.c.b16 %v2712, %v2708
        %v3213 = vpack.c.b16 %v2713, %v2709
        %v3214 = vpack.c.b16 %v2714, %v2710
        %v3215 = vpack.c.b16 %v2715, %v2711
        %v3216 = vpack.c.b16 %v2720, %v2716
        %v3217 = vpack.c.b16 %v2721, %v2717
        %v3218 = vpack.c.b16 %v2722, %v2718
        %v3219 = vpack.c.b16 %v2723, %v2719
        %v3220 = vpack.c.b16 %v2728, %v2724
        %v3221 = vpack.c.b16 %v2729, %v2725
        %v3222 = vpack.c.b16 %v2730, %v2726
        %v3223 = vpack.c.b16 %v2731, %v2727
        %v3224 = vpack.c.b16 %v2736, %v2732
        %v3225 = vpack.c.b16 %v2737, %v2733
        %v3226 = vpack.c.b16 %v2738, %v2734
        %v3227 = vpack.c.b16 %v2739, %v2735
        %v3228 = vpack.c.b16 %v2744, %v2740
        %v3229 = vpack.c.b16 %v2745, %v2741
        %v3230 = vpack.c.b16 %v2746, %v2742
        %v3231 = vpack.c.b16 %v2747, %v2743
        %v3232 = vpack.c.b16 %v2752, %v2748
        %v3233 = vpack.c.b16 %v2753, %v2749
        %v3234 = vpack.c.b16 %v2754, %v2750
        %v3235 = vpack.c.b16 %v2755, %v2751
        %v3236 = vpack.c.b16 %v2760, %v2756
        %v3237 = vpack.c.b16 %v2761, %v2757
        %v3238 = vpack.c.b16 %v2762, %v2758
        %v3239 = vpack.c.b16 %v2763, %v2759
        %v3240 = vpack.c.b16 %v2768, %v2764
        %v3241 = vpack.c.b16 %v2769, %v2765
        %v3242 = vpack.c.b16 %v2770, %v2766
        %v3243 = vpack.c.b16 %v2771, %v2767
        %v3244 = vpack.c.b16 %v2776, %v2772
        %v3245 = vpack.c.b16 %v2777, %v2773
        %v3246 = vpack.c.b16 %v2778, %v2774
        %v3247 = vpack.c.b16 %v2779, %v2775
        %v3248 = vpack.c.b16 %v2784, %v2780
        %v3249 = vpack.c.b16 %v2785, %v2781
        %v3250 = vpack.c.b16 %v2786, %v2782
        %v3251 = vpack.c.b16 %v2787, %v2783
        %v3252 = vpack.c.b16 %v2792, %v2788
        %v3253 = vpack.c.b16 %v2793, %v2789
        %v3254 = vpack.c.b16 %v2794, %v2790
        %v3255 = vpack.c.b16 %v2795, %v2791
        %v3256 = vpack.c.b16 %v2800, %v2796
        %v3257 = vpack.c.b16 %v2801, %v2797
        %v3258 = vpack.c.b16 %v2802, %v2798
        %v3259 = vpack.c.b16 %v2803, %v2799
        %v3260 = vpack.c.b16 %v2808, %v2804
        %v3261 = vpack.c.b16 %v2809, %v2805
        %v3262 = vpack.c.b16 %v2810, %v2806
        %v3263 = vpack.c.b16 %v2811, %v2807
        %v3264 = vpack.c.b16 %v2816, %v2812
        %v3265 = vpack.c.b16 %v2817, %v2813
        %v3266 = vpack.c.b16 %v2818, %v2814
        %v3267 = vpack.c.b16 %v2819, %v2815
        %v3268 = vpack.c.b16 %v2824, %v2820
        %v3269 = vpack.c.b16 %v2825, %v2821
        %v3270 = vpack.c.b16 %v2826, %v2822
        %v3271 = vpack.c.b16 %v2827, %v2823
        %v3272 = vpack.c.b16 %v2832, %v2828
        %v3273 = vpack.c.b16 %v2833, %v2829
        %v3274 = vpack.c.b16 %v2834, %v2830
        %v3275 = vpack.c.b16 %v2835, %v2831
        %v3276 = vpack.c.b16 %v2840, %v2836
        %v3277 = vpack.c.b16 %v2841, %v2837
        %v3278 = vpack.c.b16 %v2842, %v2838
        %v3279 = vpack.c.b16 %v2843, %v2839
        %v3280 = vpack.c.b16 %v2848, %v2844
        %v3281 = vpack.c.b16 %v2849, %v2845
        %v3282 = vpack.c.b16 %v2850, %v2846
        %v3283 = vpack.c.b16 %v2851, %v2847
        %v3284 = vpack.c.b16 %v2856, %v2852
        %v3285 = vpack.c.b16 %v2857, %v2853
        %v3286 = vpack.c.b16 %v2858, %v2854
        %v3287 = vpack.c.b16 %v2859, %v2855
        %v3288 = vpack.c.b16 %v2864, %v2860
        %v3289 = vpack.c.b16 %v2865, %v2861
        %v3290 = vpack.c.b16 %v2866, %v2862
        %v3291 = vpack.c.b16 %v2867, %v2863
        %v3292 = vpack.c.b16 %v2872, %v2868
        %v3293 = vpack.c.b16 %v2873, %v2869
        %v3294 = vpack.c.b16 %v2874, %v2870
        %v3295 = vpack.c.b16 %v2875, %v2871
        %v3296 = vpack.c.b16 %v2880, %v2876
        %v3297 = vpack.c.b16 %v2881, %v2877
        %v3298 = vpack.c.b16 %v2882, %v2878
        %v3299 = vpack.c.b16 %v2883, %v2879
        %v3300 = vpack.c.b16 %v2888, %v2884
        %v3301 = vpack.c.b16 %v2889, %v2885
        %v3302 = vpack.c.b16 %v2890, %v2886
        %v3303 = vpack.c.b16 %v2891, %v2887
        %v3304 = vpack.c.b16 %v2896, %v2892
        %v3305 = vpack.c.b16 %v2897, %v2893
        %v3306 = vpack.c.b16 %v2898, %v2894
        %v3307 = vpack.c.b16 %v2899, %v2895
        %v3308 = vpack.c.b16 %v2904, %v2900
        %v3309 = vpack.c.b16 %v2905, %v2901
        %v3310 = vpack.c.b16 %v2906, %v2902
        %v3311 = vpack.c.b16 %v2907, %v2903
        %v3312 = vpack.c.b16 %v2912, %v2908
        %v3313 = vpack.c.b16 %v2913, %v2909
        %v3314 = vpack.c.b16 %v2914, %v2910
        %v3315 = vpack.c.b16 %v2915, %v2911
        %v3316 = vpack.c.b16 %v2920, %v2916
        %v3317 = vpack.c.b16 %v2921, %v2917
        %v3318 = vpack.c.b16 %v2922, %v2918
        %v3319 = vpack.c.b16 %v2923, %v2919
        %v3320 = vpack.c.b16 %v2928, %v2924
        %v3321 = vpack.c.b16 %v2929, %v2925
        %v3322 = vpack.c.b16 %v2930, %v2926
        %v3323 = vpack.c.b16 %v2931, %v2927
        %v3324 = vpack.c.b16 %v2936, %v2932
        %v3325 = vpack.c.b16 %v2937, %v2933
        %v3326 = vpack.c.b16 %v2938, %v2934
        %v3327 = vpack.c.b16 %v2939, %v2935
        %v3328 = vpack.c.b16 %v2944, %v2940
        %v3329 = vpack.c.b16 %v2945, %v2941
        %v3330 = vpack.c.b16 %v2946, %v2942
        %v3331 = vpack.c.b16 %v2947, %v2943
        %v3332 = vpack.c.b16 %v2952, %v2948
        %v3333 = vpack.c.b16 %v2953, %v2949
        %v3334 = vpack.c.b16 %v2954, %v2950
        %v3335 = vpack.c.b16 %v2955, %v2951
        %v3336 = vpack.c.b16 %v2960, %v2956
        %v3337 = vpack.c.b16 %v2961, %v2957
        %v3338 = vpack.c.b16 %v2962, %v2958
        %v3339 = vpack.c.b16 %v2963, %v2959
        %v3340 = vpack.c.b16 %v2968, %v2964
        %v3341 = vpack.c.b16 %v2969, %v2965
        %v3342 = vpack.c.b16 %v2970, %v2966
        %v3343 = vpack.c.b16 %v2971, %v2967
        %v3344 = vpack.c.b16 %v2976, %v2972
        %v3345 = vpack.c.b16 %v2977, %v2973
        %v3346 = vpack.c.b16 %v2978, %v2974
        %v3347 = vpack.c.b16 %v2979, %v2975
        %v3348 = vpack.c.b16 %v2984, %v2980
        %v3349 = vpack.c.b16 %v2985, %v2981
        %v3350 = vpack.c.b16 %v2986, %v2982
        %v3351 = vpack.c.b16 %v2987, %v2983
        %v3352 = vpack.c.b16 %v2992, %v2988
        %v3353 = vpack.c.b16 %v2993, %v2989
        %v3354 = vpack.c.b16 %v2994, %v2990
        %v3355 = vpack.c.b16 %v2995, %v2991
        %v3356 = vpack.c.b16 %v3000, %v2996
        %v3357 = vpack.c.b16 %v3001, %v2997
        %v3358 = vpack.c.b16 %v3002, %v2998
        %v3359 = vpack.c.b16 %v3003, %v2999
        %v3360 = vpack.c.b16 %v3008, %v3004
        %v3361 = vpack.c.b16 %v3009, %v3005
        %v3362 = vpack.c.b16 %v3010, %v3006
        %v3363 = vpack.c.b16 %v3011, %v3007
        %v3364 = vpack.c.b16 %v3016, %v3012
        %v3365 = vpack.c.b16 %v3017, %v3013
        %v3366 = vpack.c.b16 %v3018, %v3014
        %v3367 = vpack.c.b16 %v3019, %v3015
        %v3368 = vpack.c.b16 %v3024, %v3020
        %v3369 = vpack.c.b16 %v3025, %v3021
        %v3370 = vpack.c.b16 %v3026, %v3022
        %v3371 = vpack.c.b16 %v3027, %v3023
        %v3372 = vpack.c.b16 %v3032, %v3028
        %v3373 = vpack.c.b16 %v3033, %v3029
        %v3374 = vpack.c.b16 %v3034, %v3030
        %v3375 = vpack.c.b16 %v3035, %v3031
        %v3376 = vpack.c.b16 %v3040, %v3036
        %v3377 = vpack.c.b16 %v3041, %v3037
        %v3378 = vpack.c.b16 %v3042, %v3038
        %v3379 = vpack.c.b16 %v3043, %v3039
        %v3380 = vpack.c.b16 %v3048, %v3044
        %v3381 = vpack.c.b16 %v3049, %v3045
        %v3382 = vpack.c.b16 %v3050, %v3046
        %v3383 = vpack.c.b16 %v3051, %v3047
        %v3384 = vpack.c.b16 %v3056, %v3052
        %v3385 = vpack.c.b16 %v3057, %v3053
        %v3386 = vpack.c.b16 %v3058, %v3054
        %v3387 = vpack.c.b16 %v3059, %v3055
        %v3388 = vpack.c.b16 %v3064, %v3060
        %v3389 = vpack.c.b16 %v3065, %v3061
        %v3390 = vpack.c.b16 %v3066, %v3062
        %v3391 = vpack.c.b16 %v3067, %v3063
        %v3392 = vpack.c.b16 %v3072, %v3068
        %v3393 = vpack.c.b16 %v3073, %v3069
        %v3394 = vpack.c.b16 %v3074, %v3070
        %v3395 = vpack.c.b16 %v3075, %v3071
        %v3396 = vpack.c.b16 %v3080, %v3076
        %v3397 = vpack.c.b16 %v3081, %v3077
        %v3398 = vpack.c.b16 %v3082, %v3078
        %v3399 = vpack.c.b16 %v3083, %v3079
        %v3400 = vpack.c.b16 %v3088, %v3084
        %v3401 = vpack.c.b16 %v3089, %v3085
        %v3402 = vpack.c.b16 %v3090, %v3086
        %v3403 = vpack.c.b16 %v3091, %v3087
        %v3404 = vpack.c.b16 %v3096, %v3092
        %v3405 = vpack.c.b16 %v3097, %v3093
        %v3406 = vpack.c.b16 %v3098, %v3094
        %v3407 = vpack.c.b16 %v3099, %v3095
        %v3408 = vpack.c.b16 %v3104, %v3100
        %v3409 = vpack.c.b16 %v3105, %v3101
        %v3410 = vpack.c.b16 %v3106, %v3102
        %v3411 = vpack.c.b16 %v3107, %v3103
        %v3412 = vpack.c.b16 %v3112, %v3108
        %v3413 = vpack.c.b16 %v3113, %v3109
        %v3414 = vpack.c.b16 %v3114, %v3110
        %v3415 = vpack.c.b16 %v3115, %v3111
        %v3416 = vpack.c.b16 %v3120, %v3116
        %v3417 = vpack.c.b16 %v3121, %v3117
        %v3418 = vpack.c.b16 %v3122, %v3118
        %v3419 = vpack.c.b16 %v3123, %v3119
        %v3420 = vpack.c.b16 %v3128, %v3124
        %v3421 = vpack.c.b16 %v3129, %v3125
        %v3422 = vpack.c.b16 %v3130, %v3126
        %v3423 = vpack.c.b16 %v3131, %v3127
        %v3424 = vpack.c.b16 %v3136, %v3132
        %v3425 = vpack.c.b16 %v3137, %v3133
        %v3426 = vpack.c.b16 %v3138, %v3134
        %v3427 = vpack.c.b16 %v3139, %v3135
        %v3428 = vpack.c.b16 %v3144, %v3140
        %v3429 = vpack.c.b16 %v3145, %v3141
        %v3430 = vpack.c.b16 %v3146, %v3142
        %v3431 = vpack.c.b16 %v3147, %v3143
        %v3432 = vpack.c.b16 %v3152, %v3148
        %v3433 = vpack.c.b16 %v3153, %v3149
        %v3434 = vpack.c.b16 %v3154, %v3150
        %v3435 = vpack.c.b16 %v3155, %v3151
        %v3436 = vpack.c.b16 %v3160, %v3156
        %v3437 = vpack.c.b16 %v3161, %v3157
        %v3438 = vpack.c.b16 %v3162, %v3158
        %v3439 = vpack.c.b16 %v3163, %v3159
        %v3440 = vpack.c.b16 %v3168, %v3164
        %v3441 = vpack.c.b16 %v3169, %v3165
        %v3442 = vpack.c.b16 %v3170, %v3166
        %v3443 = vpack.c.b16 %v3171, %v3167
        %v3444 = vpack.c.b16 %v3176, %v3172
        %v3445 = vpack.c.b16 %v3177, %v3173
        %v3446 = vpack.c.b16 %v3178, %v3174
        %v3447 = vpack.c.b16 %v3179, %v3175
        %v3448 = vpack.c.b16 %v3184, %v3180
        %v3449 = vpack.c.b16 %v3185, %v3181
        %v3450 = vpack.c.b16 %v3186, %v3182
        %v3451 = vpack.c.b16 %v3187, %v3183
        %v3452 = vpack.c.b16 %v3192, %v3188
        %v3453 = vpack.c.b16 %v3193, %v3189
        %v3454 = vpack.c.b16 %v3194, %v3190
        %v3455 = vpack.c.b16 %v3195, %v3191
        %v3456 = vpack.c.b16 %v3200, %v3196
        %v3457 = vpack.c.b16 %v3201, %v3197
        %v3458 = vpack.c.b16 %v3202, %v3198
        %v3459 = vpack.c.b16 %v3203, %v3199
        %v3717 = vperm.slane %v2435, 0
        %v3718 = vperm.slane %v2435, 1
        %v3719 = vperm.slane %v2435, 2
        %v3720 = vperm.slane %v2435, 3
        %3725 = vmatpush.bf16.msra.mxu0 %v3232
        %3726 = vmatpush.bf16.msra.mxu0 %v3228
        %3727 = vmatpush.bf16.msra.mxu0 %v3224
        %3728 = vmatpush.bf16.msra.mxu0 %v3220
        %3729 = vmatpush.bf16.msra.mxu0 %v3216
        %3730 = vmatpush.bf16.msra.mxu0 %v3212
        %3731 = vmatpush.bf16.msra.mxu0 %v3208
        %3732 = vmatpush.bf16.msra.mxu0 %v3204
        %3733 = vmatmul.bf16.gmra.mxu0 %v2427
        %v3734 = vpop.f32.mrf.mxu0
        %v3735 = vadd.f32 %v3717, %v3734
        %v3736 = vpop.f32.mrf.mxu0
        %3737 = vdwg.mxu0
        %3738 = vmatpush.bf16.msra.mxu0 %v3264
        %3739 = vmatpush.bf16.msra.mxu0 %v3260
        %3740 = vmatpush.bf16.msra.mxu0 %v3256
        %3741 = vmatpush.bf16.msra.mxu0 %v3252
        %3742 = vmatpush.bf16.msra.mxu0 %v3248
        %3743 = vmatpush.bf16.msra.mxu0 %v3244
        %3744 = vmatpush.bf16.msra.mxu0 %v3240
        %3745 = vmatpush.bf16.msra.mxu0 %v3236
        %3746 = vmatmul.bf16.gmra.mxu0 %v2428
        %v3747 = vpop.f32.mrf.mxu0
        %v3748 = vadd.f32 %v3735, %v3747
        %v3749 = vpop.f32.mrf.mxu0
        %3750 = vdwg.mxu0
        %3751 = vmatpush.bf16.msra.mxu0 %v3296
        %3752 = vmatpush.bf16.msra.mxu0 %v3292
        %3753 = vmatpush.bf16.msra.mxu0 %v3288
        %3754 = vmatpush.bf16.msra.mxu0 %v3284
        %3755 = vmatpush.bf16.msra.mxu0 %v3280
        %3756 = vmatpush.bf16.msra.mxu0 %v3276
        %3757 = vmatpush.bf16.msra.mxu0 %v3272
        %3758 = vmatpush.bf16.msra.mxu0 %v3268
        %3759 = vmatmul.bf16.gmra.mxu0 %v2429
        %v3760 = vpop.f32.mrf.mxu0
        %v3761 = vadd.f32 %v3748, %v3760
        %v3762 = vpop.f32.mrf.mxu0
        %3763 = vdwg.mxu0
        %3764 = vmatpush.bf16.msra.mxu0 %v3328
        %3765 = vmatpush.bf16.msra.mxu0 %v3324
        %3766 = vmatpush.bf16.msra.mxu0 %v3320
        %3767 = vmatpush.bf16.msra.mxu0 %v3316
        %3768 = vmatpush.bf16.msra.mxu0 %v3312
        %3769 = vmatpush.bf16.msra.mxu0 %v3308
        %3770 = vmatpush.bf16.msra.mxu0 %v3304
        %3771 = vmatpush.bf16.msra.mxu0 %v3300
        %3772 = vmatmul.bf16.gmra.mxu0 %v2430
        %v3773 = vpop.f32.mrf.mxu0
        %v3774 = vadd.f32 %v3761, %v3773
        %v3775 = vpop.f32.mrf.mxu0
        %3776 = vdwg.mxu0
        %3777 = vmatpush.bf16.msra.mxu0 %v3360
        %3778 = vmatpush.bf16.msra.mxu0 %v3356
        %3779 = vmatpush.bf16.msra.mxu0 %v3352
        %3780 = vmatpush.bf16.msra.mxu0 %v3348
        %3781 = vmatpush.bf16.msra.mxu0 %v3344
        %3782 = vmatpush.bf16.msra.mxu0 %v3340
        %3783 = vmatpush.bf16.msra.mxu0 %v3336
        %3784 = vmatpush.bf16.msra.mxu0 %v3332
        %3785 = vmatmul.bf16.gmra.mxu0 %v2431
        %v3786 = vpop.f32.mrf.mxu0
        %v3787 = vadd.f32 %v3774, %v3786
        %v3788 = vpop.f32.mrf.mxu0
        %3789 = vdwg.mxu0
        %3790 = vmatpush.bf16.msra.mxu0 %v3392
        %3791 = vmatpush.bf16.msra.mxu0 %v3388
        %3792 = vmatpush.bf16.msra.mxu0 %v3384
        %3793 = vmatpush.bf16.msra.mxu0 %v3380
        %3794 = vmatpush.bf16.msra.mxu0 %v3376
        %3795 = vmatpush.bf16.msra.mxu0 %v3372
        %3796 = vmatpush.bf16.msra.mxu0 %v3368
        %3797 = vmatpush.bf16.msra.mxu0 %v3364
        %3798 = vmatmul.bf16.gmra.mxu0 %v2432
        %v3799 = vpop.f32.mrf.mxu0
        %v3800 = vadd.f32 %v3787, %v3799
        %v3801 = vpop.f32.mrf.mxu0
        %3802 = vdwg.mxu0
        %3803 = vmatpush.bf16.msra.mxu0 %v3424
        %3804 = vmatpush.bf16.msra.mxu0 %v3420
        %3805 = vmatpush.bf16.msra.mxu0 %v3416
        %3806 = vmatpush.bf16.msra.mxu0 %v3412
        %3807 = vmatpush.bf16.msra.mxu0 %v3408
        %3808 = vmatpush.bf16.msra.mxu0 %v3404
        %3809 = vmatpush.bf16.msra.mxu0 %v3400
        %3810 = vmatpush.bf16.msra.mxu0 %v3396
        %3811 = vmatmul.bf16.gmra.mxu0 %v2433
        %v3812 = vpop.f32.mrf.mxu0
        %v3813 = vadd.f32 %v3800, %v3812
        %v3814 = vpop.f32.mrf.mxu0
        %3815 = vdwg.mxu0
        %3816 = vmatpush.bf16.msra.mxu0 %v3456
        %3817 = vmatpush.bf16.msra.mxu0 %v3452
        %3818 = vmatpush.bf16.msra.mxu0 %v3448
        %3819 = vmatpush.bf16.msra.mxu0 %v3444
        %3820 = vmatpush.bf16.msra.mxu0 %v3440
        %3821 = vmatpush.bf16.msra.mxu0 %v3436
        %3822 = vmatpush.bf16.msra.mxu0 %v3432
        %3823 = vmatpush.bf16.msra.mxu0 %v3428
        %3824 = vmatmul.bf16.gmra.mxu0 %v2434
        %v3825 = vpop.f32.mrf.mxu0
        %v3826 = vadd.f32 %v3813, %v3825
        %v3827 = vpop.f32.mrf.mxu0
        %3828 = vdwg.mxu0
        %3829 = vmatpush.bf16.msra.mxu0 %v3233
        %3830 = vmatpush.bf16.msra.mxu0 %v3229
        %3831 = vmatpush.bf16.msra.mxu0 %v3225
        %3832 = vmatpush.bf16.msra.mxu0 %v3221
        %3833 = vmatpush.bf16.msra.mxu0 %v3217
        %3834 = vmatpush.bf16.msra.mxu0 %v3213
        %3835 = vmatpush.bf16.msra.mxu0 %v3209
        %3836 = vmatpush.bf16.msra.mxu0 %v3205
        %3837 = vmatmul.bf16.gmra.mxu0 %v2427
        %v3838 = vpop.f32.mrf.mxu0
        %v3839 = vadd.f32 %v3718, %v3838
        %v3840 = vpop.f32.mrf.mxu0
        %3841 = vdwg.mxu0
        %3842 = vmatpush.bf16.msra.mxu0 %v3265
        %3843 = vmatpush.bf16.msra.mxu0 %v3261
        %3844 = vmatpush.bf16.msra.mxu0 %v3257
        %3845 = vmatpush.bf16.msra.mxu0 %v3253
        %3846 = vmatpush.bf16.msra.mxu0 %v3249
        %3847 = vmatpush.bf16.msra.mxu0 %v3245
        %3848 = vmatpush.bf16.msra.mxu0 %v3241
        %3849 = vmatpush.bf16.msra.mxu0 %v3237
        %3850 = vmatmul.bf16.gmra.mxu0 %v2428
        %v3851 = vpop.f32.mrf.mxu0
        %v3852 = vadd.f32 %v3839, %v3851
        %v3853 = vpop.f32.mrf.mxu0
        %3854 = vdwg.mxu0
        %3855 = vmatpush.bf16.msra.mxu0 %v3297
        %3856 = vmatpush.bf16.msra.mxu0 %v3293
        %3857 = vmatpush.bf16.msra.mxu0 %v3289
        %3858 = vmatpush.bf16.msra.mxu0 %v3285
        %3859 = vmatpush.bf16.msra.mxu0 %v3281
        %3860 = vmatpush.bf16.msra.mxu0 %v3277
        %3861 = vmatpush.bf16.msra.mxu0 %v3273
        %3862 = vmatpush.bf16.msra.mxu0 %v3269
        %3863 = vmatmul.bf16.gmra.mxu0 %v2429
        %v3864 = vpop.f32.mrf.mxu0
        %v3865 = vadd.f32 %v3852, %v3864
        %v3866 = vpop.f32.mrf.mxu0
        %3867 = vdwg.mxu0
        %3868 = vmatpush.bf16.msra.mxu0 %v3329
        %3869 = vmatpush.bf16.msra.mxu0 %v3325
        %3870 = vmatpush.bf16.msra.mxu0 %v3321
        %3871 = vmatpush.bf16.msra.mxu0 %v3317
        %3872 = vmatpush.bf16.msra.mxu0 %v3313
        %3873 = vmatpush.bf16.msra.mxu0 %v3309
        %3874 = vmatpush.bf16.msra.mxu0 %v3305
        %3875 = vmatpush.bf16.msra.mxu0 %v3301
        %3876 = vmatmul.bf16.gmra.mxu0 %v2430
        %v3877 = vpop.f32.mrf.mxu0
        %v3878 = vadd.f32 %v3865, %v3877
        %v3879 = vpop.f32.mrf.mxu0
        %3880 = vdwg.mxu0
        %3881 = vmatpush.bf16.msra.mxu0 %v3361
        %3882 = vmatpush.bf16.msra.mxu0 %v3357
        %3883 = vmatpush.bf16.msra.mxu0 %v3353
        %3884 = vmatpush.bf16.msra.mxu0 %v3349
        %3885 = vmatpush.bf16.msra.mxu0 %v3345
        %3886 = vmatpush.bf16.msra.mxu0 %v3341
        %3887 = vmatpush.bf16.msra.mxu0 %v3337
        %3888 = vmatpush.bf16.msra.mxu0 %v3333
        %3889 = vmatmul.bf16.gmra.mxu0 %v2431
        %v3890 = vpop.f32.mrf.mxu0
        %v3891 = vadd.f32 %v3878, %v3890
        %v3892 = vpop.f32.mrf.mxu0
        %3893 = vdwg.mxu0
        %3894 = vmatpush.bf16.msra.mxu0 %v3393
        %3895 = vmatpush.bf16.msra.mxu0 %v3389
        %3896 = vmatpush.bf16.msra.mxu0 %v3385
        %3897 = vmatpush.bf16.msra.mxu0 %v3381
        %3898 = vmatpush.bf16.msra.mxu0 %v3377
        %3899 = vmatpush.bf16.msra.mxu0 %v3373
        %3900 = vmatpush.bf16.msra.mxu0 %v3369
        %3901 = vmatpush.bf16.msra.mxu0 %v3365
        %3902 = vmatmul.bf16.gmra.mxu0 %v2432
        %v3903 = vpop.f32.mrf.mxu0
        %v3904 = vadd.f32 %v3891, %v3903
        %v3905 = vpop.f32.mrf.mxu0
        %3906 = vdwg.mxu0
        %3907 = vmatpush.bf16.msra.mxu0 %v3425
        %3908 = vmatpush.bf16.msra.mxu0 %v3421
        %3909 = vmatpush.bf16.msra.mxu0 %v3417
        %3910 = vmatpush.bf16.msra.mxu0 %v3413
        %3911 = vmatpush.bf16.msra.mxu0 %v3409
        %3912 = vmatpush.bf16.msra.mxu0 %v3405
        %3913 = vmatpush.bf16.msra.mxu0 %v3401
        %3914 = vmatpush.bf16.msra.mxu0 %v3397
        %3915 = vmatmul.bf16.gmra.mxu0 %v2433
        %v3916 = vpop.f32.mrf.mxu0
        %v3917 = vadd.f32 %v3904, %v3916
        %v3918 = vpop.f32.mrf.mxu0
        %3919 = vdwg.mxu0
        %3920 = vmatpush.bf16.msra.mxu0 %v3457
        %3921 = vmatpush.bf16.msra.mxu0 %v3453
        %3922 = vmatpush.bf16.msra.mxu0 %v3449
        %3923 = vmatpush.bf16.msra.mxu0 %v3445
        %3924 = vmatpush.bf16.msra.mxu0 %v3441
        %3925 = vmatpush.bf16.msra.mxu0 %v3437
        %3926 = vmatpush.bf16.msra.mxu0 %v3433
        %3927 = vmatpush.bf16.msra.mxu0 %v3429
        %3928 = vmatmul.bf16.gmra.mxu0 %v2434
        %v3929 = vpop.f32.mrf.mxu0
        %v3930 = vadd.f32 %v3917, %v3929
        %v3931 = vpop.f32.mrf.mxu0
        %3932 = vdwg.mxu0
        %3933 = vmatpush.bf16.msra.mxu0 %v3234
        %3934 = vmatpush.bf16.msra.mxu0 %v3230
        %3935 = vmatpush.bf16.msra.mxu0 %v3226
        %3936 = vmatpush.bf16.msra.mxu0 %v3222
        %3937 = vmatpush.bf16.msra.mxu0 %v3218
        %3938 = vmatpush.bf16.msra.mxu0 %v3214
        %3939 = vmatpush.bf16.msra.mxu0 %v3210
        %3940 = vmatpush.bf16.msra.mxu0 %v3206
        %3941 = vmatmul.bf16.gmra.mxu0 %v2427
        %v3942 = vpop.f32.mrf.mxu0
        %v3943 = vadd.f32 %v3719, %v3942
        %v3944 = vpop.f32.mrf.mxu0
        %3945 = vdwg.mxu0
        %3946 = vmatpush.bf16.msra.mxu0 %v3266
        %3947 = vmatpush.bf16.msra.mxu0 %v3262
        %3948 = vmatpush.bf16.msra.mxu0 %v3258
        %3949 = vmatpush.bf16.msra.mxu0 %v3254
        %3950 = vmatpush.bf16.msra.mxu0 %v3250
        %3951 = vmatpush.bf16.msra.mxu0 %v3246
        %3952 = vmatpush.bf16.msra.mxu0 %v3242
        %3953 = vmatpush.bf16.msra.mxu0 %v3238
        %3954 = vmatmul.bf16.gmra.mxu0 %v2428
        %v3955 = vpop.f32.mrf.mxu0
        %v3956 = vadd.f32 %v3943, %v3955
        %v3957 = vpop.f32.mrf.mxu0
        %3958 = vdwg.mxu0
        %3959 = vmatpush.bf16.msra.mxu0 %v3298
        %3960 = vmatpush.bf16.msra.mxu0 %v3294
        %3961 = vmatpush.bf16.msra.mxu0 %v3290
        %3962 = vmatpush.bf16.msra.mxu0 %v3286
        %3963 = vmatpush.bf16.msra.mxu0 %v3282
        %3964 = vmatpush.bf16.msra.mxu0 %v3278
        %3965 = vmatpush.bf16.msra.mxu0 %v3274
        %3966 = vmatpush.bf16.msra.mxu0 %v3270
        %3967 = vmatmul.bf16.gmra.mxu0 %v2429
        %v3968 = vpop.f32.mrf.mxu0
        %v3969 = vadd.f32 %v3956, %v3968
        %v3970 = vpop.f32.mrf.mxu0
        %3971 = vdwg.mxu0
        %3972 = vmatpush.bf16.msra.mxu0 %v3330
        %3973 = vmatpush.bf16.msra.mxu0 %v3326
        %3974 = vmatpush.bf16.msra.mxu0 %v3322
        %3975 = vmatpush.bf16.msra.mxu0 %v3318
        %3976 = vmatpush.bf16.msra.mxu0 %v3314
        %3977 = vmatpush.bf16.msra.mxu0 %v3310
        %3978 = vmatpush.bf16.msra.mxu0 %v3306
        %3979 = vmatpush.bf16.msra.mxu0 %v3302
        %3980 = vmatmul.bf16.gmra.mxu0 %v2430
        %v3981 = vpop.f32.mrf.mxu0
        %v3982 = vadd.f32 %v3969, %v3981
        %v3983 = vpop.f32.mrf.mxu0
        %3984 = vdwg.mxu0
        %3985 = vmatpush.bf16.msra.mxu0 %v3362
        %3986 = vmatpush.bf16.msra.mxu0 %v3358
        %3987 = vmatpush.bf16.msra.mxu0 %v3354
        %3988 = vmatpush.bf16.msra.mxu0 %v3350
        %3989 = vmatpush.bf16.msra.mxu0 %v3346
        %3990 = vmatpush.bf16.msra.mxu0 %v3342
        %3991 = vmatpush.bf16.msra.mxu0 %v3338
        %3992 = vmatpush.bf16.msra.mxu0 %v3334
        %3993 = vmatmul.bf16.gmra.mxu0 %v2431
        %v3994 = vpop.f32.mrf.mxu0
        %v3995 = vadd.f32 %v3982, %v3994
        %v3996 = vpop.f32.mrf.mxu0
        %3997 = vdwg.mxu0
        %3998 = vmatpush.bf16.msra.mxu0 %v3394
        %3999 = vmatpush.bf16.msra.mxu0 %v3390
        %4000 = vmatpush.bf16.msra.mxu0 %v3386
        %4001 = vmatpush.bf16.msra.mxu0 %v3382
        %4002 = vmatpush.bf16.msra.mxu0 %v3378
        %4003 = vmatpush.bf16.msra.mxu0 %v3374
        %4004 = vmatpush.bf16.msra.mxu0 %v3370
        %4005 = vmatpush.bf16.msra.mxu0 %v3366
        %4006 = vmatmul.bf16.gmra.mxu0 %v2432
        %v4007 = vpop.f32.mrf.mxu0
        %v4008 = vadd.f32 %v3995, %v4007
        %v4009 = vpop.f32.mrf.mxu0
        %4010 = vdwg.mxu0
        %4011 = vmatpush.bf16.msra.mxu0 %v3426
        %4012 = vmatpush.bf16.msra.mxu0 %v3422
        %4013 = vmatpush.bf16.msra.mxu0 %v3418
        %4014 = vmatpush.bf16.msra.mxu0 %v3414
        %4015 = vmatpush.bf16.msra.mxu0 %v3410
        %4016 = vmatpush.bf16.msra.mxu0 %v3406
        %4017 = vmatpush.bf16.msra.mxu0 %v3402
        %4018 = vmatpush.bf16.msra.mxu0 %v3398
        %4019 = vmatmul.bf16.gmra.mxu0 %v2433
        %v4020 = vpop.f32.mrf.mxu0
        %v4021 = vadd.f32 %v4008, %v4020
        %v4022 = vpop.f32.mrf.mxu0
        %4023 = vdwg.mxu0
        %4024 = vmatpush.bf16.msra.mxu0 %v3458
        %4025 = vmatpush.bf16.msra.mxu0 %v3454
        %4026 = vmatpush.bf16.msra.mxu0 %v3450
        %4027 = vmatpush.bf16.msra.mxu0 %v3446
        %4028 = vmatpush.bf16.msra.mxu0 %v3442
        %4029 = vmatpush.bf16.msra.mxu0 %v3438
        %4030 = vmatpush.bf16.msra.mxu0 %v3434
        %4031 = vmatpush.bf16.msra.mxu0 %v3430
        %4032 = vmatmul.bf16.gmra.mxu0 %v2434
        %v4033 = vpop.f32.mrf.mxu0
        %v4034 = vadd.f32 %v4021, %v4033
        %v4035 = vpop.f32.mrf.mxu0
        %4036 = vdwg.mxu0
        %4037 = vmatpush.bf16.msra.mxu0 %v3235
        %4038 = vmatpush.bf16.msra.mxu0 %v3231
        %4039 = vmatpush.bf16.msra.mxu0 %v3227
        %4040 = vmatpush.bf16.msra.mxu0 %v3223
        %4041 = vmatpush.bf16.msra.mxu0 %v3219
        %4042 = vmatpush.bf16.msra.mxu0 %v3215
        %4043 = vmatpush.bf16.msra.mxu0 %v3211
        %4044 = vmatpush.bf16.msra.mxu0 %v3207
        %4045 = vmatmul.bf16.gmra.mxu0 %v2427
        %v4046 = vpop.f32.mrf.mxu0
        %v4047 = vadd.f32 %v3720, %v4046
        %v4048 = vpop.f32.mrf.mxu0
        %4049 = vdwg.mxu0
        %4050 = vmatpush.bf16.msra.mxu0 %v3267
        %4051 = vmatpush.bf16.msra.mxu0 %v3263
        %4052 = vmatpush.bf16.msra.mxu0 %v3259
        %4053 = vmatpush.bf16.msra.mxu0 %v3255
        %4054 = vmatpush.bf16.msra.mxu0 %v3251
        %4055 = vmatpush.bf16.msra.mxu0 %v3247
        %4056 = vmatpush.bf16.msra.mxu0 %v3243
        %4057 = vmatpush.bf16.msra.mxu0 %v3239
        %4058 = vmatmul.bf16.gmra.mxu0 %v2428
        %v4059 = vpop.f32.mrf.mxu0
        %v4060 = vadd.f32 %v4047, %v4059
        %v4061 = vpop.f32.mrf.mxu0
        %4062 = vdwg.mxu0
        %4063 = vmatpush.bf16.msra.mxu0 %v3299
        %4064 = vmatpush.bf16.msra.mxu0 %v3295
        %4065 = vmatpush.bf16.msra.mxu0 %v3291
        %4066 = vmatpush.bf16.msra.mxu0 %v3287
        %4067 = vmatpush.bf16.msra.mxu0 %v3283
        %4068 = vmatpush.bf16.msra.mxu0 %v3279
        %4069 = vmatpush.bf16.msra.mxu0 %v3275
        %4070 = vmatpush.bf16.msra.mxu0 %v3271
        %4071 = vmatmul.bf16.gmra.mxu0 %v2429
        %v4072 = vpop.f32.mrf.mxu0
        %v4073 = vadd.f32 %v4060, %v4072
        %v4074 = vpop.f32.mrf.mxu0
        %4075 = vdwg.mxu0
        %4076 = vmatpush.bf16.msra.mxu0 %v3331
        %4077 = vmatpush.bf16.msra.mxu0 %v3327
        %4078 = vmatpush.bf16.msra.mxu0 %v3323
        %4079 = vmatpush.bf16.msra.mxu0 %v3319
        %4080 = vmatpush.bf16.msra.mxu0 %v3315
        %4081 = vmatpush.bf16.msra.mxu0 %v3311
        %4082 = vmatpush.bf16.msra.mxu0 %v3307
        %4083 = vmatpush.bf16.msra.mxu0 %v3303
        %4084 = vmatmul.bf16.gmra.mxu0 %v2430
        %v4085 = vpop.f32.mrf.mxu0
        %v4086 = vadd.f32 %v4073, %v4085
        %v4087 = vpop.f32.mrf.mxu0
        %4088 = vdwg.mxu0
        %4089 = vmatpush.bf16.msra.mxu0 %v3363
        %4090 = vmatpush.bf16.msra.mxu0 %v3359
        %4091 = vmatpush.bf16.msra.mxu0 %v3355
        %4092 = vmatpush.bf16.msra.mxu0 %v3351
        %4093 = vmatpush.bf16.msra.mxu0 %v3347
        %4094 = vmatpush.bf16.msra.mxu0 %v3343
        %4095 = vmatpush.bf16.msra.mxu0 %v3339
        %4096 = vmatpush.bf16.msra.mxu0 %v3335
        %4097 = vmatmul.bf16.gmra.mxu0 %v2431
        %v4098 = vpop.f32.mrf.mxu0
        %v4099 = vadd.f32 %v4086, %v4098
        %v4100 = vpop.f32.mrf.mxu0
        %4101 = vdwg.mxu0
        %4102 = vmatpush.bf16.msra.mxu0 %v3395
        %4103 = vmatpush.bf16.msra.mxu0 %v3391
        %4104 = vmatpush.bf16.msra.mxu0 %v3387
        %4105 = vmatpush.bf16.msra.mxu0 %v3383
        %4106 = vmatpush.bf16.msra.mxu0 %v3379
        %4107 = vmatpush.bf16.msra.mxu0 %v3375
        %4108 = vmatpush.bf16.msra.mxu0 %v3371
        %4109 = vmatpush.bf16.msra.mxu0 %v3367
        %4110 = vmatmul.bf16.gmra.mxu0 %v2432
        %v4111 = vpop.f32.mrf.mxu0
        %v4112 = vadd.f32 %v4099, %v4111
        %v4113 = vpop.f32.mrf.mxu0
        %4114 = vdwg.mxu0
        %4115 = vmatpush.bf16.msra.mxu0 %v3427
        %4116 = vmatpush.bf16.msra.mxu0 %v3423
        %4117 = vmatpush.bf16.msra.mxu0 %v3419
        %4118 = vmatpush.bf16.msra.mxu0 %v3415
        %4119 = vmatpush.bf16.msra.mxu0 %v3411
        %4120 = vmatpush.bf16.msra.mxu0 %v3407
        %4121 = vmatpush.bf16.msra.mxu0 %v3403
        %4122 = vmatpush.bf16.msra.mxu0 %v3399
        %4123 = vmatmul.bf16.gmra.mxu0 %v2433
        %v4124 = vpop.f32.mrf.mxu0
        %v4125 = vadd.f32 %v4112, %v4124
        %v4126 = vpop.f32.mrf.mxu0
        %4127 = vdwg.mxu0
        %4128 = vmatpush.bf16.msra.mxu0 %v3459
        %4129 = vmatpush.bf16.msra.mxu0 %v3455
        %4130 = vmatpush.bf16.msra.mxu0 %v3451
        %4131 = vmatpush.bf16.msra.mxu0 %v3447
        %4132 = vmatpush.bf16.msra.mxu0 %v3443
        %4133 = vmatpush.bf16.msra.mxu0 %v3439
        %4134 = vmatpush.bf16.msra.mxu0 %v3435
        %4135 = vmatpush.bf16.msra.mxu0 %v3431
        %4136 = vmatmul.bf16.gmra.mxu0 %v2434
        %v4137 = vpop.f32.mrf.mxu0
        %v4138 = vadd.f32 %v4125, %v4137
        %v4139 = vpop.f32.mrf.mxu0
        %4140 = vdwg.mxu0
        %v4141 = vmax.f32 %v3826, 0.0
        %v4142 = vmax.f32 %v3930, 0.0
        %v4143 = vmax.f32 %v4034, 0.0
        %v4144 = vmax.f32 %v4138, 0.0
        %v4145 = vld [vmem:[#allocation8] sm:$0xf]
        %v4146 = vld [vmem:[#allocation8 + $0x4] sm:$0xf]
        %v4147 = vld [vmem:[#allocation8 + $0x8] sm:$0xf]
        %v4148 = vld [vmem:[#allocation8 + $0xc] sm:$0xf]
        %v4149 = vld [vmem:[#allocation8 + $0x10] sm:$0xf]
        %v4150 = vld [vmem:[#allocation8 + $0x14] sm:$0xf]
        %v4151 = vld [vmem:[#allocation8 + $0x18] sm:$0xf]
        %v4152 = vld [vmem:[#allocation8 + $0x1c] sm:$0xf]
        %v4153 = vld [vmem:[#allocation8 + $0x20] sm:$0xf]
        %v4154 = vld [vmem:[#allocation8 + $0x24] sm:$0xf]
        %v4155 = vld [vmem:[#allocation8 + $0x28] sm:$0xf]
        %v4156 = vld [vmem:[#allocation8 + $0x2c] sm:$0xf]
        %v4157 = vld [vmem:[#allocation8 + $0x30] sm:$0xf]
        %v4158 = vld [vmem:[#allocation8 + $0x34] sm:$0xf]
        %v4159 = vld [vmem:[#allocation8 + $0x38] sm:$0xf]
        %v4160 = vld [vmem:[#allocation8 + $0x3c] sm:$0xf]
        %v4161 = vld [vmem:[#allocation8 + $0x40] sm:$0xf]
        %v4162 = vld [vmem:[#allocation8 + $0x44] sm:$0xf]
        %v4163 = vld [vmem:[#allocation8 + $0x48] sm:$0xf]
        %v4164 = vld [vmem:[#allocation8 + $0x4c] sm:$0xf]
        %v4165 = vld [vmem:[#allocation8 + $0x50] sm:$0xf]
        %v4166 = vld [vmem:[#allocation8 + $0x54] sm:$0xf]
        %v4167 = vld [vmem:[#allocation8 + $0x58] sm:$0xf]
        %v4168 = vld [vmem:[#allocation8 + $0x5c] sm:$0xf]
        %v4169 = vld [vmem:[#allocation8 + $0x60] sm:$0xf]
        %v4170 = vld [vmem:[#allocation8 + $0x64] sm:$0xf]
        %v4171 = vld [vmem:[#allocation8 + $0x68] sm:$0xf]
        %v4172 = vld [vmem:[#allocation8 + $0x6c] sm:$0xf]
        %v4173 = vld [vmem:[#allocation8 + $0x70] sm:$0xf]
        %v4174 = vld [vmem:[#allocation8 + $0x74] sm:$0xf]
        %v4175 = vld [vmem:[#allocation8 + $0x78] sm:$0xf]
        %v4176 = vld [vmem:[#allocation8 + $0x7c] sm:$0xf]
        %v4177 = vld [vmem:[#allocation8 + $0x80] sm:$0xf]
        %v4178 = vld [vmem:[#allocation8 + $0x84] sm:$0xf]
        %v4179 = vld [vmem:[#allocation8 + $0x88] sm:$0xf]
        %v4180 = vld [vmem:[#allocation8 + $0x8c] sm:$0xf]
        %v4181 = vld [vmem:[#allocation8 + $0x90] sm:$0xf]
        %v4182 = vld [vmem:[#allocation8 + $0x94] sm:$0xf]
        %v4183 = vld [vmem:[#allocation8 + $0x98] sm:$0xf]
        %v4184 = vld [vmem:[#allocation8 + $0x9c] sm:$0xf]
        %v4185 = vld [vmem:[#allocation8 + $0xa0] sm:$0xf]
        %v4186 = vld [vmem:[#allocation8 + $0xa4] sm:$0xf]
        %v4187 = vld [vmem:[#allocation8 + $0xa8] sm:$0xf]
        %v4188 = vld [vmem:[#allocation8 + $0xac] sm:$0xf]
        %v4189 = vld [vmem:[#allocation8 + $0xb0] sm:$0xf]
        %v4190 = vld [vmem:[#allocation8 + $0xb4] sm:$0xf]
        %v4191 = vld [vmem:[#allocation8 + $0xb8] sm:$0xf]
        %v4192 = vld [vmem:[#allocation8 + $0xbc] sm:$0xf]
        %v4193 = vld [vmem:[#allocation8 + $0xc0] sm:$0xf]
        %v4194 = vld [vmem:[#allocation8 + $0xc4] sm:$0xf]
        %v4195 = vld [vmem:[#allocation8 + $0xc8] sm:$0xf]
        %v4196 = vld [vmem:[#allocation8 + $0xcc] sm:$0xf]
        %v4197 = vld [vmem:[#allocation8 + $0xd0] sm:$0xf]
        %v4198 = vld [vmem:[#allocation8 + $0xd4] sm:$0xf]
        %v4199 = vld [vmem:[#allocation8 + $0xd8] sm:$0xf]
        %v4200 = vld [vmem:[#allocation8 + $0xdc] sm:$0xf]
        %v4201 = vld [vmem:[#allocation8 + $0xe0] sm:$0xf]
        %v4202 = vld [vmem:[#allocation8 + $0xe4] sm:$0xf]
        %v4203 = vld [vmem:[#allocation8 + $0xe8] sm:$0xf]
        %v4204 = vld [vmem:[#allocation8 + $0xec] sm:$0xf]
        %v4205 = vld [vmem:[#allocation8 + $0xf0] sm:$0xf]
        %v4206 = vld [vmem:[#allocation8 + $0xf4] sm:$0xf]
        %v4207 = vld [vmem:[#allocation8 + $0xf8] sm:$0xf]
        %v4208 = vld [vmem:[#allocation8 + $0xfc] sm:$0xf]
        %v4209 = vpack.c.bf16 %v4141, %v4141
        %v4210 = vpack.c.bf16 %v4142, %v4142
        %v4211 = vpack.c.bf16 %v4143, %v4143
        %v4212 = vpack.c.bf16 %v4144, %v4144
        %v4213 = vld [vmem:[%s16] sm:$0x1]
        %v4278 = vunpack.c.l.b16 %v4145
        %v4279 = vunpack.c.l.b16 %v4146
        %v4280 = vunpack.c.l.b16 %v4147
        %v4281 = vunpack.c.l.b16 %v4148
        %v4282 = vunpack.c.l.b16 %v4149
        %v4283 = vunpack.c.l.b16 %v4150
        %v4284 = vunpack.c.l.b16 %v4151
        %v4285 = vunpack.c.l.b16 %v4152
        %v4286 = vunpack.c.l.b16 %v4153
        %v4287 = vunpack.c.l.b16 %v4154
        %v4288 = vunpack.c.l.b16 %v4155
        %v4289 = vunpack.c.l.b16 %v4156
        %v4290 = vunpack.c.l.b16 %v4157
        %v4291 = vunpack.c.l.b16 %v4158
        %v4292 = vunpack.c.l.b16 %v4159
        %v4293 = vunpack.c.l.b16 %v4160
        %v4294 = vunpack.c.l.b16 %v4161
        %v4295 = vunpack.c.l.b16 %v4162
        %v4296 = vunpack.c.l.b16 %v4163
        %v4297 = vunpack.c.l.b16 %v4164
        %v4298 = vunpack.c.l.b16 %v4165
        %v4299 = vunpack.c.l.b16 %v4166
        %v4300 = vunpack.c.l.b16 %v4167
        %v4301 = vunpack.c.l.b16 %v4168
        %v4302 = vunpack.c.l.b16 %v4169
        %v4303 = vunpack.c.l.b16 %v4170
        %v4304 = vunpack.c.l.b16 %v4171
        %v4305 = vunpack.c.l.b16 %v4172
        %v4306 = vunpack.c.l.b16 %v4173
        %v4307 = vunpack.c.l.b16 %v4174
        %v4308 = vunpack.c.l.b16 %v4175
        %v4309 = vunpack.c.l.b16 %v4176
        %v4310 = vunpack.c.l.b16 %v4177
        %v4311 = vunpack.c.l.b16 %v4178
        %v4312 = vunpack.c.l.b16 %v4179
        %v4313 = vunpack.c.l.b16 %v4180
        %v4314 = vunpack.c.l.b16 %v4181
        %v4315 = vunpack.c.l.b16 %v4182
        %v4316 = vunpack.c.l.b16 %v4183
        %v4317 = vunpack.c.l.b16 %v4184
        %v4318 = vunpack.c.l.b16 %v4185
        %v4319 = vunpack.c.l.b16 %v4186
        %v4320 = vunpack.c.l.b16 %v4187
        %v4321 = vunpack.c.l.b16 %v4188
        %v4322 = vunpack.c.l.b16 %v4189
        %v4323 = vunpack.c.l.b16 %v4190
        %v4324 = vunpack.c.l.b16 %v4191
        %v4325 = vunpack.c.l.b16 %v4192
        %v4326 = vunpack.c.l.b16 %v4193
        %v4327 = vunpack.c.l.b16 %v4194
        %v4328 = vunpack.c.l.b16 %v4195
        %v4329 = vunpack.c.l.b16 %v4196
        %v4330 = vunpack.c.l.b16 %v4197
        %v4331 = vunpack.c.l.b16 %v4198
        %v4332 = vunpack.c.l.b16 %v4199
        %v4333 = vunpack.c.l.b16 %v4200
        %v4334 = vunpack.c.l.b16 %v4201
        %v4335 = vunpack.c.l.b16 %v4202
        %v4336 = vunpack.c.l.b16 %v4203
        %v4337 = vunpack.c.l.b16 %v4204
        %v4338 = vunpack.c.l.b16 %v4205
        %v4339 = vunpack.c.l.b16 %v4206
        %v4340 = vunpack.c.l.b16 %v4207
        %v4341 = vunpack.c.l.b16 %v4208
        %v4342 = vpack.c.b16 %v4279, %v4278
        %v4343 = vpack.c.b16 %v4281, %v4280
        %v4344 = vpack.c.b16 %v4283, %v4282
        %v4345 = vpack.c.b16 %v4285, %v4284
        %v4346 = vpack.c.b16 %v4287, %v4286
        %v4347 = vpack.c.b16 %v4289, %v4288
        %v4348 = vpack.c.b16 %v4291, %v4290
        %v4349 = vpack.c.b16 %v4293, %v4292
        %v4350 = vpack.c.b16 %v4295, %v4294
        %v4351 = vpack.c.b16 %v4297, %v4296
        %v4352 = vpack.c.b16 %v4299, %v4298
        %v4353 = vpack.c.b16 %v4301, %v4300
        %v4354 = vpack.c.b16 %v4303, %v4302
        %v4355 = vpack.c.b16 %v4305, %v4304
        %v4356 = vpack.c.b16 %v4307, %v4306
        %v4357 = vpack.c.b16 %v4309, %v4308
        %v4358 = vpack.c.b16 %v4311, %v4310
        %v4359 = vpack.c.b16 %v4313, %v4312
        %v4360 = vpack.c.b16 %v4315, %v4314
        %v4361 = vpack.c.b16 %v4317, %v4316
        %v4362 = vpack.c.b16 %v4319, %v4318
        %v4363 = vpack.c.b16 %v4321, %v4320
        %v4364 = vpack.c.b16 %v4323, %v4322
        %v4365 = vpack.c.b16 %v4325, %v4324
        %v4366 = vpack.c.b16 %v4327, %v4326
        %v4367 = vpack.c.b16 %v4329, %v4328
        %v4368 = vpack.c.b16 %v4331, %v4330
        %v4369 = vpack.c.b16 %v4333, %v4332
        %v4370 = vpack.c.b16 %v4335, %v4334
        %v4371 = vpack.c.b16 %v4337, %v4336
        %v4372 = vpack.c.b16 %v4339, %v4338
        %v4373 = vpack.c.b16 %v4341, %v4340
        %4406 = vmatpush.bf16.msra.mxu0 %v4349
        %4407 = vmatpush.bf16.msra.mxu0 %v4348
        %4408 = vmatpush.bf16.msra.mxu0 %v4347
        %4409 = vmatpush.bf16.msra.mxu0 %v4346
        %4410 = vmatpush.bf16.msra.mxu0 %v4345
        %4411 = vmatpush.bf16.msra.mxu0 %v4344
        %4412 = vmatpush.bf16.msra.mxu0 %v4343
        %4413 = vmatpush.bf16.msra.mxu0 %v4342
        %4414 = vmatmul.bf16.gmra.mxu0 %v4209
        %v4415 = vpop.f32.mrf.mxu0
        %v4416 = vadd.f32 %v4213, %v4415
        %v4417 = vpop.f32.mrf.mxu0
        %4418 = vdwg.mxu0
        %4419 = vmatpush.bf16.msra.mxu0 %v4357
        %4420 = vmatpush.bf16.msra.mxu0 %v4356
        %4421 = vmatpush.bf16.msra.mxu0 %v4355
        %4422 = vmatpush.bf16.msra.mxu0 %v4354
        %4423 = vmatpush.bf16.msra.mxu0 %v4353
        %4424 = vmatpush.bf16.msra.mxu0 %v4352
        %4425 = vmatpush.bf16.msra.mxu0 %v4351
        %4426 = vmatpush.bf16.msra.mxu0 %v4350
        %4427 = vmatmul.bf16.gmra.mxu0 %v4210
        %v4428 = vpop.f32.mrf.mxu0
        %v4429 = vadd.f32 %v4416, %v4428
        %v4430 = vpop.f32.mrf.mxu0
        %4431 = vdwg.mxu0
        %4432 = vmatpush.bf16.msra.mxu0 %v4365
        %4433 = vmatpush.bf16.msra.mxu0 %v4364
        %4434 = vmatpush.bf16.msra.mxu0 %v4363
        %4435 = vmatpush.bf16.msra.mxu0 %v4362
        %4436 = vmatpush.bf16.msra.mxu0 %v4361
        %4437 = vmatpush.bf16.msra.mxu0 %v4360
        %4438 = vmatpush.bf16.msra.mxu0 %v4359
        %4439 = vmatpush.bf16.msra.mxu0 %v4358
        %4440 = vmatmul.bf16.gmra.mxu0 %v4211
        %v4441 = vpop.f32.mrf.mxu0
        %v4442 = vadd.f32 %v4429, %v4441
        %v4443 = vpop.f32.mrf.mxu0
        %4444 = vdwg.mxu0
        %4445 = vmatpush.bf16.msra.mxu0 %v4373
        %4446 = vmatpush.bf16.msra.mxu0 %v4372
        %4447 = vmatpush.bf16.msra.mxu0 %v4371
        %4448 = vmatpush.bf16.msra.mxu0 %v4370
        %4449 = vmatpush.bf16.msra.mxu0 %v4369
        %4450 = vmatpush.bf16.msra.mxu0 %v4368
        %4451 = vmatpush.bf16.msra.mxu0 %v4367
        %4452 = vmatpush.bf16.msra.mxu0 %v4366
        %4453 = vmatmul.bf16.gmra.mxu0 %v4212
        %v4454 = vpop.f32.mrf.mxu0
        %v4455 = vadd.f32 %v4442, %v4454
        %v4456 = vpop.f32.mrf.mxu0
        %4457 = vdwg.mxu0
        %4458 = vst [vmem:[%s605] sm:$0x1] %v4455
        %s4459 = sand.u32 %s404, 1
        %s4460 = scalar_lea.sflag [#allocation4], %s4459
        %s4461 = sand.u32 %s404, 1
        %s4462 = scalar_lea.vmem [#allocation10], %s4461
        // Predicated region
        $region105: #{tpu_custom_call.1} parent=87 // pred_check
          %p4463 = pneg %p414
        $region106: #{tpu_custom_call.1} parent=87 // pred_check_branch
          %4465 = sbr.rel (%p4463) target = $region108
        $region107: #{tpu_custom_call.1} parent=87 // pred_region
          %4467 = vsyncadd %s4460, 0
          %s4468 = scalar_lea.hbm %s17, %s34
          %s4470 = sshll.u32 %s4462, 4
          %s4471 = int_to_ptr.vmem [resolvable:$true] %s4470
          %s4472 = sshll.u32 %s4468, 4
          %s4473 = int_to_ptr.hbm [resolvable:$true] %s4472
          %4475 = dma.vmem_to_hbm [thread:$0]  %s4471, 16, %s4473, %s4460
        $region108: #{tpu_custom_call.1} parent=87 // pred_fallthru
          _
      $region88: #{tpu_custom_call.1} parent=5 // pred_fallthru
        _
      %p4476 = scmp.le.s32.totalorder 2, %s29
      // Predicated region
      $region109: #{tpu_custom_call.1} parent=5 // pred_check
        %p4477 = pneg %p4476
      $region110: #{tpu_custom_call.1} parent=5 // pred_check_branch
        %4479 = sbr.rel (%p4477) target = $region112
      $region111: #{tpu_custom_call.1} parent=5 // pred_region
        %s4480 = ssub.s32 %s29, 2
        // Predicated region
        $region113: #{tpu_custom_call.1} parent=111 // pred_check
          %p4481 = pneg %p420
        $region114: #{tpu_custom_call.1} parent=111 // pred_check_branch
          %4483 = sbr.rel (%p4481) target = $region116
        $region115: #{tpu_custom_call.1} parent=111 // pred_region
          %s4484 = sand.u32 %s405, 1
          %s4485 = scalar_lea.sflag [#allocation4], %s4484
          %s4486 = sand.u32 %s405, 1
          %s4487 = scalar_lea.vmem [#allocation10], %s4486
          %4489 = dma.done %s4485, 16
        $region116: #{tpu_custom_call.1} parent=111 // pred_fallthru
          _
      $region112: #{tpu_custom_call.1} parent=5 // pred_fallthru
        _
    $region6: #{tpu_custom_call.1} parent=1 // loop_footer
      %s33 = sadd.s32 1, %s29
    $region7: #{tpu_custom_call.1} parent=1 // loop_footer_branch
      %28 = sbr.rel target = $region3
    $region8: #{tpu_custom_call.1} parent=1 // loop_exit
      _
    %4490 = vsyncpa [#allocation3], 1
    %s4491 = scalar_lea.sflag [#allocation3], 1
    %4492 = vsyncpa %s4491, 1
    %4493 = vsyncpa [#allocation6], 1
    %4494 = vsyncpa [#allocation9], 1
    %4495 = vsyncpa [#allocation4], 1
    %s4496 = scalar_lea.sflag [#allocation4], 1
    %4497 = vsyncpa %s4496, 1

</llo_original>
